<compile_context>
chip_gen: v5e
topology: v5e:2x2
jax: 0.10.0
libtpu: 0.0.40
codegen_flags: <defaults>
</compile_context>

<pallas_src>
import jax
import jax.numpy as jnp
from jax.experimental import pallas as pl
from jax.experimental.pallas import tpu as pltpu

BN_EPS = 1e-3
LANES = 128                       # TPU vreg lane width
COMPUTE_DTYPE = jnp.bfloat16      # MXU operand dtype; accumulation stays f32
ACT_DTYPE = jnp.bfloat16          # VMEM activation scratch dtype


def get_same_padding(kernel_size, stride, dilation):
    if stride > 1 and dilation > 1:
        raise ValueError('Only stride OR dilation may be greater than 1')
    if dilation > 1:
        return dilation * kernel_size // 2 - 1
    return kernel_size // 2


# ------------------------------ Pallas kernel ------------------------------ #

def _make_encoder_kernel(block_meta, act_kind, halo, rf, t_tile, t_ext,
                         buf_rows, c_max, cin0):
    """Whole-encoder fused kernel, one (batch, T-tile) pair per grid step.

    Tiling correctness: every layer is computed over the extended window
    W = [t0 - rf, t0 + t_tile + rf) (rf = cumulative 'same' padding of all
    convs).  Layer j's output is only *needed* correct over +-(pads of the
    convs after j); recomputing from the raw input over W with a p_max halo of
    real (masked) input rows guarantees exactly that, so the central t_tile
    rows of the final output match the untiled computation.

    Kernel refs: (lens_smem, x, *per-layer params, out, act_buf).  Per-layer
    params per block, in order: [res_w, res_shift] if residual, then for every
    repeat [w, shift] (BN scale folded into w; final-layer couts lane-padded).
    """

    def act(v):
        if act_kind == 'relu':
            return jnp.maximum(v, 0.0)
        if act_kind == 'hardtanh':
            return jnp.clip(v, 0.0, 20.0)
        raise NotImplementedError(act_kind)  # TODO(synk): selu unused here

    n_blocks = len(block_meta)

    def kernel(lens_ref, x_ref, *rest):
        o_ref, act_buf = rest[-2], rest[-1]
        param_refs = rest[:-2]

        b = pl.program_id(0)
        ti = pl.program_id(1)
        L = lens_ref[b]
        t0 = ti * t_tile

        # Zero ONLY the halo rows (the one region that is read but never
        # rewritten this step); everything else is write-before-read.
        # Kept unconditional so it is correct with "parallel" grid sharding.
        zeros = jnp.zeros((halo, c_max), ACT_DTYPE)
        act_buf[:halo, :] = zeros
        act_buf[halo + t_ext:, :] = zeros

        # Hoisted MaskedConv1d length mask + sequence-boundary zero padding:
        # valid iff 0 <= virtual_time < L.  Computed once per grid step.
        row = jax.lax.broadcasted_iota(jnp.int32, (buf_rows, 1), 0)
        vpos = row + (t0 - rf - halo)              # virtual time of buffer row
        mask_full = jnp.logical_and(vpos >= 0, vpos < L).astype(jnp.float32)
        mask_w = mask_full[halo:halo + t_ext]      # mask for the W window

        # Halo-extended, masked input tile.  x_ref holds the whole (wrapper
        # zero-padded) sequence of this batch element; in that frame the
        # window simply starts at t0 (a multiple of t_tile -> aligned).
        start = pl.multiple_of(t0, t_tile)
        xin = x_ref[pl.ds(start, buf_rows), :]
        act_buf[:, :cin0] = (xin * mask_full).astype(ACT_DTYPE)

        def store_act(val, width):
            # MaskedConv1d: zero invalid time steps before a conv consumes them.
            act_buf[halo:halo + t_ext, :width] = (val * mask_w).astype(ACT_DTYPE)

        def conv_bn(cin, K, pad, w_ref, shift_ref):
            # Masked conv1d + folded BN as K shifted MXU matmuls accumulated
            # in f32 (no im2col buffer, no contraction lane padding).
            base = halo - pad
            y = None
            for k in range(K):
                xk = act_buf[base + k:base + k + t_ext, :cin]     # bf16
                p = jnp.dot(xk, w_ref[k], preferred_element_type=jnp.float32)
                y = p if y is None else y + p
            return y + shift_ref[...]                             # BN shift

        ri = 0
        out = None
        for bi, bm in enumerate(block_meta):
            cin = bm['cin']
            res = None
            if bm['res']:
                # 1x1 residual at block entry: keep only its f32 result live.
                rw_ref, rs_ref = param_refs[ri], param_refs[ri + 1]
                ri += 2
                res = jnp.dot(act_buf[halo:halo + t_ext, :cin], rw_ref[...],
                              preferred_element_type=jnp.float32) + rs_ref[...]
            c = cin
            for r in range(bm['repeat']):
                w_ref, s_ref = param_refs[ri], param_refs[ri + 1]
                ri += 2
                out = conv_bn(c, bm['K'], bm['pad'], w_ref, s_ref)
                c = bm['cout']
                if r < bm['repeat'] - 1:
                    out = act(out)
                    store_act(out, c)
            if res is not None:
                out = out + res
            out = act(out)                          # mout (dropout = identity)
            if bi < n_blocks - 1:
                store_act(out, bm['cout'])          # feeds next block
        assert ri == len(param_refs)

        # Lane-dense store of the central t_tile rows (final couts are padded
        # to a 128-multiple by the wrapper).
        o_ref[...] = out[rf:rf + t_tile, :].astype(o_ref.dtype)

    return kernel


# --------------------------- parameter building --------------------------- #

def xavier_uniform_conv(key, cout, cin, k):
    # PyTorch nn.init.xavier_uniform_ on Conv1d weight [Cout, Cin, K],
    # returned transposed to [K, Cin, Cout].
    fan_in, fan_out = cin * k, cout * k
    limit = (6.0 / (fan_in + fan_out)) ** 0.5
    w = jax.random.uniform(key, (cout, cin, k), jnp.float32, -limit, limit)
    return jnp.transpose(w, (2, 1, 0))


def fold_bn(gamma, beta, mean, var, eps=BN_EPS):
    scale = gamma / jnp.sqrt(var + eps)
    shift = beta - mean * scale
    return scale, shift


def _fold_pad(w, scale, shift, cout_pad=None):
    """BN-scale-folded conv weight (bf16 [K,Cin,Cout]) + shift row (f32 [1,Cout]);
    optionally zero-padded on the output-channel axis (lane-dense HBM store)."""
    wf = w * scale[None, None, :]
    sh = shift
    cout = w.shape[-1]
    if cout_pad is not None and cout_pad != cout:
        wf = jnp.pad(wf, ((0, 0), (0, 0), (0, cout_pad - cout)))
        sh = jnp.pad(sh, (0, cout_pad - cout))
    return wf.astype(COMPUTE_DTYPE), sh.reshape(1, -1).astype(jnp.float32)


MODEL_DEF = [
    {'filters': 32, 'repeat': 2, 'kernel': [3], 'stride': [1], 'dilation': [1],
     'dropout': 0.0, 'residual': True},
    {'filters': 32, 'repeat': 2, 'kernel': [3], 'stride': [1], 'dilation': [1],
     'dropout': 0.0, 'residual': True},
]


def init_jasper_encoder(key, input_dim, model_def):
    blocks = []
    cin = input_dim
    for lc in model_def:
        cout = lc['filters']
        K = lc['kernel'][0]
        stride, dil = lc['stride'][0], lc['dilation'][0]
        assert stride == 1 and dil == 1   # TODO(synk): strided/dilated convs
        assert K % 2 == 1, "'same' padding with even K would change T"
        pad = get_same_padding(K, stride, dil)
        block = {'K': K, 'pad': pad, 'repeat': lc['repeat'],
                 'cin': cin, 'cout': cout, 'convs': [], 'res_conv': None}
        c = cin
        for _ in range(lc['repeat']):
            key, sub = jax.random.split(key)
            w = xavier_uniform_conv(sub, cout, c, K)
            # BatchNorm1d after init_weights: gamma=1, beta=0, mean=0, var=1.
            scale, shift = fold_bn(jnp.ones(cout), jnp.zeros(cout),
                                   jnp.zeros(cout), jnp.ones(cout))
            block['convs'].append({'w': w, 'scale': scale, 'shift': shift})
            c = cout
        if lc['residual']:
            key, sub = jax.random.split(key)
            wr = xavier_uniform_conv(sub, cout, cin, 1)
            rscale, rshift = fold_bn(jnp.ones(cout), jnp.zeros(cout),
                                     jnp.zeros(cout), jnp.ones(cout))
            block['res_conv'] = {'w': wr, 'scale': rscale, 'shift': rshift}
        blocks.append(block)
        cin = cout
    return blocks


# ------------------------------ encoder fwd ------------------------------- #

def jasper_encoder_forward(blocks, x, lens, act_kind='relu', t_tile=128):
    """x: [B, T, C_in] f32, lens: [B] int32  ->  ([B, T, C_out], lens)."""
    B, T, cin0 = x.shape
    assert cin0 == blocks[0]['cin']

    cout_final = blocks[-1]['cout']
    cout_pad = ((cout_final + LANES - 1) // LANES) * LANES

    # Static tile geometry.
    rf = sum(blk['pad'] * blk['repeat'] for blk in blocks)   # cumulative halo
    p_max = max(blk['pad'] for blk in blocks)
    halo = max(16, ((p_max + 15) // 16) * 16)   # 16-aligned for bf16 packing
    t_tile = min(t_tile, T)
    n_t = -(-T // t_tile)
    t_grid = n_t * t_tile
    t_ext = t_tile + 2 * rf                     # per-layer compute window
    buf_rows = t_ext + 2 * halo
    c_max = max([cin0] + [blk['cout'] for blk in blocks])

    # Flatten kernel-ready params: per block, residual first, then repeats.
    # Only the weights whose outputs reach o_ref are padded to cout_pad.
    flat, block_meta = [], []
    for bi, blk in enumerate(blocks):
        last_block = bi == len(blocks) - 1
        block_meta.append(dict(K=blk['K'], pad=blk['pad'], repeat=blk['repeat'],
                               res=blk['res_conv'] is not None,
                               cin=blk['cin'], cout=blk['cout']))
        if blk['res_conv'] is not None:
            rc = blk['res_conv']
            rw, rsh = _fold_pad(rc['w'], rc['scale'], rc['shift'],
                                cout_pad if last_block else None)
            flat += [rw[0], rsh]                       # 1x1 conv -> 2-D weight
        for r, cv in enumerate(blk['convs']):
            last_conv = last_block and r == blk['repeat'] - 1
            w, sh = _fold_pad(cv['w'], cv['scale'], cv['shift'],
                              cout_pad if last_conv else None)
            flat += [w, sh]

    # One-time zero pad of the raw input only, so every T tile reads a valid
    # halo-extended window [t0, t0 + buf_rows) at a static size/aligned start.
    pad_t = rf + halo
    x_pad = jnp.pad(x, ((0, 0), (pad_t, pad_t + t_grid - T), (0, 0)))

    kernel = _make_encoder_kernel(tuple(block_meta), act_kind, halo, rf,
                                  t_tile, t_ext, buf_rows, c_max, cin0)

    # Input: whole padded sequence per batch element, block index constant over
    # the T axis -> DMA'd once per b and kept resident.
    in_specs = [pl.BlockSpec((None, x_pad.shape[1], cin0),
                             lambda b, ti, lref: (b, 0, 0))]
    in_specs += [pl.BlockSpec(a.shape, lambda b, ti, lref, nd=a.ndim: (0,) * nd)
                 for a in flat]
    # TODO(synk): pipeline_mode=pl.Buffered(1) on the weight specs (grid-
    #             invariant index) would halve resident weight VMEM on v7x.

    # Derive the VMEM budget from the actual resident footprint (cap for v7x).
    def _nbytes(a):
        return int(a.size) * a.dtype.itemsize
    est = (2 * sum(_nbytes(a) for a in flat)             # double-buffered weights
           + 2 * x_pad.shape[1] * max(cin0, LANES) * 4   # resident input tile
           + 2 * t_tile * cout_pad * 4                   # output tile
           + buf_rows * max(c_max, LANES) * 2)           # bf16 act scratch
    vmem_limit = min(64 << 20, max(16 << 20, 2 * est))

    out = pl.pallas_call(
        kernel,
        out_shape=jax.ShapeDtypeStruct((B, t_grid, cout_pad), jnp.float32),
        grid_spec=pltpu.PrefetchScalarGridSpec(
            num_scalar_prefetch=1,
            grid=(B, n_t),                       # (batch, T-tile) per step
            in_specs=in_specs,
            out_specs=pl.BlockSpec((None, t_tile, cout_pad),
                                   lambda b, ti, lref: (b, ti, 0)),
            scratch_shapes=[pltpu.VMEM((buf_rows, c_max), ACT_DTYPE)]),
        compiler_params=pltpu.CompilerParams(
            dimension_semantics=("parallel", "parallel"),
            vmem_limit_bytes=vmem_limit),
    )(lens, x_pad, *flat)

    # Trim T padding and the lane padding of the final channel dim.
    # lens unchanged: stride=1, dilation=1, 'same' padding.
    return out[:, :T, :cout_final], lens


# --------------------------- pure-JAX reference ---------------------------- #

def ref_forward(blocks, x, lens, act_kind='relu'):
    def act(y):
        return jnp.maximum(y, 0.0) if act_kind == 'relu' else jnp.clip(y, 0.0, 20.0)

    def mask(y):
        t = jnp.arange(y.shape[1])
        return jnp.where(t[None, :, None] < lens[:, None, None], y, 0.0)

    def conv(y, w, pad):
        return jax.lax.conv_general_dilated(
            y, w, window_strides=(1,), padding=[(pad, pad)],
            dimension_numbers=('NWC', 'WIO', 'NWC'))

    out = x
    for blk in blocks:
        block_in = out
        n = blk['repeat']
        for r in range(n):
            cv = blk['convs'][r]
            out = conv(mask(out), cv['w'], blk['pad']) * cv['scale'] + cv['shift']
            if r < n - 1:
                out = act(out)
        if blk['res_conv'] is not None:
            rc = blk['res_conv']
            out = out + (conv(mask(block_in), rc['w'], 0) * rc['scale'] + rc['shift'])
        out = act(out)
    return out, lens


# ---------------------------------- main ----------------------------------- #

if __name__ == "__main__":
    key = jax.random.PRNGKey(0)
    B, T, C_IN = 2, 256, 16
    kx, kp = jax.random.split(key)

    # PyTorch call would be encoder(audio_signal=[B, C_IN, T], length=[B]);
    # x here is the same data in [B, T, C] (channels-last) layout.
    x = jax.random.normal(kx, (B, T, C_IN), jnp.float32)
    lens = jnp.array([T, 200], dtype=jnp.int32)

    blocks = init_jasper_encoder(kp, C_IN, MODEL_DEF)

    out, out_lens = jasper_encoder_forward(blocks, x, lens,
                                           act_kind='relu', t_tile=128)
    out = jax.block_until_ready(out)

    ref, _ = ref_forward(blocks, x, lens, act_kind='relu')
    assert out.shape == (B, T, MODEL_DEF[-1]['filters'])
    # bf16 MXU operands / bf16 activation scratch (f32 accumulation) vs. an
    # f32 reference -> loosened tolerance.
    err = float(jnp.abs(out - ref).max())
    assert jnp.allclose(out, ref, atol=5e-2, rtol=5e-2), err
    print("KERNEL_OK")
</pallas_src>

<mosaic_0001>
module attributes {stable_mosaic.version = 11 : i64} {
  func.func @kernel(%arg0: i32, %arg1: i32, %arg2: memref<2xi32, #tpu.memory_space<smem>>, %arg3: memref<1x296x16xf32, #tpu.memory_space<vmem>>, %arg4: memref<16x32xbf16, #tpu.memory_space<vmem>>, %arg5: memref<1x32xf32, #tpu.memory_space<vmem>>, %arg6: memref<3x16x32xbf16, #tpu.memory_space<vmem>>, %arg7: memref<1x32xf32, #tpu.memory_space<vmem>>, %arg8: memref<3x32x32xbf16, #tpu.memory_space<vmem>>, %arg9: memref<1x32xf32, #tpu.memory_space<vmem>>, %arg10: memref<32x128xbf16, #tpu.memory_space<vmem>>, %arg11: memref<1x128xf32, #tpu.memory_space<vmem>>, %arg12: memref<3x32x32xbf16, #tpu.memory_space<vmem>>, %arg13: memref<1x32xf32, #tpu.memory_space<vmem>>, %arg14: memref<3x32x128xbf16, #tpu.memory_space<vmem>>, %arg15: memref<1x128xf32, #tpu.memory_space<vmem>>, %arg16: memref<1x128x128xf32, #tpu.memory_space<vmem>>, %arg17: memref<168x32xbf16, #tpu.memory_space<vmem>>) attributes {dimension_semantics = [#tpu.dimension_semantics<parallel>, #tpu.dimension_semantics<parallel>], iteration_bounds = array<i64: 2, 2>, scalar_prefetch = 1 : i64, scratch_operands = 1 : i64, tpu.core_type = #tpu.core_type<tc>, window_params = [{transform_indices = @transform_0, window_bounds = array<i64: 1, 296, 16>}, {pipeline_mode = #tpu.pipeline_mode<synchronous>, transform_indices = @transform_1, window_bounds = array<i64: 16, 32>}, {pipeline_mode = #tpu.pipeline_mode<synchronous>, transform_indices = @transform_2, window_bounds = array<i64: 1, 32>}, {pipeline_mode = #tpu.pipeline_mode<synchronous>, transform_indices = @transform_3, window_bounds = array<i64: 3, 16, 32>}, {pipeline_mode = #tpu.pipeline_mode<synchronous>, transform_indices = @transform_4, window_bounds = array<i64: 1, 32>}, {pipeline_mode = #tpu.pipeline_mode<synchronous>, transform_indices = @transform_5, window_bounds = array<i64: 3, 32, 32>}, {pipeline_mode = #tpu.pipeline_mode<synchronous>, transform_indices = @transform_6, window_bounds = array<i64: 1, 32>}, {pipeline_mode = #tpu.pipeline_mode<synchronous>, transform_indices = @transform_7, window_bounds = array<i64: 32, 128>}, {pipeline_mode = #tpu.pipeline_mode<synchronous>, transform_indices = @transform_8, window_bounds = array<i64: 1, 128>}, {pipeline_mode = #tpu.pipeline_mode<synchronous>, transform_indices = @transform_9, window_bounds = array<i64: 3, 32, 32>}, {pipeline_mode = #tpu.pipeline_mode<synchronous>, transform_indices = @transform_10, window_bounds = array<i64: 1, 32>}, {pipeline_mode = #tpu.pipeline_mode<synchronous>, transform_indices = @transform_11, window_bounds = array<i64: 3, 32, 128>}, {pipeline_mode = #tpu.pipeline_mode<synchronous>, transform_indices = @transform_12, window_bounds = array<i64: 1, 128>}, {transform_indices = @transform_13, window_bounds = array<i64: 1, 128, 128>}]} {
    %0 = arith.index_cast %arg0 : i32 to index
    %1 = memref.load %arg2[%0] : memref<2xi32, #tpu.memory_space<smem>>
    %c128_i32 = arith.constant 128 : i32
    %2 = arith.muli %arg1, %c128_i32 : i32
    %cst = arith.constant 0.000000e+00 : bf16
    %3 = vector.broadcast %cst : bf16 to vector<16x32xbf16>
    %c0 = arith.constant 0 : index
    %c0_0 = arith.constant 0 : index
    %4 = vector.load %arg17[%c0, %c0_0] : memref<168x32xbf16, #tpu.memory_space<vmem>>, vector<16x32xbf16>
    tpu.vector_store %arg17[%c0, %c0_0], %3 {strides = array<i32>} : memref<168x32xbf16, #tpu.memory_space<vmem>>, vector<16x32xbf16>,
    %c152 = arith.constant 152 : index
    %c0_1 = arith.constant 0 : index
    %5 = vector.load %arg17[%c152, %c0_1] : memref<168x32xbf16, #tpu.memory_space<vmem>>, vector<16x32xbf16>
    tpu.vector_store %arg17[%c152, %c0_1], %3 {strides = array<i32>} : memref<168x32xbf16, #tpu.memory_space<vmem>>, vector<16x32xbf16>,
    %6 = tpu.iota {dimensions = array<i32: 0>} : vector<168x1xi32>
    %c4_i32 = arith.constant 4 : i32
    %7 = arith.subi %2, %c4_i32 : i32
    %c16_i32 = arith.constant 16 : i32
    %8 = arith.subi %7, %c16_i32 : i32
    %9 = vector.broadcast %8 : i32 to vector<168x1xi32>
    %10 = arith.addi %6, %9 : vector<168x1xi32>
    %c0_i32 = arith.constant 0 : i32
    %11 = vector.broadcast %c0_i32 : i32 to vector<168x1xi32>
    %12 = arith.cmpi sge, %10, %11 : vector<168x1xi32>
    %13 = vector.broadcast %1 : i32 to vector<168x1xi32>
    %14 = arith.cmpi slt, %10, %13 : vector<168x1xi32>
    %15 = arith.andi %12, %14 : vector<168x1xi1>
    %16 = arith.extui %15 : vector<168x1xi1> to vector<168x1xi32>
    %17 = arith.sitofp %16 : vector<168x1xi32> to vector<168x1xf32>
    %18 = vector.extract_strided_slice %17 {offsets = [16, 0], sizes = [136, 1], strides = [1, 1]} : vector<168x1xf32> to vector<136x1xf32>
    %19 = tpu.assume_multiple %2, 128 : i32
    %c0_2 = arith.constant 0 : index
    %20 = arith.index_cast %19 : i32 to index
    %c0_3 = arith.constant 0 : index
    %21 = vector.load %arg3[%c0_2, %20, %c0_3] : memref<1x296x16xf32, #tpu.memory_space<vmem>>, vector<1x168x16xf32>
    %22 = vector.shape_cast %21 : vector<1x168x16xf32> to vector<168x16xf32>
    %23 = vector.broadcast %17 : vector<168x1xf32> to vector<168x16xf32>
    %24 = arith.mulf %22, %23 : vector<168x16xf32>
    %25 = arith.truncf %24 : vector<168x16xf32> to vector<168x16xbf16>
    %c0_4 = arith.constant 0 : index
    %c0_5 = arith.constant 0 : index
    %26 = vector.load %arg17[%c0_4, %c0_5] : memref<168x32xbf16, #tpu.memory_space<vmem>>, vector<168x16xbf16>
    tpu.vector_store %arg17[%c0_4, %c0_5], %25 {strides = array<i32>} : memref<168x32xbf16, #tpu.memory_space<vmem>>, vector<168x16xbf16>,
    %c16 = arith.constant 16 : index
    %c0_6 = arith.constant 0 : index
    %27 = vector.load %arg17[%c16, %c0_6] : memref<168x32xbf16, #tpu.memory_space<vmem>>, vector<136x16xbf16>
    %c0_7 = arith.constant 0 : index
    %c0_8 = arith.constant 0 : index
    %28 = vector.load %arg4[%c0_7, %c0_8] : memref<16x32xbf16, #tpu.memory_space<vmem>>, vector<16x32xbf16>
    %cst_9 = arith.constant dense<0.000000e+00> : vector<136x32xf32>
    %29 = tpu.matmul %27, %28, %cst_9 {dimension_numbers = #tpu.dot_dimension_numbers<[1], [0], [0], [1], [0, 0, 1, 1], [], []>} : vector<136x16xbf16>, vector<16x32xbf16>, vector<136x32xf32> -> vector<136x32xf32>
    %c0_10 = arith.constant 0 : index
    %c0_11 = arith.constant 0 : index
    %30 = vector.load %arg5[%c0_10, %c0_11] : memref<1x32xf32, #tpu.memory_space<vmem>>, vector<1x32xf32>
    %31 = vector.broadcast %30 : vector<1x32xf32> to vector<136x32xf32>
    %32 = arith.addf %29, %31 : vector<136x32xf32>
    %c15 = arith.constant 15 : index
    %c0_12 = arith.constant 0 : index
    %33 = vector.load %arg17[%c15, %c0_12] : memref<168x32xbf16, #tpu.memory_space<vmem>>, vector<136x16xbf16>
    %c0_13 = arith.constant 0 : index
    %c0_14 = arith.constant 0 : index
    %c0_15 = arith.constant 0 : index
    %34 = vector.load %arg6[%c0_13, %c0_14, %c0_15] : memref<3x16x32xbf16, #tpu.memory_space<vmem>>, vector<1x16x32xbf16>
    %35 = vector.shape_cast %34 : vector<1x16x32xbf16> to vector<16x32xbf16>
    %cst_16 = arith.constant dense<0.000000e+00> : vector<136x32xf32>
    %36 = tpu.matmul %33, %35, %cst_16 {dimension_numbers = #tpu.dot_dimension_numbers<[1], [0], [0], [1], [0, 0, 1, 1], [], []>} : vector<136x16xbf16>, vector<16x32xbf16>, vector<136x32xf32> -> vector<136x32xf32>
    %c16_17 = arith.constant 16 : index
    %c0_18 = arith.constant 0 : index
    %37 = vector.load %arg17[%c16_17, %c0_18] : memref<168x32xbf16, #tpu.memory_space<vmem>>, vector<136x16xbf16>
    %c1 = arith.constant 1 : index
    %c0_19 = arith.constant 0 : index
    %c0_20 = arith.constant 0 : index
    %38 = vector.load %arg6[%c1, %c0_19, %c0_20] : memref<3x16x32xbf16, #tpu.memory_space<vmem>>, vector<1x16x32xbf16>
    %39 = vector.shape_cast %38 : vector<1x16x32xbf16> to vector<16x32xbf16>
    %cst_21 = arith.constant dense<0.000000e+00> : vector<136x32xf32>
    %40 = tpu.matmul %37, %39, %cst_21 {dimension_numbers = #tpu.dot_dimension_numbers<[1], [0], [0], [1], [0, 0, 1, 1], [], []>} : vector<136x16xbf16>, vector<16x32xbf16>, vector<136x32xf32> -> vector<136x32xf32>
    %41 = arith.addf %36, %40 : vector<136x32xf32>
    %c17 = arith.constant 17 : index
    %c0_22 = arith.constant 0 : index
    %42 = vector.load %arg17[%c17, %c0_22] : memref<168x32xbf16, #tpu.memory_space<vmem>>, vector<136x16xbf16>
    %c2 = arith.constant 2 : index
    %c0_23 = arith.constant 0 : index
    %c0_24 = arith.constant 0 : index
    %43 = vector.load %arg6[%c2, %c0_23, %c0_24] : memref<3x16x32xbf16, #tpu.memory_space<vmem>>, vector<1x16x32xbf16>
    %44 = vector.shape_cast %43 : vector<1x16x32xbf16> to vector<16x32xbf16>
    %cst_25 = arith.constant dense<0.000000e+00> : vector<136x32xf32>
    %45 = tpu.matmul %42, %44, %cst_25 {dimension_numbers = #tpu.dot_dimension_numbers<[1], [0], [0], [1], [0, 0, 1, 1], [], []>} : vector<136x16xbf16>, vector<16x32xbf16>, vector<136x32xf32> -> vector<136x32xf32>
    %46 = arith.addf %41, %45 : vector<136x32xf32>
    %c0_26 = arith.constant 0 : index
    %c0_27 = arith.constant 0 : index
    %47 = vector.load %arg7[%c0_26, %c0_27] : memref<1x32xf32, #tpu.memory_space<vmem>>, vector<1x32xf32>
    %48 = vector.broadcast %47 : vector<1x32xf32> to vector<136x32xf32>
    %49 = arith.addf %46, %48 : vector<136x32xf32>
    %cst_28 = arith.constant 0.000000e+00 : f32
    %50 = vector.broadcast %cst_28 : f32 to vector<136x32xf32>
    %51 = arith.maximumf %49, %50 : vector<136x32xf32>
    %52 = vector.broadcast %18 : vector<136x1xf32> to vector<136x32xf32>
    %53 = arith.mulf %51, %52 : vector<136x32xf32>
    %54 = arith.truncf %53 : vector<136x32xf32> to vector<136x32xbf16>
    %c16_29 = arith.constant 16 : index
    %c0_30 = arith.constant 0 : index
    %55 = vector.load %arg17[%c16_29, %c0_30] : memref<168x32xbf16, #tpu.memory_space<vmem>>, vector<136x32xbf16>
    tpu.vector_store %arg17[%c16_29, %c0_30], %54 {strides = array<i32>} : memref<168x32xbf16, #tpu.memory_space<vmem>>, vector<136x32xbf16>,
    %c15_31 = arith.constant 15 : index
    %c0_32 = arith.constant 0 : index
    %56 = vector.load %arg17[%c15_31, %c0_32] : memref<168x32xbf16, #tpu.memory_space<vmem>>, vector<136x32xbf16>
    %c0_33 = arith.constant 0 : index
    %c0_34 = arith.constant 0 : index
    %c0_35 = arith.constant 0 : index
    %57 = vector.load %arg8[%c0_33, %c0_34, %c0_35] : memref<3x32x32xbf16, #tpu.memory_space<vmem>>, vector<1x32x32xbf16>
    %58 = vector.shape_cast %57 : vector<1x32x32xbf16> to vector<32x32xbf16>
    %cst_36 = arith.constant dense<0.000000e+00> : vector<136x32xf32>
    %59 = tpu.matmul %56, %58, %cst_36 {dimension_numbers = #tpu.dot_dimension_numbers<[1], [0], [0], [1], [0, 0, 1, 1], [], []>} : vector<136x32xbf16>, vector<32x32xbf16>, vector<136x32xf32> -> vector<136x32xf32>
    %c16_37 = arith.constant 16 : index
    %c0_38 = arith.constant 0 : index
    %60 = vector.load %arg17[%c16_37, %c0_38] : memref<168x32xbf16, #tpu.memory_space<vmem>>, vector<136x32xbf16>
    %c1_39 = arith.constant 1 : index
    %c0_40 = arith.constant 0 : index
    %c0_41 = arith.constant 0 : index
    %61 = vector.load %arg8[%c1_39, %c0_40, %c0_41] : memref<3x32x32xbf16, #tpu.memory_space<vmem>>, vector<1x32x32xbf16>
    %62 = vector.shape_cast %61 : vector<1x32x32xbf16> to vector<32x32xbf16>
    %cst_42 = arith.constant dense<0.000000e+00> : vector<136x32xf32>
    %63 = tpu.matmul %60, %62, %cst_42 {dimension_numbers = #tpu.dot_dimension_numbers<[1], [0], [0], [1], [0, 0, 1, 1], [], []>} : vector<136x32xbf16>, vector<32x32xbf16>, vector<136x32xf32> -> vector<136x32xf32>
    %64 = arith.addf %59, %63 : vector<136x32xf32>
    %c17_43 = arith.constant 17 : index
    %c0_44 = arith.constant 0 : index
    %65 = vector.load %arg17[%c17_43, %c0_44] : memref<168x32xbf16, #tpu.memory_space<vmem>>, vector<136x32xbf16>
    %c2_45 = arith.constant 2 : index
    %c0_46 = arith.constant 0 : index
    %c0_47 = arith.constant 0 : index
    %66 = vector.load %arg8[%c2_45, %c0_46, %c0_47] : memref<3x32x32xbf16, #tpu.memory_space<vmem>>, vector<1x32x32xbf16>
    %67 = vector.shape_cast %66 : vector<1x32x32xbf16> to vector<32x32xbf16>
    %cst_48 = arith.constant dense<0.000000e+00> : vector<136x32xf32>
    %68 = tpu.matmul %65, %67, %cst_48 {dimension_numbers = #tpu.dot_dimension_numbers<[1], [0], [0], [1], [0, 0, 1, 1], [], []>} : vector<136x32xbf16>, vector<32x32xbf16>, vector<136x32xf32> -> vector<136x32xf32>
    %69 = arith.addf %64, %68 : vector<136x32xf32>
    %c0_49 = arith.constant 0 : index
    %c0_50 = arith.constant 0 : index
    %70 = vector.load %arg9[%c0_49, %c0_50] : memref<1x32xf32, #tpu.memory_space<vmem>>, vector<1x32xf32>
    %71 = vector.broadcast %70 : vector<1x32xf32> to vector<136x32xf32>
    %72 = arith.addf %69, %71 : vector<136x32xf32>
    %73 = arith.addf %72, %32 : vector<136x32xf32>
    %cst_51 = arith.constant 0.000000e+00 : f32
    %74 = vector.broadcast %cst_51 : f32 to vector<136x32xf32>
    %75 = arith.maximumf %73, %74 : vector<136x32xf32>
    %76 = vector.broadcast %18 : vector<136x1xf32> to vector<136x32xf32>
    %77 = arith.mulf %75, %76 : vector<136x32xf32>
    %78 = arith.truncf %77 : vector<136x32xf32> to vector<136x32xbf16>
    %c16_52 = arith.constant 16 : index
    %c0_53 = arith.constant 0 : index
    %79 = vector.load %arg17[%c16_52, %c0_53] : memref<168x32xbf16, #tpu.memory_space<vmem>>, vector<136x32xbf16>
    tpu.vector_store %arg17[%c16_52, %c0_53], %78 {strides = array<i32>} : memref<168x32xbf16, #tpu.memory_space<vmem>>, vector<136x32xbf16>,
    %c16_54 = arith.constant 16 : index
    %c0_55 = arith.constant 0 : index
    %80 = vector.load %arg17[%c16_54, %c0_55] : memref<168x32xbf16, #tpu.memory_space<vmem>>, vector<136x32xbf16>
    %c0_56 = arith.constant 0 : index
    %c0_57 = arith.constant 0 : index
    %81 = vector.load %arg10[%c0_56, %c0_57] : memref<32x128xbf16, #tpu.memory_space<vmem>>, vector<32x128xbf16>
    %cst_58 = arith.constant dense<0.000000e+00> : vector<136x128xf32>
    %82 = tpu.matmul %80, %81, %cst_58 {dimension_numbers = #tpu.dot_dimension_numbers<[1], [0], [0], [1], [0, 0, 1, 1], [], []>} : vector<136x32xbf16>, vector<32x128xbf16>, vector<136x128xf32> -> vector<136x128xf32>
    %c0_59 = arith.constant 0 : index
    %c0_60 = arith.constant 0 : index
    %83 = vector.load %arg11[%c0_59, %c0_60] : memref<1x128xf32, #tpu.memory_space<vmem>>, vector<1x128xf32>
    %84 = vector.broadcast %83 : vector<1x128xf32> to vector<136x128xf32>
    %85 = arith.addf %82, %84 : vector<136x128xf32>
    %c15_61 = arith.constant 15 : index
    %c0_62 = arith.constant 0 : index
    %86 = vector.load %arg17[%c15_61, %c0_62] : memref<168x32xbf16, #tpu.memory_space<vmem>>, vector<136x32xbf16>
    %c0_63 = arith.constant 0 : index
    %c0_64 = arith.constant 0 : index
    %c0_65 = arith.constant 0 : index
    %87 = vector.load %arg12[%c0_63, %c0_64, %c0_65] : memref<3x32x32xbf16, #tpu.memory_space<vmem>>, vector<1x32x32xbf16>
    %88 = vector.shape_cast %87 : vector<1x32x32xbf16> to vector<32x32xbf16>
    %cst_66 = arith.constant dense<0.000000e+00> : vector<136x32xf32>
    %89 = tpu.matmul %86, %88, %cst_66 {dimension_numbers = #tpu.dot_dimension_numbers<[1], [0], [0], [1], [0, 0, 1, 1], [], []>} : vector<136x32xbf16>, vector<32x32xbf16>, vector<136x32xf32> -> vector<136x32xf32>
    %c16_67 = arith.constant 16 : index
    %c0_68 = arith.constant 0 : index
    %90 = vector.load %arg17[%c16_67, %c0_68] : memref<168x32xbf16, #tpu.memory_space<vmem>>, vector<136x32xbf16>
    %c1_69 = arith.constant 1 : index
    %c0_70 = arith.constant 0 : index
    %c0_71 = arith.constant 0 : index
    %91 = vector.load %arg12[%c1_69, %c0_70, %c0_71] : memref<3x32x32xbf16, #tpu.memory_space<vmem>>, vector<1x32x32xbf16>
    %92 = vector.shape_cast %91 : vector<1x32x32xbf16> to vector<32x32xbf16>
    %cst_72 = arith.constant dense<0.000000e+00> : vector<136x32xf32>
    %93 = tpu.matmul %90, %92, %cst_72 {dimension_numbers = #tpu.dot_dimension_numbers<[1], [0], [0], [1], [0, 0, 1, 1], [], []>} : vector<136x32xbf16>, vector<32x32xbf16>, vector<136x32xf32> -> vector<136x32xf32>
    %94 = arith.addf %89, %93 : vector<136x32xf32>
    %c17_73 = arith.constant 17 : index
    %c0_74 = arith.constant 0 : index
    %95 = vector.load %arg17[%c17_73, %c0_74] : memref<168x32xbf16, #tpu.memory_space<vmem>>, vector<136x32xbf16>
    %c2_75 = arith.constant 2 : index
    %c0_76 = arith.constant 0 : index
    %c0_77 = arith.constant 0 : index
    %96 = vector.load %arg12[%c2_75, %c0_76, %c0_77] : memref<3x32x32xbf16, #tpu.memory_space<vmem>>, vector<1x32x32xbf16>
    %97 = vector.shape_cast %96 : vector<1x32x32xbf16> to vector<32x32xbf16>
    %cst_78 = arith.constant dense<0.000000e+00> : vector<136x32xf32>
    %98 = tpu.matmul %95, %97, %cst_78 {dimension_numbers = #tpu.dot_dimension_numbers<[1], [0], [0], [1], [0, 0, 1, 1], [], []>} : vector<136x32xbf16>, vector<32x32xbf16>, vector<136x32xf32> -> vector<136x32xf32>
    %99 = arith.addf %94, %98 : vector<136x32xf32>
    %c0_79 = arith.constant 0 : index
    %c0_80 = arith.constant 0 : index
    %100 = vector.load %arg13[%c0_79, %c0_80] : memref<1x32xf32, #tpu.memory_space<vmem>>, vector<1x32xf32>
    %101 = vector.broadcast %100 : vector<1x32xf32> to vector<136x32xf32>
    %102 = arith.addf %99, %101 : vector<136x32xf32>
    %cst_81 = arith.constant 0.000000e+00 : f32
    %103 = vector.broadcast %cst_81 : f32 to vector<136x32xf32>
    %104 = arith.maximumf %102, %103 : vector<136x32xf32>
    %105 = vector.broadcast %18 : vector<136x1xf32> to vector<136x32xf32>
    %106 = arith.mulf %104, %105 : vector<136x32xf32>
    %107 = arith.truncf %106 : vector<136x32xf32> to vector<136x32xbf16>
    %c16_82 = arith.constant 16 : index
    %c0_83 = arith.constant 0 : index
    %108 = vector.load %arg17[%c16_82, %c0_83] : memref<168x32xbf16, #tpu.memory_space<vmem>>, vector<136x32xbf16>
    tpu.vector_store %arg17[%c16_82, %c0_83], %107 {strides = array<i32>} : memref<168x32xbf16, #tpu.memory_space<vmem>>, vector<136x32xbf16>,
    %c15_84 = arith.constant 15 : index
    %c0_85 = arith.constant 0 : index
    %109 = vector.load %arg17[%c15_84, %c0_85] : memref<168x32xbf16, #tpu.memory_space<vmem>>, vector<136x32xbf16>
    %c0_86 = arith.constant 0 : index
    %c0_87 = arith.constant 0 : index
    %c0_88 = arith.constant 0 : index
    %110 = vector.load %arg14[%c0_86, %c0_87, %c0_88] : memref<3x32x128xbf16, #tpu.memory_space<vmem>>, vector<1x32x128xbf16>
    %111 = vector.shape_cast %110 : vector<1x32x128xbf16> to vector<32x128xbf16>
    %cst_89 = arith.constant dense<0.000000e+00> : vector<136x128xf32>
    %112 = tpu.matmul %109, %111, %cst_89 {dimension_numbers = #tpu.dot_dimension_numbers<[1], [0], [0], [1], [0, 0, 1, 1], [], []>} : vector<136x32xbf16>, vector<32x128xbf16>, vector<136x128xf32> -> vector<136x128xf32>
    %c16_90 = arith.constant 16 : index
    %c0_91 = arith.constant 0 : index
    %113 = vector.load %arg17[%c16_90, %c0_91] : memref<168x32xbf16, #tpu.memory_space<vmem>>, vector<136x32xbf16>
    %c1_92 = arith.constant 1 : index
    %c0_93 = arith.constant 0 : index
    %c0_94 = arith.constant 0 : index
    %114 = vector.load %arg14[%c1_92, %c0_93, %c0_94] : memref<3x32x128xbf16, #tpu.memory_space<vmem>>, vector<1x32x128xbf16>
    %115 = vector.shape_cast %114 : vector<1x32x128xbf16> to vector<32x128xbf16>
    %cst_95 = arith.constant dense<0.000000e+00> : vector<136x128xf32>
    %116 = tpu.matmul %113, %115, %cst_95 {dimension_numbers = #tpu.dot_dimension_numbers<[1], [0], [0], [1], [0, 0, 1, 1], [], []>} : vector<136x32xbf16>, vector<32x128xbf16>, vector<136x128xf32> -> vector<136x128xf32>
    %117 = arith.addf %112, %116 : vector<136x128xf32>
    %c17_96 = arith.constant 17 : index
    %c0_97 = arith.constant 0 : index
    %118 = vector.load %arg17[%c17_96, %c0_97] : memref<168x32xbf16, #tpu.memory_space<vmem>>, vector<136x32xbf16>
    %c2_98 = arith.constant 2 : index
    %c0_99 = arith.constant 0 : index
    %c0_100 = arith.constant 0 : index
    %119 = vector.load %arg14[%c2_98, %c0_99, %c0_100] : memref<3x32x128xbf16, #tpu.memory_space<vmem>>, vector<1x32x128xbf16>
    %120 = vector.shape_cast %119 : vector<1x32x128xbf16> to vector<32x128xbf16>
    %cst_101 = arith.constant dense<0.000000e+00> : vector<136x128xf32>
    %121 = tpu.matmul %118, %120, %cst_101 {dimension_numbers = #tpu.dot_dimension_numbers<[1], [0], [0], [1], [0, 0, 1, 1], [], []>} : vector<136x32xbf16>, vector<32x128xbf16>, vector<136x128xf32> -> vector<136x128xf32>
    %122 = arith.addf %117, %121 : vector<136x128xf32>
    %c0_102 = arith.constant 0 : index
    %c0_103 = arith.constant 0 : index
    %123 = vector.load %arg15[%c0_102, %c0_103] : memref<1x128xf32, #tpu.memory_space<vmem>>, vector<1x128xf32>
    %124 = vector.broadcast %123 : vector<1x128xf32> to vector<136x128xf32>
    %125 = arith.addf %122, %124 : vector<136x128xf32>
    %126 = arith.addf %125, %85 : vector<136x128xf32>
    %cst_104 = arith.constant 0.000000e+00 : f32
    %127 = vector.broadcast %cst_104 : f32 to vector<136x128xf32>
    %128 = arith.maximumf %126, %127 : vector<136x128xf32>
    %129 = vector.extract_strided_slice %128 {offsets = [4, 0], sizes = [128, 128], strides = [1, 1]} : vector<136x128xf32> to vector<128x128xf32>
    %c0_105 = arith.constant 0 : index
    %c0_106 = arith.constant 0 : index
    %c0_107 = arith.constant 0 : index
    %130 = vector.load %arg16[%c0_105, %c0_106, %c0_107] : memref<1x128x128xf32, #tpu.memory_space<vmem>>, vector<1x128x128xf32>
    %131 = vector.shape_cast %130 : vector<1x128x128xf32> to vector<128x128xf32>
    %132 = vector.shape_cast %129 : vector<128x128xf32> to vector<1x128x128xf32>
    tpu.vector_store %arg16[%c0_105, %c0_106, %c0_107], %132 {strides = array<i32>} : memref<1x128x128xf32, #tpu.memory_space<vmem>>, vector<1x128x128xf32>,
    return
  }
  func.func @transform_0(%arg0: i32, %arg1: i32, %arg2: memref<2xi32, #tpu.memory_space<smem>>) -> (i32, i32, i32) {
    %c0_i32 = arith.constant 0 : i32
    %c0_i32_0 = arith.constant 0 : i32
    %c0_i32_1 = arith.constant 0 : i32
    return %arg0, %c0_i32, %c0_i32_0 : i32, i32, i32
  }
  func.func @transform_1(%arg0: i32, %arg1: i32, %arg2: memref<2xi32, #tpu.memory_space<smem>>) -> (i32, i32) {
    %c0_i32 = arith.constant 0 : i32
    %c0_i32_0 = arith.constant 0 : i32
    %c0_i32_1 = arith.constant 0 : i32
    return %c0_i32, %c0_i32_0 : i32, i32
  }
  func.func @transform_2(%arg0: i32, %arg1: i32, %arg2: memref<2xi32, #tpu.memory_space<smem>>) -> (i32, i32) {
    %c0_i32 = arith.constant 0 : i32
    %c0_i32_0 = arith.constant 0 : i32
    %c0_i32_1 = arith.constant 0 : i32
    return %c0_i32, %c0_i32_0 : i32, i32
  }
  func.func @transform_3(%arg0: i32, %arg1: i32, %arg2: memref<2xi32, #tpu.memory_space<smem>>) -> (i32, i32, i32) {
    %c0_i32 = arith.constant 0 : i32
    %c0_i32_0 = arith.constant 0 : i32
    %c0_i32_1 = arith.constant 0 : i32
    %c0_i32_2 = arith.constant 0 : i32
    return %c0_i32, %c0_i32_0, %c0_i32_1 : i32, i32, i32
  }
  func.func @transform_4(%arg0: i32, %arg1: i32, %arg2: memref<2xi32, #tpu.memory_space<smem>>) -> (i32, i32) {
    %c0_i32 = arith.constant 0 : i32
    %c0_i32_0 = arith.constant 0 : i32
    %c0_i32_1 = arith.constant 0 : i32
    return %c0_i32, %c0_i32_0 : i32, i32
  }
  func.func @transform_5(%arg0: i32, %arg1: i32, %arg2: memref<2xi32, #tpu.memory_space<smem>>) -> (i32, i32, i32) {
    %c0_i32 = arith.constant 0 : i32
    %c0_i32_0 = arith.constant 0 : i32
    %c0_i32_1 = arith.constant 0 : i32
    %c0_i32_2 = arith.constant 0 : i32
    return %c0_i32, %c0_i32_0, %c0_i32_1 : i32, i32, i32
  }
  func.func @transform_6(%arg0: i32, %arg1: i32, %arg2: memref<2xi32, #tpu.memory_space<smem>>) -> (i32, i32) {
    %c0_i32 = arith.constant 0 : i32
    %c0_i32_0 = arith.constant 0 : i32
    %c0_i32_1 = arith.constant 0 : i32
    return %c0_i32, %c0_i32_0 : i32, i32
  }
  func.func @transform_7(%arg0: i32, %arg1: i32, %arg2: memref<2xi32, #tpu.memory_space<smem>>) -> (i32, i32) {
    %c0_i32 = arith.constant 0 : i32
    %c0_i32_0 = arith.constant 0 : i32
    %c0_i32_1 = arith.constant 0 : i32
    return %c0_i32, %c0_i32_0 : i32, i32
  }
  func.func @transform_8(%arg0: i32, %arg1: i32, %arg2: memref<2xi32, #tpu.memory_space<smem>>) -> (i32, i32) {
    %c0_i32 = arith.constant 0 : i32
    %c0_i32_0 = arith.constant 0 : i32
    %c0_i32_1 = arith.constant 0 : i32
    return %c0_i32, %c0_i32_0 : i32, i32
  }
  func.func @transform_9(%arg0: i32, %arg1: i32, %arg2: memref<2xi32, #tpu.memory_space<smem>>) -> (i32, i32, i32) {
    %c0_i32 = arith.constant 0 : i32
    %c0_i32_0 = arith.constant 0 : i32
    %c0_i32_1 = arith.constant 0 : i32
    %c0_i32_2 = arith.constant 0 : i32
    return %c0_i32, %c0_i32_0, %c0_i32_1 : i32, i32, i32
  }
  func.func @transform_10(%arg0: i32, %arg1: i32, %arg2: memref<2xi32, #tpu.memory_space<smem>>) -> (i32, i32) {
    %c0_i32 = arith.constant 0 : i32
    %c0_i32_0 = arith.constant 0 : i32
    %c0_i32_1 = arith.constant 0 : i32
    return %c0_i32, %c0_i32_0 : i32, i32
  }
  func.func @transform_11(%arg0: i32, %arg1: i32, %arg2: memref<2xi32, #tpu.memory_space<smem>>) -> (i32, i32, i32) {
    %c0_i32 = arith.constant 0 : i32
    %c0_i32_0 = arith.constant 0 : i32
    %c0_i32_1 = arith.constant 0 : i32
    %c0_i32_2 = arith.constant 0 : i32
    return %c0_i32, %c0_i32_0, %c0_i32_1 : i32, i32, i32
  }
  func.func @transform_12(%arg0: i32, %arg1: i32, %arg2: memref<2xi32, #tpu.memory_space<smem>>) -> (i32, i32) {
    %c0_i32 = arith.constant 0 : i32
    %c0_i32_0 = arith.constant 0 : i32
    %c0_i32_1 = arith.constant 0 : i32
    return %c0_i32, %c0_i32_0 : i32, i32
  }
  func.func @transform_13(%arg0: i32, %arg1: i32, %arg2: memref<2xi32, #tpu.memory_space<smem>>) -> (i32, i32, i32) {
    %c0_i32 = arith.constant 0 : i32
    %c0_i32_0 = arith.constant 0 : i32
    return %arg0, %arg1, %c0_i32 : i32, i32, i32
  }
}

</mosaic_0001>

<llo_original>
// kernel: tpu_custom_call.1
$region0: #{tpu_custom_call.1}
  #allocation0 [shape = 'u32[]', space=smem, size = 0x4, offset = 0x4, fixed_abs, tag = 'smem constant byte address 0x4 - core index']
  #allocation1 [shape = 'u32[72,128]{1,0:T(1,128)}', space=vmem, size = 0x9000, scoped, tag = 'internal scratch']
  #allocation2 [shape = 'bf16[168,32]{1,0:T(8,128)(2,1)}', space=vmem, size = 0xa800, scoped, tag = 'scratch operand']
  #allocation3 [shape = 's32[1]{0}', space=sflag, size = 0x4, scoped, tag = 'scoped memory for tpu_custom_call.1']
  #allocation4 [shape = 'u8[512]{0}', space=smem, size = 0x200, scoped, tag = 'prefetched SMEM operand 0']
  %s0 = inlined_call_operand.vmem [shape: s32[2], index: 0, kind: input, shape index: {}]
  %s1 = inlined_call_operand.vmem [shape: f32[2,296,16], index: 1, kind: input, shape index: {}]
  %s2 = inlined_call_operand.vmem [shape: bf16[16,32], index: 2, kind: input, shape index: {}]
  %s3 = inlined_call_operand.vmem [shape: f32[1,32], index: 3, kind: input, shape index: {}]
  %s4 = inlined_call_operand.vmem [shape: bf16[3,16,32], index: 4, kind: input, shape index: {}]
  %s5 = inlined_call_operand.vmem [shape: f32[1,32], index: 5, kind: input, shape index: {}]
  %s6 = inlined_call_operand.vmem [shape: bf16[3,32,32], index: 6, kind: input, shape index: {}]
  %s7 = inlined_call_operand.vmem [shape: f32[1,32], index: 7, kind: input, shape index: {}]
  %s8 = inlined_call_operand.vmem [shape: bf16[32,128], index: 8, kind: input, shape index: {}]
  %s9 = inlined_call_operand.vmem [shape: f32[1,128], index: 9, kind: input, shape index: {}]
  %s10 = inlined_call_operand.vmem [shape: bf16[3,32,32], index: 10, kind: input, shape index: {}]
  %s11 = inlined_call_operand.vmem [shape: f32[1,32], index: 11, kind: input, shape index: {}]
  %s12 = inlined_call_operand.vmem [shape: bf16[3,32,128], index: 12, kind: input, shape index: {}]
  %s13 = inlined_call_operand.vmem [shape: f32[1,128], index: 13, kind: input, shape index: {}]
  %s14 = inlined_call_operand.hbm [shape: f32[2,256,128], index: 14, kind: output, shape index: {}]
  %s15 = sld [smem:[#allocation0]]
  $region85: #{tpu_custom_call.1} parent=0
    _
  %s17 = ssub.s32 1, %s15
  %s18 = scalar_select 0, %s17, %s15
  %s20 = sshll.u32 %s0, 4
  %s21 = int_to_ptr.vmem [resolvable:$true] %s20
  %23 = dma.vmem_to_smem %s21, 16, [#allocation4], [#allocation3]
  %25 = dma.done [#allocation3], 16
  %26 = sfence
  $region1: #{tpu_custom_call.1} parent=0
    #allocation5 [shape = 'u8[131072]{0}', space=vmem, size = 0x20000, scoped, tag = 'output window, operand 0']
    #allocation6 [shape = 's32[2]{0}', space=sflag, size = 0x8, scoped, tag = 'scoped memory for tpu_custom_call.1']
    %27 = vsyncpa [#allocation6], 0
    %s28 = scalar_lea.sflag [#allocation6], 1
    %29 = vsyncpa %s28, 0
    loop: start=0, step=1, limit=6
    $region2: #{tpu_custom_call.1} parent=1 // loop_pre_header
      _
    $region3: #{tpu_custom_call.1} parent=1 // loop_header
      %s31 = sphi 0, %s35
      %p32 = scmp.ge.s32.totalorder %s31, 6
      %s38 = sphi 0, %s50
      %s39 = sphi 0, %s46
      %s40 = sphi 0, %s38
      %s41 = sphi 0, %s39
      %s42 = sphi 0, %s40
      %s43 = sphi 0, %s41
      %s53 = sphi 0, %s55
      %s56 = sphi 0, %s53
      %s57 = sphi 0, %s56
      %s73 = sphi 0, %s57
      %s77 = sphi 0, %s77
      %s79 = sphi 0, %s77
      %s80 = sphi 0, %s79
      %s94 = sphi 0, %s80
      %s98 = sphi 0, %s98
      %s100 = sphi 0, %s98
      %s101 = sphi 0, %s100
      %s115 = sphi 0, %s101
      %s119 = sphi 0, %s119
      %s121 = sphi 0, %s119
      %s122 = sphi 0, %s121
      %s136 = sphi 0, %s122
      %s140 = sphi 0, %s140
      %s142 = sphi 0, %s140
      %s143 = sphi 0, %s142
      %s157 = sphi 0, %s143
      %s161 = sphi 0, %s161
      %s163 = sphi 0, %s161
      %s164 = sphi 0, %s163
      %s178 = sphi 0, %s164
      %s182 = sphi 0, %s182
      %s184 = sphi 0, %s182
      %s185 = sphi 0, %s184
      %s199 = sphi 0, %s185
      %s203 = sphi 0, %s203
      %s205 = sphi 0, %s203
      %s206 = sphi 0, %s205
      %s220 = sphi 0, %s206
      %s224 = sphi 0, %s224
      %s226 = sphi 0, %s224
      %s227 = sphi 0, %s226
      %s241 = sphi 0, %s227
      %s245 = sphi 0, %s245
      %s247 = sphi 0, %s245
      %s248 = sphi 0, %s247
      %s262 = sphi 0, %s248
      %s266 = sphi 0, %s266
      %s268 = sphi 0, %s266
      %s269 = sphi 0, %s268
      %s283 = sphi 0, %s269
      %s287 = sphi 0, %s287
      %s289 = sphi 0, %s287
      %s290 = sphi 0, %s289
      %s304 = sphi 0, %s290
      %s308 = sphi 0, %s308
      %s310 = sphi 0, %s308
      %s311 = sphi 0, %s310
      %s325 = sphi 0, %s311
      %s333 = sphi 0, %s335
      %s336 = sphi 0, %s333
      %s337 = sphi 0, %s336
      %s353 = sphi 0, %s337
    $region4: #{tpu_custom_call.1} parent=1 // loop_header_branch
      %34 = sbr.rel (%p32) target = $region8
    $region5: #{tpu_custom_call.1} parent=1 // loop_body
      %s36 = ssub.s32 %s31, 1
      %s37 = ssub.s32 %s31, 2
      %s44 = sadd.s32 1, %s39
      %p45 = scmp.ge.s32.totalorder %s44, 2
      %s46 = scalar_select %p45, 0, %s44
      %s47 = sadd.s32 1, %s38
      %s48 = scalar_select %p45, %s47, %s38
      %p49 = scmp.ge.s32.totalorder %s48, 2
      %s50 = scalar_select %p49, 0, %s48
      %s51 = ssub.s32 %s38, %s50
      %p52 = scmp.eq.s32.totalorder %s51, 0
      %s54 = sadd.s32 %s53, 1
      %s55 = scalar_select %p52, %s53, %s54
      %p58 = pneg %p52
      %p59 = scmp.eq.s32.totalorder %s31, 3
      %p60 = por %p58, %p59
      %p61 = scmp.ne.s32.totalorder %s53, %s56
      %p62 = scmp.eq.s32.totalorder %s31, 0
      %p63 = por %p61, %p62
      %p64 = scmp.ne.s32.totalorder %s53, %s56
      %p65 = scmp.eq.s32.totalorder %s36, 3
      %p66 = por %p64, %p65
      %p67 = scmp.ne.s32.totalorder %s56, %s57
      %p68 = scmp.eq.s32.totalorder %s36, 0
      %p69 = por %p67, %p68
      %p70 = scmp.ne.s32.totalorder %s56, %s57
      %p71 = scmp.eq.s32.totalorder %s37, 3
      %p72 = por %p70, %p71
      %p74 = scmp.ne.s32.totalorder %s57, %s73
      %p75 = scmp.eq.s32.totalorder %s37, 0
      %p76 = por %p74, %p75
      %s78 = sadd.s32 %s77, 1
      %p81 = scmp.eq.s32.totalorder %s31, 3
      %p82 = scmp.ne.s32.totalorder %s77, %s79
      %p83 = scmp.eq.s32.totalorder %s31, 0
      %p84 = por %p82, %p83
      %p85 = scmp.ne.s32.totalorder %s77, %s79
      %p86 = scmp.eq.s32.totalorder %s36, 3
      %p87 = por %p85, %p86
      %p88 = scmp.ne.s32.totalorder %s79, %s80
      %p89 = scmp.eq.s32.totalorder %s36, 0
      %p90 = por %p88, %p89
      %p91 = scmp.ne.s32.totalorder %s79, %s80
      %p92 = scmp.eq.s32.totalorder %s37, 3
      %p93 = por %p91, %p92
      %p95 = scmp.ne.s32.totalorder %s80, %s94
      %p96 = scmp.eq.s32.totalorder %s37, 0
      %p97 = por %p95, %p96
      %s99 = sadd.s32 %s98, 1
      %p102 = scmp.eq.s32.totalorder %s31, 3
      %p103 = scmp.ne.s32.totalorder %s98, %s100
      %p104 = scmp.eq.s32.totalorder %s31, 0
      %p105 = por %p103, %p104
      %p106 = scmp.ne.s32.totalorder %s98, %s100
      %p107 = scmp.eq.s32.totalorder %s36, 3
      %p108 = por %p106, %p107
      %p109 = scmp.ne.s32.totalorder %s100, %s101
      %p110 = scmp.eq.s32.totalorder %s36, 0
      %p111 = por %p109, %p110
      %p112 = scmp.ne.s32.totalorder %s100, %s101
      %p113 = scmp.eq.s32.totalorder %s37, 3
      %p114 = por %p112, %p113
      %p116 = scmp.ne.s32.totalorder %s101, %s115
      %p117 = scmp.eq.s32.totalorder %s37, 0
      %p118 = por %p116, %p117
      %s120 = sadd.s32 %s119, 1
      %p123 = scmp.eq.s32.totalorder %s31, 3
      %p124 = scmp.ne.s32.totalorder %s119, %s121
      %p125 = scmp.eq.s32.totalorder %s31, 0
      %p126 = por %p124, %p125
      %p127 = scmp.ne.s32.totalorder %s119, %s121
      %p128 = scmp.eq.s32.totalorder %s36, 3
      %p129 = por %p127, %p128
      %p130 = scmp.ne.s32.totalorder %s121, %s122
      %p131 = scmp.eq.s32.totalorder %s36, 0
      %p132 = por %p130, %p131
      %p133 = scmp.ne.s32.totalorder %s121, %s122
      %p134 = scmp.eq.s32.totalorder %s37, 3
      %p135 = por %p133, %p134
      %p137 = scmp.ne.s32.totalorder %s122, %s136
      %p138 = scmp.eq.s32.totalorder %s37, 0
      %p139 = por %p137, %p138
      %s141 = sadd.s32 %s140, 1
      %p144 = scmp.eq.s32.totalorder %s31, 3
      %p145 = scmp.ne.s32.totalorder %s140, %s142
      %p146 = scmp.eq.s32.totalorder %s31, 0
      %p147 = por %p145, %p146
      %p148 = scmp.ne.s32.totalorder %s140, %s142
      %p149 = scmp.eq.s32.totalorder %s36, 3
      %p150 = por %p148, %p149
      %p151 = scmp.ne.s32.totalorder %s142, %s143
      %p152 = scmp.eq.s32.totalorder %s36, 0
      %p153 = por %p151, %p152
      %p154 = scmp.ne.s32.totalorder %s142, %s143
      %p155 = scmp.eq.s32.totalorder %s37, 3
      %p156 = por %p154, %p155
      %p158 = scmp.ne.s32.totalorder %s143, %s157
      %p159 = scmp.eq.s32.totalorder %s37, 0
      %p160 = por %p158, %p159
      %s162 = sadd.s32 %s161, 1
      %p165 = scmp.eq.s32.totalorder %s31, 3
      %p166 = scmp.ne.s32.totalorder %s161, %s163
      %p167 = scmp.eq.s32.totalorder %s31, 0
      %p168 = por %p166, %p167
      %p169 = scmp.ne.s32.totalorder %s161, %s163
      %p170 = scmp.eq.s32.totalorder %s36, 3
      %p171 = por %p169, %p170
      %p172 = scmp.ne.s32.totalorder %s163, %s164
      %p173 = scmp.eq.s32.totalorder %s36, 0
      %p174 = por %p172, %p173
      %p175 = scmp.ne.s32.totalorder %s163, %s164
      %p176 = scmp.eq.s32.totalorder %s37, 3
      %p177 = por %p175, %p176
      %p179 = scmp.ne.s32.totalorder %s164, %s178
      %p180 = scmp.eq.s32.totalorder %s37, 0
      %p181 = por %p179, %p180
      %s183 = sadd.s32 %s182, 1
      %p186 = scmp.eq.s32.totalorder %s31, 3
      %p187 = scmp.ne.s32.totalorder %s182, %s184
      %p188 = scmp.eq.s32.totalorder %s31, 0
      %p189 = por %p187, %p188
      %p190 = scmp.ne.s32.totalorder %s182, %s184
      %p191 = scmp.eq.s32.totalorder %s36, 3
      %p192 = por %p190, %p191
      %p193 = scmp.ne.s32.totalorder %s184, %s185
      %p194 = scmp.eq.s32.totalorder %s36, 0
      %p195 = por %p193, %p194
      %p196 = scmp.ne.s32.totalorder %s184, %s185
      %p197 = scmp.eq.s32.totalorder %s37, 3
      %p198 = por %p196, %p197
      %p200 = scmp.ne.s32.totalorder %s185, %s199
      %p201 = scmp.eq.s32.totalorder %s37, 0
      %p202 = por %p200, %p201
      %s204 = sadd.s32 %s203, 1
      %p207 = scmp.eq.s32.totalorder %s31, 3
      %p208 = scmp.ne.s32.totalorder %s203, %s205
      %p209 = scmp.eq.s32.totalorder %s31, 0
      %p210 = por %p208, %p209
      %p211 = scmp.ne.s32.totalorder %s203, %s205
      %p212 = scmp.eq.s32.totalorder %s36, 3
      %p213 = por %p211, %p212
      %p214 = scmp.ne.s32.totalorder %s205, %s206
      %p215 = scmp.eq.s32.totalorder %s36, 0
      %p216 = por %p214, %p215
      %p217 = scmp.ne.s32.totalorder %s205, %s206
      %p218 = scmp.eq.s32.totalorder %s37, 3
      %p219 = por %p217, %p218
      %p221 = scmp.ne.s32.totalorder %s206, %s220
      %p222 = scmp.eq.s32.totalorder %s37, 0
      %p223 = por %p221, %p222
      %s225 = sadd.s32 %s224, 1
      %p228 = scmp.eq.s32.totalorder %s31, 3
      %p229 = scmp.ne.s32.totalorder %s224, %s226
      %p230 = scmp.eq.s32.totalorder %s31, 0
      %p231 = por %p229, %p230
      %p232 = scmp.ne.s32.totalorder %s224, %s226
      %p233 = scmp.eq.s32.totalorder %s36, 3
      %p234 = por %p232, %p233
      %p235 = scmp.ne.s32.totalorder %s226, %s227
      %p236 = scmp.eq.s32.totalorder %s36, 0
      %p237 = por %p235, %p236
      %p238 = scmp.ne.s32.totalorder %s226, %s227
      %p239 = scmp.eq.s32.totalorder %s37, 3
      %p240 = por %p238, %p239
      %p242 = scmp.ne.s32.totalorder %s227, %s241
      %p243 = scmp.eq.s32.totalorder %s37, 0
      %p244 = por %p242, %p243
      %s246 = sadd.s32 %s245, 1
      %p249 = scmp.eq.s32.totalorder %s31, 3
      %p250 = scmp.ne.s32.totalorder %s245, %s247
      %p251 = scmp.eq.s32.totalorder %s31, 0
      %p252 = por %p250, %p251
      %p253 = scmp.ne.s32.totalorder %s245, %s247
      %p254 = scmp.eq.s32.totalorder %s36, 3
      %p255 = por %p253, %p254
      %p256 = scmp.ne.s32.totalorder %s247, %s248
      %p257 = scmp.eq.s32.totalorder %s36, 0
      %p258 = por %p256, %p257
      %p259 = scmp.ne.s32.totalorder %s247, %s248
      %p260 = scmp.eq.s32.totalorder %s37, 3
      %p261 = por %p259, %p260
      %p263 = scmp.ne.s32.totalorder %s248, %s262
      %p264 = scmp.eq.s32.totalorder %s37, 0
      %p265 = por %p263, %p264
      %s267 = sadd.s32 %s266, 1
      %p270 = scmp.eq.s32.totalorder %s31, 3
      %p271 = scmp.ne.s32.totalorder %s266, %s268
      %p272 = scmp.eq.s32.totalorder %s31, 0
      %p273 = por %p271, %p272
      %p274 = scmp.ne.s32.totalorder %s266, %s268
      %p275 = scmp.eq.s32.totalorder %s36, 3
      %p276 = por %p274, %p275
      %p277 = scmp.ne.s32.totalorder %s268, %s269
      %p278 = scmp.eq.s32.totalorder %s36, 0
      %p279 = por %p277, %p278
      %p280 = scmp.ne.s32.totalorder %s268, %s269
      %p281 = scmp.eq.s32.totalorder %s37, 3
      %p282 = por %p280, %p281
      %p284 = scmp.ne.s32.totalorder %s269, %s283
      %p285 = scmp.eq.s32.totalorder %s37, 0
      %p286 = por %p284, %p285
      %s288 = sadd.s32 %s287, 1
      %p291 = scmp.eq.s32.totalorder %s31, 3
      %p292 = scmp.ne.s32.totalorder %s287, %s289
      %p293 = scmp.eq.s32.totalorder %s31, 0
      %p294 = por %p292, %p293
      %p295 = scmp.ne.s32.totalorder %s287, %s289
      %p296 = scmp.eq.s32.totalorder %s36, 3
      %p297 = por %p295, %p296
      %p298 = scmp.ne.s32.totalorder %s289, %s290
      %p299 = scmp.eq.s32.totalorder %s36, 0
      %p300 = por %p298, %p299
      %p301 = scmp.ne.s32.totalorder %s289, %s290
      %p302 = scmp.eq.s32.totalorder %s37, 3
      %p303 = por %p301, %p302
      %p305 = scmp.ne.s32.totalorder %s290, %s304
      %p306 = scmp.eq.s32.totalorder %s37, 0
      %p307 = por %p305, %p306
      %s309 = sadd.s32 %s308, 1
      %p312 = scmp.eq.s32.totalorder %s31, 3
      %p313 = scmp.ne.s32.totalorder %s308, %s310
      %p314 = scmp.eq.s32.totalorder %s31, 0
      %p315 = por %p313, %p314
      %p316 = scmp.ne.s32.totalorder %s308, %s310
      %p317 = scmp.eq.s32.totalorder %s36, 3
      %p318 = por %p316, %p317
      %p319 = scmp.ne.s32.totalorder %s310, %s311
      %p320 = scmp.eq.s32.totalorder %s36, 0
      %p321 = por %p319, %p320
      %p322 = scmp.ne.s32.totalorder %s310, %s311
      %p323 = scmp.eq.s32.totalorder %s37, 3
      %p324 = por %p322, %p323
      %p326 = scmp.ne.s32.totalorder %s311, %s325
      %p327 = scmp.eq.s32.totalorder %s37, 0
      %p328 = por %p326, %p327
      %s329 = ssub.s32 %s38, %s50
      %s330 = ssub.s32 %s39, %s46
      %s331 = sor.u32 %s329, %s330
      %p332 = scmp.eq.s32.totalorder %s331, 0
      %s334 = sadd.s32 %s333, 1
      %s335 = scalar_select %p332, %s333, %s334
      %p338 = pneg %p332
      %p339 = scmp.eq.s32.totalorder %s31, 3
      %p340 = por %p338, %p339
      %p341 = scmp.ne.s32.totalorder %s333, %s336
      %p342 = scmp.eq.s32.totalorder %s31, 0
      %p343 = por %p341, %p342
      %p344 = scmp.ne.s32.totalorder %s333, %s336
      %p345 = scmp.eq.s32.totalorder %s36, 3
      %p346 = por %p344, %p345
      %p347 = scmp.ne.s32.totalorder %s336, %s337
      %p348 = scmp.eq.s32.totalorder %s36, 0
      %p349 = por %p347, %p348
      %p350 = scmp.ne.s32.totalorder %s336, %s337
      %p351 = scmp.eq.s32.totalorder %s37, 3
      %p352 = por %p350, %p351
      %p354 = scmp.ne.s32.totalorder %s337, %s353
      %p355 = scmp.eq.s32.totalorder %s37, 0
      %p356 = por %p354, %p355
      %p357 = scmp.le.s32.totalorder 1, %s31
      %p358 = scmp.lt.s32.totalorder %s31, 5
      %p359 = pnand %p357, %p358
      %p360 = pneg %p359
      // Predicated region
      $region9: #{tpu_custom_call.1} parent=5 // pred_check
        _
      $region10: #{tpu_custom_call.1} parent=5 // pred_check_branch
        %362 = sbr.rel (%p359) target = $region12
      $region11: #{tpu_custom_call.1} parent=5 // pred_region
        %s363 = ssub.s32 %s31, 1
        // Predicated region
        $region13: #{tpu_custom_call.1} parent=11 // pred_check
          %p364 = pneg %p90
        $region14: #{tpu_custom_call.1} parent=11 // pred_check_branch
          %366 = sbr.rel (%p364) target = $region16
        $region15: #{tpu_custom_call.1} parent=11 // pred_region
          _
        $region16: #{tpu_custom_call.1} parent=11 // pred_fallthru
          _
        // Predicated region
        $region17: #{tpu_custom_call.1} parent=11 // pred_check
          %p367 = pneg %p111
        $region18: #{tpu_custom_call.1} parent=11 // pred_check_branch
          %369 = sbr.rel (%p367) target = $region20
        $region19: #{tpu_custom_call.1} parent=11 // pred_region
          _
        $region20: #{tpu_custom_call.1} parent=11 // pred_fallthru
          _
        // Predicated region
        $region21: #{tpu_custom_call.1} parent=11 // pred_check
          %p370 = pneg %p132
        $region22: #{tpu_custom_call.1} parent=11 // pred_check_branch
          %372 = sbr.rel (%p370) target = $region24
        $region23: #{tpu_custom_call.1} parent=11 // pred_region
          _
        $region24: #{tpu_custom_call.1} parent=11 // pred_fallthru
          _
        // Predicated region
        $region25: #{tpu_custom_call.1} parent=11 // pred_check
          %p373 = pneg %p153
        $region26: #{tpu_custom_call.1} parent=11 // pred_check_branch
          %375 = sbr.rel (%p373) target = $region28
        $region27: #{tpu_custom_call.1} parent=11 // pred_region
          _
        $region28: #{tpu_custom_call.1} parent=11 // pred_fallthru
          _
        // Predicated region
        $region29: #{tpu_custom_call.1} parent=11 // pred_check
          %p376 = pneg %p174
        $region30: #{tpu_custom_call.1} parent=11 // pred_check_branch
          %378 = sbr.rel (%p376) target = $region32
        $region31: #{tpu_custom_call.1} parent=11 // pred_region
          _
        $region32: #{tpu_custom_call.1} parent=11 // pred_fallthru
          _
        // Predicated region
        $region33: #{tpu_custom_call.1} parent=11 // pred_check
          %p379 = pneg %p195
        $region34: #{tpu_custom_call.1} parent=11 // pred_check_branch
          %381 = sbr.rel (%p379) target = $region36
        $region35: #{tpu_custom_call.1} parent=11 // pred_region
          _
        $region36: #{tpu_custom_call.1} parent=11 // pred_fallthru
          _
        // Predicated region
        $region37: #{tpu_custom_call.1} parent=11 // pred_check
          %p382 = pneg %p216
        $region38: #{tpu_custom_call.1} parent=11 // pred_check_branch
          %384 = sbr.rel (%p382) target = $region40
        $region39: #{tpu_custom_call.1} parent=11 // pred_region
          _
        $region40: #{tpu_custom_call.1} parent=11 // pred_fallthru
          _
        // Predicated region
        $region41: #{tpu_custom_call.1} parent=11 // pred_check
          %p385 = pneg %p237
        $region42: #{tpu_custom_call.1} parent=11 // pred_check_branch
          %387 = sbr.rel (%p385) target = $region44
        $region43: #{tpu_custom_call.1} parent=11 // pred_region
          _
        $region44: #{tpu_custom_call.1} parent=11 // pred_fallthru
          _
        // Predicated region
        $region45: #{tpu_custom_call.1} parent=11 // pred_check
          %p388 = pneg %p258
        $region46: #{tpu_custom_call.1} parent=11 // pred_check_branch
          %390 = sbr.rel (%p388) target = $region48
        $region47: #{tpu_custom_call.1} parent=11 // pred_region
          _
        $region48: #{tpu_custom_call.1} parent=11 // pred_fallthru
          _
        // Predicated region
        $region49: #{tpu_custom_call.1} parent=11 // pred_check
          %p391 = pneg %p279
        $region50: #{tpu_custom_call.1} parent=11 // pred_check_branch
          %393 = sbr.rel (%p391) target = $region52
        $region51: #{tpu_custom_call.1} parent=11 // pred_region
          _
        $region52: #{tpu_custom_call.1} parent=11 // pred_fallthru
          _
        // Predicated region
        $region53: #{tpu_custom_call.1} parent=11 // pred_check
          %p394 = pneg %p300
        $region54: #{tpu_custom_call.1} parent=11 // pred_check_branch
          %396 = sbr.rel (%p394) target = $region56
        $region55: #{tpu_custom_call.1} parent=11 // pred_region
          _
        $region56: #{tpu_custom_call.1} parent=11 // pred_fallthru
          _
        // Predicated region
        $region57: #{tpu_custom_call.1} parent=11 // pred_check
          %p397 = pneg %p321
        $region58: #{tpu_custom_call.1} parent=11 // pred_check_branch
          %399 = sbr.rel (%p397) target = $region60
        $region59: #{tpu_custom_call.1} parent=11 // pred_region
          _
        $region60: #{tpu_custom_call.1} parent=11 // pred_fallthru
          _
      $region12: #{tpu_custom_call.1} parent=5 // pred_fallthru
        _
      %p400 = scmp.lt.s32.totalorder %s31, 4
      // Predicated region
      $region61: #{tpu_custom_call.1} parent=5 // pred_check
        %p401 = pneg %p400
      $region62: #{tpu_custom_call.1} parent=5 // pred_check_branch
        %403 = sbr.rel (%p401) target = $region64
      $region63: #{tpu_custom_call.1} parent=5 // pred_region
        // Predicated region
        $region65: #{tpu_custom_call.1} parent=63 // pred_check
          %p404 = pneg %p63
        $region66: #{tpu_custom_call.1} parent=63 // pred_check_branch
          %406 = sbr.rel (%p404) target = $region68
        $region67: #{tpu_custom_call.1} parent=63 // pred_region
          %p407 = scmp.lt.s32.totalorder %s38, 1
          %s408 = scalar_select %p407, %s38, 1
          %s409 = smul.addr %s408, 37
          %s410 = smul.addr %s409, 8
          %s411 = scalar_lea.vmem %s1, %s410
        $region68: #{tpu_custom_call.1} parent=63 // pred_fallthru
          _
      $region64: #{tpu_custom_call.1} parent=5 // pred_fallthru
        _
      %p412 = scmp.le.s32.totalorder 1, %s31
      %p413 = scmp.lt.s32.totalorder %s31, 5
      %p414 = pnand %p412, %p413
      %p415 = pneg %p414
      // Predicated region
      $region69: #{tpu_custom_call.1} parent=5 // pred_check
        _
      $region70: #{tpu_custom_call.1} parent=5 // pred_check_branch
        %417 = sbr.rel (%p414) target = $region72
      $region71: #{tpu_custom_call.1} parent=5 // pred_region
        %s418 = ssub.s32 %s31, 1
        %p419 = scmp.lt.s32.totalorder %s40, 1
        %s420 = scalar_select %p419, %s40, 1
        %s421 = smul.addr %s420, 37
        %s422 = smul.addr %s421, 8
        %s423 = scalar_lea.vmem %s1, %s422
        %p424 = pneg %p69
        %p425 = pneg %p66
        %p426 = pneg %p90
        %p427 = pneg %p87
        %p428 = pneg %p111
        %p429 = pneg %p108
        %p430 = pneg %p132
        %p431 = pneg %p129
        %p432 = pneg %p153
        %p433 = pneg %p150
        %p434 = pneg %p174
        %p435 = pneg %p171
        %p436 = pneg %p195
        %p437 = pneg %p192
        %p438 = pneg %p216
        %p439 = pneg %p213
        %p440 = pneg %p237
        %p441 = pneg %p234
        %p442 = pneg %p258
        %p443 = pneg %p255
        %p444 = pneg %p279
        %p445 = pneg %p276
        %p446 = pneg %p300
        %p447 = pneg %p297
        %p448 = pneg %p321
        %p449 = pneg %p318
        %p450 = pneg %p349
        %p451 = pneg %p346
        %s452 = sand.u32 %s336, 1
        %s453 = scalar_lea.sflag [#allocation6], %s452
        %s454 = sand.u32 %s336, 1
        %s455 = smul.addr %s454, 128
        %s456 = scalar_lea.vmem [#allocation5], %s455
        %p457 = scmp.lt.s32.totalorder %s40, 1
        %s458 = scalar_select %p457, %s40, 1
        %s459 = smul.addr %s458, 37
        %s460 = smul.addr %s459, 8
        %s461 = scalar_lea.vmem %s1, %s460
        %s462 = smul.u32 16, %s41
        %s464 = sld [smem:[#allocation4 + %s40]]
        %s465 = smul.u32 %s41, 128
        %vm466 = vcmask 257024
        %467 = vst.msk [vmem:[#allocation2] sm:$0xf] %vm466, 0
        %468 = vst.msk [vmem:[#allocation2 + $0x4] sm:$0xf] %vm466, 0
        %469 = vst.msk [vmem:[#allocation2 + $0x4c] sm:$0xf] %vm466, 0
        %470 = vst.msk [vmem:[#allocation2 + $0x50] sm:$0xf] %vm466, 0
        %v471 = vlaneseq
        %v472 = vshrl.u32 %v471, 7
        %v473 = vadd.s32 %v472, 8
        %v474 = vadd.s32 %v472, 16
        %v475 = vadd.s32 %v472, 24
        %v476 = vadd.s32 %v472, 32
        %v477 = vadd.s32 %v472, 40
        %v478 = vadd.s32 %v472, 48
        %v479 = vadd.s32 %v472, 56
        %v480 = vadd.s32 %v472, 64
        %v481 = vadd.s32 %v472, 72
        %v482 = vadd.s32 %v472, 80
        %v483 = vadd.s32 %v472, 88
        %v484 = vadd.s32 %v472, 96
        %v485 = vadd.s32 %v472, 104
        %v486 = vadd.s32 %v472, 112
        %v487 = vadd.s32 %v472, 120
        %v488 = vadd.s32 %v472, 128
        %v489 = vadd.s32 %v472, 136
        %v490 = vadd.s32 %v472, 144
        %v491 = vadd.s32 %v472, 152
        %v492 = vadd.s32 %v472, 160
        %s493 = ssub.s32 %s465, 20
        %v494 = vstv %s493
        %v495 = vadd.s32 %v472, %v494
        %v496 = vadd.s32 %v473, %v494
        %v497 = vadd.s32 %v474, %v494
        %v498 = vadd.s32 %v475, %v494
        %v499 = vadd.s32 %v476, %v494
        %v500 = vadd.s32 %v477, %v494
        %v501 = vadd.s32 %v478, %v494
        %v502 = vadd.s32 %v479, %v494
        %v503 = vadd.s32 %v480, %v494
        %v504 = vadd.s32 %v481, %v494
        %v505 = vadd.s32 %v482, %v494
        %v506 = vadd.s32 %v483, %v494
        %v507 = vadd.s32 %v484, %v494
        %v508 = vadd.s32 %v485, %v494
        %v509 = vadd.s32 %v486, %v494
        %v510 = vadd.s32 %v487, %v494
        %v511 = vadd.s32 %v488, %v494
        %v512 = vadd.s32 %v489, %v494
        %v513 = vadd.s32 %v490, %v494
        %v514 = vadd.s32 %v491, %v494
        %v515 = vadd.s32 %v492, %v494
        %vm516 = vcmp.ge.s32.totalorder %v495, 0
        %vm517 = vcmp.ge.s32.totalorder %v496, 0
        %vm518 = vcmp.ge.s32.totalorder %v497, 0
        %vm519 = vcmp.ge.s32.totalorder %v498, 0
        %vm520 = vcmp.ge.s32.totalorder %v499, 0
        %vm521 = vcmp.ge.s32.totalorder %v500, 0
        %vm522 = vcmp.ge.s32.totalorder %v501, 0
        %vm523 = vcmp.ge.s32.totalorder %v502, 0
        %vm524 = vcmp.ge.s32.totalorder %v503, 0
        %vm525 = vcmp.ge.s32.totalorder %v504, 0
        %vm526 = vcmp.ge.s32.totalorder %v505, 0
        %vm527 = vcmp.ge.s32.totalorder %v506, 0
        %vm528 = vcmp.ge.s32.totalorder %v507, 0
        %vm529 = vcmp.ge.s32.totalorder %v508, 0
        %vm530 = vcmp.ge.s32.totalorder %v509, 0
        %vm531 = vcmp.ge.s32.totalorder %v510, 0
        %vm532 = vcmp.ge.s32.totalorder %v511, 0
        %vm533 = vcmp.ge.s32.totalorder %v512, 0
        %vm534 = vcmp.ge.s32.totalorder %v513, 0
        %vm535 = vcmp.ge.s32.totalorder %v514, 0
        %vm536 = vcmp.ge.s32.totalorder %v515, 0
        %v537 = vstv %s464
        %vm538 = vcmp.lt.s32.totalorder %v495, %v537
        %vm539 = vcmp.lt.s32.totalorder %v496, %v537
        %vm540 = vcmp.lt.s32.totalorder %v497, %v537
        %vm541 = vcmp.lt.s32.totalorder %v498, %v537
        %vm542 = vcmp.lt.s32.totalorder %v499, %v537
        %vm543 = vcmp.lt.s32.totalorder %v500, %v537
        %vm544 = vcmp.lt.s32.totalorder %v501, %v537
        %vm545 = vcmp.lt.s32.totalorder %v502, %v537
        %vm546 = vcmp.lt.s32.totalorder %v503, %v537
        %vm547 = vcmp.lt.s32.totalorder %v504, %v537
        %vm548 = vcmp.lt.s32.totalorder %v505, %v537
        %vm549 = vcmp.lt.s32.totalorder %v506, %v537
        %vm550 = vcmp.lt.s32.totalorder %v507, %v537
        %vm551 = vcmp.lt.s32.totalorder %v508, %v537
        %vm552 = vcmp.lt.s32.totalorder %v509, %v537
        %vm553 = vcmp.lt.s32.totalorder %v510, %v537
        %vm554 = vcmp.lt.s32.totalorder %v511, %v537
        %vm555 = vcmp.lt.s32.totalorder %v512, %v537
        %vm556 = vcmp.lt.s32.totalorder %v513, %v537
        %vm557 = vcmp.lt.s32.totalorder %v514, %v537
        %vm558 = vcmp.lt.s32.totalorder %v515, %v537
        %vm559 = vmand %vm516, %vm538
        %vm560 = vmand %vm517, %vm539
        %vm561 = vmand %vm518, %vm540
        %vm562 = vmand %vm519, %vm541
        %vm563 = vmand %vm520, %vm542
        %vm564 = vmand %vm521, %vm543
        %vm565 = vmand %vm522, %vm544
        %vm566 = vmand %vm523, %vm545
        %vm567 = vmand %vm524, %vm546
        %vm568 = vmand %vm525, %vm547
        %vm569 = vmand %vm526, %vm548
        %vm570 = vmand %vm527, %vm549
        %vm571 = vmand %vm528, %vm550
        %vm572 = vmand %vm529, %vm551
        %vm573 = vmand %vm530, %vm552
        %vm574 = vmand %vm531, %vm553
        %vm575 = vmand %vm532, %vm554
        %vm576 = vmand %vm533, %vm555
        %vm577 = vmand %vm534, %vm556
        %vm578 = vmand %vm535, %vm557
        %vm579 = vmand %vm536, %vm558
        %v580 = vsel %vm559, 1, 0
        %v581 = vsel %vm560, 1, 0
        %v582 = vsel %vm561, 1, 0
        %v583 = vsel %vm562, 1, 0
        %v584 = vsel %vm563, 1, 0
        %v585 = vsel %vm564, 1, 0
        %v586 = vsel %vm565, 1, 0
        %v587 = vsel %vm566, 1, 0
        %v588 = vsel %vm567, 1, 0
        %v589 = vsel %vm568, 1, 0
        %v590 = vsel %vm569, 1, 0
        %v591 = vsel %vm570, 1, 0
        %v592 = vsel %vm571, 1, 0
        %v593 = vsel %vm572, 1, 0
        %v594 = vsel %vm573, 1, 0
        %v595 = vsel %vm574, 1, 0
        %v596 = vsel %vm575, 1, 0
        %v597 = vsel %vm576, 1, 0
        %v598 = vsel %vm577, 1, 0
        %v599 = vsel %vm578, 1, 0
        %v600 = vsel %vm579, 1, 0
        %v601 = vcvt.s32.f32 %v580
        %v602 = vcvt.s32.f32 %v581
        %v603 = vcvt.s32.f32 %v582
        %v604 = vcvt.s32.f32 %v583
        %v605 = vcvt.s32.f32 %v584
        %v606 = vcvt.s32.f32 %v585
        %v607 = vcvt.s32.f32 %v586
        %v608 = vcvt.s32.f32 %v587
        %v609 = vcvt.s32.f32 %v588
        %v610 = vcvt.s32.f32 %v589
        %v611 = vcvt.s32.f32 %v590
        %v612 = vcvt.s32.f32 %v591
        %v613 = vcvt.s32.f32 %v592
        %v614 = vcvt.s32.f32 %v593
        %v615 = vcvt.s32.f32 %v594
        %v616 = vcvt.s32.f32 %v595
        %v617 = vcvt.s32.f32 %v596
        %v618 = vcvt.s32.f32 %v597
        %v619 = vcvt.s32.f32 %v598
        %v620 = vcvt.s32.f32 %v599
        %v621 = vcvt.s32.f32 %v600
        %s622 = scalar_lea.vmem %s461, %s465
        %v623 = vld [vmem:[%s622] sm:$0xff]
        %v624 = vld [vmem:[%s622 + $0x8] sm:$0xff]
        %v625 = vld [vmem:[%s622 + $0x10] sm:$0xff]
        %v626 = vld [vmem:[%s622 + $0x18] sm:$0xff]
        %v627 = vld [vmem:[%s622 + $0x20] sm:$0xff]
        %v628 = vld [vmem:[%s622 + $0x28] sm:$0xff]
        %v629 = vld [vmem:[%s622 + $0x30] sm:$0xff]
        %v630 = vld [vmem:[%s622 + $0x38] sm:$0xff]
        %v631 = vld [vmem:[%s622 + $0x40] sm:$0xff]
        %v632 = vld [vmem:[%s622 + $0x48] sm:$0xff]
        %v633 = vld [vmem:[%s622 + $0x50] sm:$0xff]
        %v634 = vld [vmem:[%s622 + $0x58] sm:$0xff]
        %v635 = vld [vmem:[%s622 + $0x60] sm:$0xff]
        %v636 = vld [vmem:[%s622 + $0x68] sm:$0xff]
        %v637 = vld [vmem:[%s622 + $0x70] sm:$0xff]
        %v638 = vld [vmem:[%s622 + $0x78] sm:$0xff]
        %v639 = vld [vmem:[%s622 + $0x80] sm:$0xff]
        %v640 = vld [vmem:[%s622 + $0x88] sm:$0xff]
        %v641 = vld [vmem:[%s622 + $0x90] sm:$0xff]
        %v642 = vld [vmem:[%s622 + $0x98] sm:$0xff]
        %v643 = vld [vmem:[%s622 + $0xa0] sm:$0xff]
        %v644 = vmul.f32 %v623, %v601
        %v645 = vmul.f32 %v624, %v602
        %v646 = vmul.f32 %v625, %v603
        %v647 = vmul.f32 %v626, %v604
        %v648 = vmul.f32 %v627, %v605
        %v649 = vmul.f32 %v628, %v606
        %v650 = vmul.f32 %v629, %v607
        %v651 = vmul.f32 %v630, %v608
        %v652 = vmul.f32 %v631, %v609
        %v653 = vmul.f32 %v632, %v610
        %v654 = vmul.f32 %v633, %v611
        %v655 = vmul.f32 %v634, %v612
        %v656 = vmul.f32 %v635, %v613
        %v657 = vmul.f32 %v636, %v614
        %v658 = vmul.f32 %v637, %v615
        %v659 = vmul.f32 %v638, %v616
        %v660 = vmul.f32 %v639, %v617
        %v661 = vmul.f32 %v640, %v618
        %v662 = vmul.f32 %v641, %v619
        %v663 = vmul.f32 %v642, %v620
        %v664 = vmul.f32 %v643, %v621
        %v665 = vpack.c.bf16 %v644, %v644
        %v666 = vpack.c.bf16 %v645, %v645
        %v667 = vpack.c.bf16 %v646, %v646
        %v668 = vpack.c.bf16 %v647, %v647
        %v669 = vpack.c.bf16 %v648, %v648
        %v670 = vpack.c.bf16 %v649, %v649
        %v671 = vpack.c.bf16 %v650, %v650
        %v672 = vpack.c.bf16 %v651, %v651
        %v673 = vpack.c.bf16 %v652, %v652
        %v674 = vpack.c.bf16 %v653, %v653
        %v675 = vpack.c.bf16 %v654, %v654
        %v676 = vpack.c.bf16 %v655, %v655
        %v677 = vpack.c.bf16 %v656, %v656
        %v678 = vpack.c.bf16 %v657, %v657
        %v679 = vpack.c.bf16 %v658, %v658
        %v680 = vpack.c.bf16 %v659, %v659
        %v681 = vpack.c.bf16 %v660, %v660
        %v682 = vpack.c.bf16 %v661, %v661
        %v683 = vpack.c.bf16 %v662, %v662
        %v684 = vpack.c.bf16 %v663, %v663
        %v685 = vpack.c.bf16 %v664, %v664
        %vm686 = vcmask 125952
        %687 = vst.msk [vmem:[#allocation2] sm:$0xf] %vm686, %v665
        %688 = vst.msk [vmem:[#allocation2 + $0x4] sm:$0xf] %vm686, %v666
        %689 = vst.msk [vmem:[#allocation2 + $0x8] sm:$0xf] %vm686, %v667
        %690 = vst.msk [vmem:[#allocation2 + $0xc] sm:$0xf] %vm686, %v668
        %691 = vst.msk [vmem:[#allocation2 + $0x10] sm:$0xf] %vm686, %v669
        %692 = vst.msk [vmem:[#allocation2 + $0x14] sm:$0xf] %vm686, %v670
        %693 = vst.msk [vmem:[#allocation2 + $0x18] sm:$0xf] %vm686, %v671
        %694 = vst.msk [vmem:[#allocation2 + $0x1c] sm:$0xf] %vm686, %v672
        %695 = vst.msk [vmem:[#allocation2 + $0x20] sm:$0xf] %vm686, %v673
        %696 = vst.msk [vmem:[#allocation2 + $0x24] sm:$0xf] %vm686, %v674
        %697 = vst.msk [vmem:[#allocation2 + $0x28] sm:$0xf] %vm686, %v675
        %698 = vst.msk [vmem:[#allocation2 + $0x2c] sm:$0xf] %vm686, %v676
        %699 = vst.msk [vmem:[#allocation2 + $0x30] sm:$0xf] %vm686, %v677
        %700 = vst.msk [vmem:[#allocation2 + $0x34] sm:$0xf] %vm686, %v678
        %701 = vst.msk [vmem:[#allocation2 + $0x38] sm:$0xf] %vm686, %v679
        %702 = vst.msk [vmem:[#allocation2 + $0x3c] sm:$0xf] %vm686, %v680
        %703 = vst.msk [vmem:[#allocation2 + $0x40] sm:$0xf] %vm686, %v681
        %704 = vst.msk [vmem:[#allocation2 + $0x44] sm:$0xf] %vm686, %v682
        %705 = vst.msk [vmem:[#allocation2 + $0x48] sm:$0xf] %vm686, %v683
        %706 = vst.msk [vmem:[#allocation2 + $0x4c] sm:$0xf] %vm686, %v684
        %707 = vst.msk [vmem:[#allocation2 + $0x50] sm:$0xf] %vm686, %v685
        %v708 = vld [vmem:[#allocation2 + $0x8] sm:$0xf]
        %v709 = vld [vmem:[#allocation2 + $0xc] sm:$0xf]
        %v710 = vld [vmem:[#allocation2 + $0x10] sm:$0xf]
        %v711 = vld [vmem:[#allocation2 + $0x14] sm:$0xf]
        %v712 = vld [vmem:[#allocation2 + $0x18] sm:$0xf]
        %v713 = vld [vmem:[#allocation2 + $0x1c] sm:$0xf]
        %v714 = vld [vmem:[#allocation2 + $0x20] sm:$0xf]
        %v715 = vld [vmem:[#allocation2 + $0x24] sm:$0xf]
        %v716 = vld [vmem:[#allocation2 + $0x28] sm:$0xf]
        %v717 = vld [vmem:[#allocation2 + $0x2c] sm:$0xf]
        %v718 = vld [vmem:[#allocation2 + $0x30] sm:$0xf]
        %v719 = vld [vmem:[#allocation2 + $0x34] sm:$0xf]
        %v720 = vld [vmem:[#allocation2 + $0x38] sm:$0xf]
        %v721 = vld [vmem:[#allocation2 + $0x3c] sm:$0xf]
        %v722 = vld [vmem:[#allocation2 + $0x40] sm:$0xf]
        %v723 = vld [vmem:[#allocation2 + $0x44] sm:$0xf]
        %v724 = vld [vmem:[#allocation2 + $0x48] sm:$0xf]
        %v725 = vld [vmem:[%s2] sm:$0xf]
        %v726 = vld [vmem:[%s2 + $0x4] sm:$0xf]
        %v727 = vld [vmem:[%s3] sm:$0x1]
        %v729 = vperm.slane %v727, 0
        %v748 = vunpack.c.l.b16 %v708
        %v749 = vunpack.c.l.b16 %v709
        %v750 = vunpack.c.l.b16 %v710
        %v751 = vunpack.c.l.b16 %v711
        %v752 = vunpack.c.l.b16 %v712
        %v753 = vunpack.c.l.b16 %v713
        %v754 = vunpack.c.l.b16 %v714
        %v755 = vunpack.c.l.b16 %v715
        %v756 = vunpack.c.l.b16 %v716
        %v757 = vunpack.c.l.b16 %v717
        %v758 = vunpack.c.l.b16 %v718
        %v759 = vunpack.c.l.b16 %v719
        %v760 = vunpack.c.l.b16 %v720
        %v761 = vunpack.c.l.b16 %v721
        %v762 = vunpack.c.l.b16 %v722
        %v763 = vunpack.c.l.b16 %v723
        %v764 = vunpack.c.l.b16 %v724
        %v765 = vpack.c.b16 %v749, %v748
        %v766 = vpack.c.b16 %v751, %v750
        %v767 = vpack.c.b16 %v753, %v752
        %v768 = vpack.c.b16 %v755, %v754
        %v769 = vpack.c.b16 %v757, %v756
        %v770 = vpack.c.b16 %v759, %v758
        %v771 = vpack.c.b16 %v761, %v760
        %v772 = vpack.c.b16 %v763, %v762
        %v773 = vpack.c.b16 %v764, %v764
        %v776 = vunpack.c.l.b16 %v725
        %v777 = vunpack.c.l.b16 %v726
        %v778 = vpack.c.b16 %v777, %v776
        %vm780 = vcmask 130048
        %v782 = vsel %vm780, %v765, 0
        %v785 = vsel %vm780, %v766, 0
        %v788 = vsel %vm780, %v767, 0
        %v791 = vsel %vm780, %v768, 0
        %v794 = vsel %vm780, %v769, 0
        %v797 = vsel %vm780, %v770, 0
        %v800 = vsel %vm780, %v771, 0
        %v803 = vsel %vm780, %v772, 0
        %v806 = vsel %vm780, %v773, 0
        %808 = vmatpush.bf16.msra.mxu0 0
        %809 = vmatpush.bf16.msra.mxu0 0
        %810 = vmatpush.bf16.msra.mxu0 0
        %811 = vmatpush.bf16.msra.mxu0 0
        %812 = vmatpush.bf16.msra.mxu0 0
        %813 = vmatpush.bf16.msra.mxu0 0
        %814 = vmatpush.bf16.msra.mxu0 0
        %815 = vmatpush.bf16.msra.mxu0 %v778
        %816 = vmatmul.bf16.gmra.mxu0 %v782
        %v817 = vpop.f32.mrf.mxu0
        %v818 = vadd.f32 %v729, %v817
        %v819 = vpop.f32.mrf.mxu0
        %v820 = vadd.f32 %v729, %v819
        %821 = vmatmul.bf16.gmra.mxu0 %v785
        %v822 = vpop.f32.mrf.mxu0
        %v823 = vadd.f32 %v729, %v822
        %v824 = vpop.f32.mrf.mxu0
        %v825 = vadd.f32 %v729, %v824
        %826 = vmatmul.bf16.gmra.mxu0 %v788
        %v827 = vpop.f32.mrf.mxu0
        %v828 = vadd.f32 %v729, %v827
        %v829 = vpop.f32.mrf.mxu0
        %v830 = vadd.f32 %v729, %v829
        %831 = vmatmul.bf16.gmra.mxu0 %v791
        %v832 = vpop.f32.mrf.mxu0
        %v833 = vadd.f32 %v729, %v832
        %v834 = vpop.f32.mrf.mxu0
        %v835 = vadd.f32 %v729, %v834
        %836 = vmatmul.bf16.gmra.mxu0 %v794
        %v837 = vpop.f32.mrf.mxu0
        %v838 = vadd.f32 %v729, %v837
        %v839 = vpop.f32.mrf.mxu0
        %v840 = vadd.f32 %v729, %v839
        %841 = vmatmul.bf16.gmra.mxu0 %v797
        %v842 = vpop.f32.mrf.mxu0
        %v843 = vadd.f32 %v729, %v842
        %v844 = vpop.f32.mrf.mxu0
        %v845 = vadd.f32 %v729, %v844
        %846 = vmatmul.bf16.gmra.mxu0 %v800
        %v847 = vpop.f32.mrf.mxu0
        %v848 = vadd.f32 %v729, %v847
        %v849 = vpop.f32.mrf.mxu0
        %v850 = vadd.f32 %v729, %v849
        %851 = vmatmul.bf16.gmra.mxu0 %v803
        %v852 = vpop.f32.mrf.mxu0
        %v853 = vadd.f32 %v729, %v852
        %v854 = vpop.f32.mrf.mxu0
        %v855 = vadd.f32 %v729, %v854
        %856 = vmatmul.bf16.gmra.mxu0 %v806
        %v857 = vpop.f32.mrf.mxu0
        %v858 = vadd.f32 %v729, %v857
        %v859 = vpop.f32.mrf.mxu0
        %860 = vdwg.mxu0
        %v861 = vld [vmem:[#allocation2 + $0x4] sm:$0x8]
        %v862 = vld [vmem:[%s4] sm:$0xf]
        %v863 = vld [vmem:[%s4 + $0x4] sm:$0xf]
        %s864 = scalar_lea.vmem %s4, 8
        %v865 = vld [vmem:[%s864] sm:$0xf]
        %v866 = vld [vmem:[%s864 + $0x4] sm:$0xf]
        %v869 = vunpack.c.l.b16 %v865
        %v870 = vunpack.c.l.b16 %v866
        %v871 = vpack.c.b16 %v870, %v869
        %873 = vmatpush.bf16.msra.mxu0 0
        %874 = vmatpush.bf16.msra.mxu0 0
        %875 = vmatpush.bf16.msra.mxu0 0
        %876 = vmatpush.bf16.msra.mxu0 0
        %877 = vmatpush.bf16.msra.mxu0 0
        %878 = vmatpush.bf16.msra.mxu0 0
        %879 = vmatpush.bf16.msra.mxu0 0
        %880 = vmatpush.bf16.msra.mxu0 %v871
        %881 = vmatmul.bf16.gmra.mxu0 %v782
        %v882 = vpop.f32.mrf.mxu0
        %v883 = vadd.f32 0.0, %v882
        %v884 = vpop.f32.mrf.mxu0
        %v885 = vadd.f32 0.0, %v884
        %886 = vmatmul.bf16.gmra.mxu0 %v785
        %v887 = vpop.f32.mrf.mxu0
        %v888 = vadd.f32 0.0, %v887
        %v889 = vpop.f32.mrf.mxu0
        %v890 = vadd.f32 0.0, %v889
        %891 = vmatmul.bf16.gmra.mxu0 %v788
        %v892 = vpop.f32.mrf.mxu0
        %v893 = vadd.f32 0.0, %v892
        %v894 = vpop.f32.mrf.mxu0
        %v895 = vadd.f32 0.0, %v894
        %896 = vmatmul.bf16.gmra.mxu0 %v791
        %v897 = vpop.f32.mrf.mxu0
        %v898 = vadd.f32 0.0, %v897
        %v899 = vpop.f32.mrf.mxu0
        %v900 = vadd.f32 0.0, %v899
        %901 = vmatmul.bf16.gmra.mxu0 %v794
        %v902 = vpop.f32.mrf.mxu0
        %v903 = vadd.f32 0.0, %v902
        %v904 = vpop.f32.mrf.mxu0
        %v905 = vadd.f32 0.0, %v904
        %906 = vmatmul.bf16.gmra.mxu0 %v797
        %v907 = vpop.f32.mrf.mxu0
        %v908 = vadd.f32 0.0, %v907
        %v909 = vpop.f32.mrf.mxu0
        %v910 = vadd.f32 0.0, %v909
        %911 = vmatmul.bf16.gmra.mxu0 %v800
        %v912 = vpop.f32.mrf.mxu0
        %v913 = vadd.f32 0.0, %v912
        %v914 = vpop.f32.mrf.mxu0
        %v915 = vadd.f32 0.0, %v914
        %916 = vmatmul.bf16.gmra.mxu0 %v803
        %v917 = vpop.f32.mrf.mxu0
        %v918 = vadd.f32 0.0, %v917
        %v919 = vpop.f32.mrf.mxu0
        %v920 = vadd.f32 0.0, %v919
        %921 = vmatmul.bf16.gmra.mxu0 %v806
        %v922 = vpop.f32.mrf.mxu0
        %v923 = vadd.f32 0.0, %v922
        %v924 = vpop.f32.mrf.mxu0
        %925 = vdwg.mxu0
        %v927 = vunpack.c.l.b16 %v861
        %v928 = vpack.c.b16 %v748, %v927
        %v929 = vpack.c.b16 %v750, %v749
        %v930 = vpack.c.b16 %v752, %v751
        %v931 = vpack.c.b16 %v754, %v753
        %v932 = vpack.c.b16 %v756, %v755
        %v933 = vpack.c.b16 %v758, %v757
        %v934 = vpack.c.b16 %v760, %v759
        %v935 = vpack.c.b16 %v762, %v761
        %v936 = vpack.c.b16 %v764, %v763
        %vm937 = vsmask.f32 4352
        %v939 = vshrl.u32 %v928, 16
        %v941 = vrot.slane %v939, 3
        %v942 = vshll.u32 %v928, 16
        %v944 = vrot.slane %v942, 4
        %v945 = vor.u32 %v941, %v944
        %v947 = vshrl.u32 %v929, 16
        %v949 = vrot.slane %v947, 3
        %v950 = vshll.u32 %v929, 16
        %v952 = vrot.slane %v950, 4
        %v953 = vor.u32 %v949, %v952
        %v954 = vsel %vm937, %v945, %v953
        %v956 = vshrl.u32 %v930, 16
        %v958 = vrot.slane %v956, 3
        %v959 = vshll.u32 %v930, 16
        %v961 = vrot.slane %v959, 4
        %v962 = vor.u32 %v958, %v961
        %v963 = vsel %vm937, %v953, %v962
        %v965 = vshrl.u32 %v931, 16
        %v967 = vrot.slane %v965, 3
        %v968 = vshll.u32 %v931, 16
        %v970 = vrot.slane %v968, 4
        %v971 = vor.u32 %v967, %v970
        %v972 = vsel %vm937, %v962, %v971
        %v974 = vshrl.u32 %v932, 16
        %v976 = vrot.slane %v974, 3
        %v977 = vshll.u32 %v932, 16
        %v979 = vrot.slane %v977, 4
        %v980 = vor.u32 %v976, %v979
        %v981 = vsel %vm937, %v971, %v980
        %v983 = vshrl.u32 %v933, 16
        %v985 = vrot.slane %v983, 3
        %v986 = vshll.u32 %v933, 16
        %v988 = vrot.slane %v986, 4
        %v989 = vor.u32 %v985, %v988
        %v990 = vsel %vm937, %v980, %v989
        %v992 = vshrl.u32 %v934, 16
        %v994 = vrot.slane %v992, 3
        %v995 = vshll.u32 %v934, 16
        %v997 = vrot.slane %v995, 4
        %v998 = vor.u32 %v994, %v997
        %v999 = vsel %vm937, %v989, %v998
        %v1001 = vshrl.u32 %v935, 16
        %v1003 = vrot.slane %v1001, 3
        %v1004 = vshll.u32 %v935, 16
        %v1006 = vrot.slane %v1004, 4
        %v1007 = vor.u32 %v1003, %v1006
        %v1008 = vsel %vm937, %v998, %v1007
        %v1010 = vshrl.u32 %v936, 16
        %v1012 = vrot.slane %v1010, 3
        %v1013 = vshll.u32 %v936, 16
        %v1015 = vrot.slane %v1013, 4
        %v1016 = vor.u32 %v1012, %v1015
        %v1017 = vsel %vm937, %v1007, %v1016
        %v1020 = vunpack.c.l.b16 %v862
        %v1021 = vunpack.c.l.b16 %v863
        %v1022 = vpack.c.b16 %v1021, %v1020
        %v1025 = vsel %vm780, %v954, 0
        %v1028 = vsel %vm780, %v963, 0
        %v1031 = vsel %vm780, %v972, 0
        %v1034 = vsel %vm780, %v981, 0
        %v1037 = vsel %vm780, %v990, 0
        %v1040 = vsel %vm780, %v999, 0
        %v1043 = vsel %vm780, %v1008, 0
        %v1046 = vsel %vm780, %v1017, 0
        %v1049 = vsel %vm780, %v1016, 0
        %1051 = vmatpush.bf16.msra.mxu0 0
        %1052 = vmatpush.bf16.msra.mxu0 0
        %1053 = vmatpush.bf16.msra.mxu0 0
        %1054 = vmatpush.bf16.msra.mxu0 0
        %1055 = vmatpush.bf16.msra.mxu0 0
        %1056 = vmatpush.bf16.msra.mxu0 0
        %1057 = vmatpush.bf16.msra.mxu0 0
        %1058 = vmatpush.bf16.msra.mxu0 %v1022
        %1059 = vmatmul.bf16.gmra.mxu0 %v1025
        %v1060 = vpop.f32.mrf.mxu0
        %v1061 = vadd.f32 %v883, %v1060
        %v1062 = vpop.f32.mrf.mxu0
        %v1063 = vadd.f32 %v885, %v1062
        %1064 = vmatmul.bf16.gmra.mxu0 %v1028
        %v1065 = vpop.f32.mrf.mxu0
        %v1066 = vadd.f32 %v888, %v1065
        %v1067 = vpop.f32.mrf.mxu0
        %v1068 = vadd.f32 %v890, %v1067
        %1069 = vmatmul.bf16.gmra.mxu0 %v1031
        %v1070 = vpop.f32.mrf.mxu0
        %v1071 = vadd.f32 %v893, %v1070
        %v1072 = vpop.f32.mrf.mxu0
        %v1073 = vadd.f32 %v895, %v1072
        %1074 = vmatmul.bf16.gmra.mxu0 %v1034
        %v1075 = vpop.f32.mrf.mxu0
        %v1076 = vadd.f32 %v898, %v1075
        %v1077 = vpop.f32.mrf.mxu0
        %v1078 = vadd.f32 %v900, %v1077
        %1079 = vmatmul.bf16.gmra.mxu0 %v1037
        %v1080 = vpop.f32.mrf.mxu0
        %v1081 = vadd.f32 %v903, %v1080
        %v1082 = vpop.f32.mrf.mxu0
        %v1083 = vadd.f32 %v905, %v1082
        %1084 = vmatmul.bf16.gmra.mxu0 %v1040
        %v1085 = vpop.f32.mrf.mxu0
        %v1086 = vadd.f32 %v908, %v1085
        %v1087 = vpop.f32.mrf.mxu0
        %v1088 = vadd.f32 %v910, %v1087
        %1089 = vmatmul.bf16.gmra.mxu0 %v1043
        %v1090 = vpop.f32.mrf.mxu0
        %v1091 = vadd.f32 %v913, %v1090
        %v1092 = vpop.f32.mrf.mxu0
        %v1093 = vadd.f32 %v915, %v1092
        %1094 = vmatmul.bf16.gmra.mxu0 %v1046
        %v1095 = vpop.f32.mrf.mxu0
        %v1096 = vadd.f32 %v918, %v1095
        %v1097 = vpop.f32.mrf.mxu0
        %v1098 = vadd.f32 %v920, %v1097
        %1099 = vmatmul.bf16.gmra.mxu0 %v1049
        %v1100 = vpop.f32.mrf.mxu0
        %v1101 = vadd.f32 %v923, %v1100
        %v1102 = vpop.f32.mrf.mxu0
        %1103 = vdwg.mxu0
        %v1104 = vld [vmem:[#allocation2 + $0x8] sm:$0xf]
        %v1105 = vld [vmem:[#allocation2 + $0xc] sm:$0xf]
        %v1106 = vld [vmem:[#allocation2 + $0x10] sm:$0xf]
        %v1107 = vld [vmem:[#allocation2 + $0x14] sm:$0xf]
        %v1108 = vld [vmem:[#allocation2 + $0x18] sm:$0xf]
        %v1109 = vld [vmem:[#allocation2 + $0x1c] sm:$0xf]
        %v1110 = vld [vmem:[#allocation2 + $0x20] sm:$0xf]
        %v1111 = vld [vmem:[#allocation2 + $0x24] sm:$0xf]
        %v1112 = vld [vmem:[#allocation2 + $0x28] sm:$0xf]
        %v1113 = vld [vmem:[#allocation2 + $0x2c] sm:$0xf]
        %v1114 = vld [vmem:[#allocation2 + $0x30] sm:$0xf]
        %v1115 = vld [vmem:[#allocation2 + $0x34] sm:$0xf]
        %v1116 = vld [vmem:[#allocation2 + $0x38] sm:$0xf]
        %v1117 = vld [vmem:[#allocation2 + $0x3c] sm:$0xf]
        %v1118 = vld [vmem:[#allocation2 + $0x40] sm:$0xf]
        %v1119 = vld [vmem:[#allocation2 + $0x44] sm:$0xf]
        %v1120 = vld [vmem:[#allocation2 + $0x48] sm:$0xf]
        %v1121 = vld [vmem:[#allocation2 + $0x4c] sm:$0x1]
        %s1122 = scalar_lea.vmem %s4, 16
        %v1123 = vld [vmem:[%s1122] sm:$0xf]
        %v1124 = vld [vmem:[%s1122 + $0x4] sm:$0xf]
        %v1143 = vunpack.c.l.b16 %v1104
        %v1144 = vunpack.c.l.b16 %v1105
        %v1145 = vunpack.c.l.b16 %v1106
        %v1146 = vunpack.c.l.b16 %v1107
        %v1147 = vunpack.c.l.b16 %v1108
        %v1148 = vunpack.c.l.b16 %v1109
        %v1149 = vunpack.c.l.b16 %v1110
        %v1150 = vunpack.c.l.b16 %v1111
        %v1151 = vunpack.c.l.b16 %v1112
        %v1152 = vunpack.c.l.b16 %v1113
        %v1153 = vunpack.c.l.b16 %v1114
        %v1154 = vunpack.c.l.b16 %v1115
        %v1155 = vunpack.c.l.b16 %v1116
        %v1156 = vunpack.c.l.b16 %v1117
        %v1157 = vunpack.c.l.b16 %v1118
        %v1158 = vunpack.c.l.b16 %v1119
        %v1159 = vunpack.c.l.b16 %v1120
        %v1160 = vunpack.c.l.b16 %v1121
        %v1161 = vpack.c.b16 %v1144, %v1143
        %v1162 = vpack.c.b16 %v1146, %v1145
        %v1163 = vpack.c.b16 %v1148, %v1147
        %v1164 = vpack.c.b16 %v1150, %v1149
        %v1165 = vpack.c.b16 %v1152, %v1151
        %v1166 = vpack.c.b16 %v1154, %v1153
        %v1167 = vpack.c.b16 %v1156, %v1155
        %v1168 = vpack.c.b16 %v1158, %v1157
        %v1169 = vpack.c.b16 %v1160, %v1159
        %vm1170 = vsmask.f32 7424
        %v1172 = vshrl.u32 %v1161, 16
        %v1174 = vshll.u32 %v1161, 16
        %v1176 = vrot.slane %v1174, 1
        %v1177 = vor.u32 %v1172, %v1176
        %v1179 = vshll.u32 %v1162, 16
        %v1181 = vrot.slane %v1179, 1
        %v1182 = vsel %vm1170, %v1177, %v1181
        %v1183 = vshrl.u32 %v1162, 16
        %v1185 = vor.u32 %v1183, %v1181
        %v1187 = vshll.u32 %v1163, 16
        %v1189 = vrot.slane %v1187, 1
        %v1190 = vsel %vm1170, %v1185, %v1189
        %v1191 = vshrl.u32 %v1163, 16
        %v1193 = vor.u32 %v1191, %v1189
        %v1195 = vshll.u32 %v1164, 16
        %v1197 = vrot.slane %v1195, 1
        %v1198 = vsel %vm1170, %v1193, %v1197
        %v1199 = vshrl.u32 %v1164, 16
        %v1201 = vor.u32 %v1199, %v1197
        %v1203 = vshll.u32 %v1165, 16
        %v1205 = vrot.slane %v1203, 1
        %v1206 = vsel %vm1170, %v1201, %v1205
        %v1207 = vshrl.u32 %v1165, 16
        %v1209 = vor.u32 %v1207, %v1205
        %v1211 = vshll.u32 %v1166, 16
        %v1213 = vrot.slane %v1211, 1
        %v1214 = vsel %vm1170, %v1209, %v1213
        %v1215 = vshrl.u32 %v1166, 16
        %v1217 = vor.u32 %v1215, %v1213
        %v1219 = vshll.u32 %v1167, 16
        %v1221 = vrot.slane %v1219, 1
        %v1222 = vsel %vm1170, %v1217, %v1221
        %v1223 = vshrl.u32 %v1167, 16
        %v1225 = vor.u32 %v1223, %v1221
        %v1227 = vshll.u32 %v1168, 16
        %v1229 = vrot.slane %v1227, 1
        %v1230 = vsel %vm1170, %v1225, %v1229
        %v1231 = vshrl.u32 %v1168, 16
        %v1233 = vor.u32 %v1231, %v1229
        %v1235 = vshll.u32 %v1169, 16
        %v1237 = vrot.slane %v1235, 1
        %v1238 = vsel %vm1170, %v1233, %v1237
        %v1239 = vshrl.u32 %v1169, 16
        %v1241 = vor.u32 %v1239, %v1237
        %v1244 = vunpack.c.l.b16 %v1123
        %v1245 = vunpack.c.l.b16 %v1124
        %v1246 = vpack.c.b16 %v1245, %v1244
        %v1249 = vsel %vm780, %v1182, 0
        %v1252 = vsel %vm780, %v1190, 0
        %v1255 = vsel %vm780, %v1198, 0
        %v1258 = vsel %vm780, %v1206, 0
        %v1261 = vsel %vm780, %v1214, 0
        %v1264 = vsel %vm780, %v1222, 0
        %v1267 = vsel %vm780, %v1230, 0
        %v1270 = vsel %vm780, %v1238, 0
        %v1273 = vsel %vm780, %v1241, 0
        %1275 = vmatpush.bf16.msra.mxu0 0
        %1276 = vmatpush.bf16.msra.mxu0 0
        %1277 = vmatpush.bf16.msra.mxu0 0
        %1278 = vmatpush.bf16.msra.mxu0 0
        %1279 = vmatpush.bf16.msra.mxu0 0
        %1280 = vmatpush.bf16.msra.mxu0 0
        %1281 = vmatpush.bf16.msra.mxu0 0
        %1282 = vmatpush.bf16.msra.mxu0 %v1246
        %1283 = vmatmul.bf16.gmra.mxu0 %v1249
        %v1284 = vpop.f32.mrf.mxu0
        %v1285 = vadd.f32 0.0, %v1284
        %v1286 = vpop.f32.mrf.mxu0
        %v1287 = vadd.f32 0.0, %v1286
        %1288 = vmatmul.bf16.gmra.mxu0 %v1252
        %v1289 = vpop.f32.mrf.mxu0
        %v1290 = vadd.f32 0.0, %v1289
        %v1291 = vpop.f32.mrf.mxu0
        %v1292 = vadd.f32 0.0, %v1291
        %1293 = vmatmul.bf16.gmra.mxu0 %v1255
        %v1294 = vpop.f32.mrf.mxu0
        %v1295 = vadd.f32 0.0, %v1294
        %v1296 = vpop.f32.mrf.mxu0
        %v1297 = vadd.f32 0.0, %v1296
        %1298 = vmatmul.bf16.gmra.mxu0 %v1258
        %v1299 = vpop.f32.mrf.mxu0
        %v1300 = vadd.f32 0.0, %v1299
        %v1301 = vpop.f32.mrf.mxu0
        %v1302 = vadd.f32 0.0, %v1301
        %1303 = vmatmul.bf16.gmra.mxu0 %v1261
        %v1304 = vpop.f32.mrf.mxu0
        %v1305 = vadd.f32 0.0, %v1304
        %v1306 = vpop.f32.mrf.mxu0
        %v1307 = vadd.f32 0.0, %v1306
        %1308 = vmatmul.bf16.gmra.mxu0 %v1264
        %v1309 = vpop.f32.mrf.mxu0
        %v1310 = vadd.f32 0.0, %v1309
        %v1311 = vpop.f32.mrf.mxu0
        %v1312 = vadd.f32 0.0, %v1311
        %1313 = vmatmul.bf16.gmra.mxu0 %v1267
        %v1314 = vpop.f32.mrf.mxu0
        %v1315 = vadd.f32 0.0, %v1314
        %v1316 = vpop.f32.mrf.mxu0
        %v1317 = vadd.f32 0.0, %v1316
        %1318 = vmatmul.bf16.gmra.mxu0 %v1270
        %v1319 = vpop.f32.mrf.mxu0
        %v1320 = vadd.f32 0.0, %v1319
        %v1321 = vpop.f32.mrf.mxu0
        %v1322 = vadd.f32 0.0, %v1321
        %1323 = vmatmul.bf16.gmra.mxu0 %v1273
        %v1324 = vpop.f32.mrf.mxu0
        %v1325 = vadd.f32 0.0, %v1324
        %v1326 = vpop.f32.mrf.mxu0
        %1327 = vdwg.mxu0
        %v1328 = vadd.f32 %v1061, %v1285
        %v1329 = vadd.f32 %v1063, %v1287
        %v1330 = vadd.f32 %v1066, %v1290
        %v1331 = vadd.f32 %v1068, %v1292
        %v1332 = vadd.f32 %v1071, %v1295
        %v1333 = vadd.f32 %v1073, %v1297
        %v1334 = vadd.f32 %v1076, %v1300
        %v1335 = vadd.f32 %v1078, %v1302
        %v1336 = vadd.f32 %v1081, %v1305
        %v1337 = vadd.f32 %v1083, %v1307
        %v1338 = vadd.f32 %v1086, %v1310
        %v1339 = vadd.f32 %v1088, %v1312
        %v1340 = vadd.f32 %v1091, %v1315
        %v1341 = vadd.f32 %v1093, %v1317
        %v1342 = vadd.f32 %v1096, %v1320
        %v1343 = vadd.f32 %v1098, %v1322
        %v1344 = vadd.f32 %v1101, %v1325
        %v1345 = vld [vmem:[%s5] sm:$0x1]
        %v1347 = vperm.slane %v1345, 0
        %v1349 = vadd.f32 %v1328, %v1347
        %v1350 = vadd.f32 %v1329, %v1347
        %v1351 = vadd.f32 %v1330, %v1347
        %v1352 = vadd.f32 %v1331, %v1347
        %v1353 = vadd.f32 %v1332, %v1347
        %v1354 = vadd.f32 %v1333, %v1347
        %v1355 = vadd.f32 %v1334, %v1347
        %v1356 = vadd.f32 %v1335, %v1347
        %v1357 = vadd.f32 %v1336, %v1347
        %v1358 = vadd.f32 %v1337, %v1347
        %v1359 = vadd.f32 %v1338, %v1347
        %v1360 = vadd.f32 %v1339, %v1347
        %v1361 = vadd.f32 %v1340, %v1347
        %v1362 = vadd.f32 %v1341, %v1347
        %v1363 = vadd.f32 %v1342, %v1347
        %v1364 = vadd.f32 %v1343, %v1347
        %v1365 = vadd.f32 %v1344, %v1347
        %v1366 = vmax.f32 %v1349, 0.0
        %v1367 = vmax.f32 %v1350, 0.0
        %v1368 = vmax.f32 %v1351, 0.0
        %v1369 = vmax.f32 %v1352, 0.0
        %v1370 = vmax.f32 %v1353, 0.0
        %v1371 = vmax.f32 %v1354, 0.0
        %v1372 = vmax.f32 %v1355, 0.0
        %v1373 = vmax.f32 %v1356, 0.0
        %v1374 = vmax.f32 %v1357, 0.0
        %v1375 = vmax.f32 %v1358, 0.0
        %v1376 = vmax.f32 %v1359, 0.0
        %v1377 = vmax.f32 %v1360, 0.0
        %v1378 = vmax.f32 %v1361, 0.0
        %v1379 = vmax.f32 %v1362, 0.0
        %v1380 = vmax.f32 %v1363, 0.0
        %v1381 = vmax.f32 %v1364, 0.0
        %v1382 = vmax.f32 %v1365, 0.0
        %v1383 = vmul.f32 %v1366, %v603
        %v1384 = vmul.f32 %v1367, %v604
        %v1385 = vmul.f32 %v1368, %v605
        %v1386 = vmul.f32 %v1369, %v606
        %v1387 = vmul.f32 %v1370, %v607
        %v1388 = vmul.f32 %v1371, %v608
        %v1389 = vmul.f32 %v1372, %v609
        %v1390 = vmul.f32 %v1373, %v610
        %v1391 = vmul.f32 %v1374, %v611
        %v1392 = vmul.f32 %v1375, %v612
        %v1393 = vmul.f32 %v1376, %v613
        %v1394 = vmul.f32 %v1377, %v614
        %v1395 = vmul.f32 %v1378, %v615
        %v1396 = vmul.f32 %v1379, %v616
        %v1397 = vmul.f32 %v1380, %v617
        %v1398 = vmul.f32 %v1381, %v618
        %v1399 = vmul.f32 %v1382, %v619
        %v1400 = vpack.c.bf16 %v1383, %v1383
        %v1401 = vpack.c.bf16 %v1384, %v1384
        %v1402 = vpack.c.bf16 %v1385, %v1385
        %v1403 = vpack.c.bf16 %v1386, %v1386
        %v1404 = vpack.c.bf16 %v1387, %v1387
        %v1405 = vpack.c.bf16 %v1388, %v1388
        %v1406 = vpack.c.bf16 %v1389, %v1389
        %v1407 = vpack.c.bf16 %v1390, %v1390
        %v1408 = vpack.c.bf16 %v1391, %v1391
        %v1409 = vpack.c.bf16 %v1392, %v1392
        %v1410 = vpack.c.bf16 %v1393, %v1393
        %v1411 = vpack.c.bf16 %v1394, %v1394
        %v1412 = vpack.c.bf16 %v1395, %v1395
        %v1413 = vpack.c.bf16 %v1396, %v1396
        %v1414 = vpack.c.bf16 %v1397, %v1397
        %v1415 = vpack.c.bf16 %v1398, %v1398
        %v1416 = vpack.c.bf16 %v1399, %v1399
        %1417 = vst.msk [vmem:[#allocation2 + $0x8] sm:$0xf] %vm466, %v1400
        %1418 = vst.msk [vmem:[#allocation2 + $0xc] sm:$0xf] %vm466, %v1401
        %1419 = vst.msk [vmem:[#allocation2 + $0x10] sm:$0xf] %vm466, %v1402
        %1420 = vst.msk [vmem:[#allocation2 + $0x14] sm:$0xf] %vm466, %v1403
        %1421 = vst.msk [vmem:[#allocation2 + $0x18] sm:$0xf] %vm466, %v1404
        %1422 = vst.msk [vmem:[#allocation2 + $0x1c] sm:$0xf] %vm466, %v1405
        %1423 = vst.msk [vmem:[#allocation2 + $0x20] sm:$0xf] %vm466, %v1406
        %1424 = vst.msk [vmem:[#allocation2 + $0x24] sm:$0xf] %vm466, %v1407
        %1425 = vst.msk [vmem:[#allocation2 + $0x28] sm:$0xf] %vm466, %v1408
        %1426 = vst.msk [vmem:[#allocation2 + $0x2c] sm:$0xf] %vm466, %v1409
        %1427 = vst.msk [vmem:[#allocation2 + $0x30] sm:$0xf] %vm466, %v1410
        %1428 = vst.msk [vmem:[#allocation2 + $0x34] sm:$0xf] %vm466, %v1411
        %1429 = vst.msk [vmem:[#allocation2 + $0x38] sm:$0xf] %vm466, %v1412
        %1430 = vst.msk [vmem:[#allocation2 + $0x3c] sm:$0xf] %vm466, %v1413
        %1431 = vst.msk [vmem:[#allocation2 + $0x40] sm:$0xf] %vm466, %v1414
        %1432 = vst.msk [vmem:[#allocation2 + $0x44] sm:$0xf] %vm466, %v1415
        %1433 = vst.msk [vmem:[#allocation2 + $0x48] sm:$0xf] %vm466, %v1416
        %v1434 = vld [vmem:[#allocation2 + $0x4] sm:$0x8]
        %v1435 = vld [vmem:[#allocation2 + $0x8] sm:$0xf]
        %v1436 = vld [vmem:[#allocation2 + $0xc] sm:$0xf]
        %v1437 = vld [vmem:[#allocation2 + $0x10] sm:$0xf]
        %v1438 = vld [vmem:[#allocation2 + $0x14] sm:$0xf]
        %v1439 = vld [vmem:[#allocation2 + $0x18] sm:$0xf]
        %v1440 = vld [vmem:[#allocation2 + $0x1c] sm:$0xf]
        %v1441 = vld [vmem:[#allocation2 + $0x20] sm:$0xf]
        %v1442 = vld [vmem:[#allocation2 + $0x24] sm:$0xf]
        %v1443 = vld [vmem:[#allocation2 + $0x28] sm:$0xf]
        %v1444 = vld [vmem:[#allocation2 + $0x2c] sm:$0xf]
        %v1445 = vld [vmem:[#allocation2 + $0x30] sm:$0xf]
        %v1446 = vld [vmem:[#allocation2 + $0x34] sm:$0xf]
        %v1447 = vld [vmem:[#allocation2 + $0x38] sm:$0xf]
        %v1448 = vld [vmem:[#allocation2 + $0x3c] sm:$0xf]
        %v1449 = vld [vmem:[#allocation2 + $0x40] sm:$0xf]
        %v1450 = vld [vmem:[#allocation2 + $0x44] sm:$0xf]
        %v1451 = vld [vmem:[#allocation2 + $0x48] sm:$0xf]
        %v1452 = vld [vmem:[%s6] sm:$0xf]
        %v1453 = vld [vmem:[%s6 + $0x4] sm:$0xf]
        %v1454 = vld [vmem:[%s6 + $0x8] sm:$0xf]
        %v1455 = vld [vmem:[%s6 + $0xc] sm:$0xf]
        %s1456 = scalar_lea.vmem %s6, 16
        %v1457 = vld [vmem:[%s1456] sm:$0xf]
        %v1458 = vld [vmem:[%s1456 + $0x4] sm:$0xf]
        %v1459 = vld [vmem:[%s1456 + $0x8] sm:$0xf]
        %v1460 = vld [vmem:[%s1456 + $0xc] sm:$0xf]
        %v1478 = vunpack.c.l.b16 %v1435
        %v1479 = vunpack.c.l.b16 %v1436
        %v1480 = vunpack.c.l.b16 %v1437
        %v1481 = vunpack.c.l.b16 %v1438
        %v1482 = vunpack.c.l.b16 %v1439
        %v1483 = vunpack.c.l.b16 %v1440
        %v1484 = vunpack.c.l.b16 %v1441
        %v1485 = vunpack.c.l.b16 %v1442
        %v1486 = vunpack.c.l.b16 %v1443
        %v1487 = vunpack.c.l.b16 %v1444
        %v1488 = vunpack.c.l.b16 %v1445
        %v1489 = vunpack.c.l.b16 %v1446
        %v1490 = vunpack.c.l.b16 %v1447
        %v1491 = vunpack.c.l.b16 %v1448
        %v1492 = vunpack.c.l.b16 %v1449
        %v1493 = vunpack.c.l.b16 %v1450
        %v1494 = vunpack.c.l.b16 %v1451
        %v1495 = vpack.c.b16 %v1479, %v1478
        %v1496 = vpack.c.b16 %v1481, %v1480
        %v1497 = vpack.c.b16 %v1483, %v1482
        %v1498 = vpack.c.b16 %v1485, %v1484
        %v1499 = vpack.c.b16 %v1487, %v1486
        %v1500 = vpack.c.b16 %v1489, %v1488
        %v1501 = vpack.c.b16 %v1491, %v1490
        %v1502 = vpack.c.b16 %v1493, %v1492
        %v1503 = vpack.c.b16 %v1494, %v1494
        %v1508 = vunpack.c.l.b16 %v1457
        %v1509 = vunpack.c.l.b16 %v1458
        %v1510 = vunpack.c.l.b16 %v1459
        %v1511 = vunpack.c.l.b16 %v1460
        %v1512 = vpack.c.b16 %v1509, %v1508
        %v1513 = vpack.c.b16 %v1511, %v1510
        %vm1516 = vcmask 261120
        %v1518 = vsel %vm1516, %v1495, 0
        %v1521 = vsel %vm1516, %v1496, 0
        %v1524 = vsel %vm1516, %v1497, 0
        %v1527 = vsel %vm1516, %v1498, 0
        %v1530 = vsel %vm1516, %v1499, 0
        %v1533 = vsel %vm1516, %v1500, 0
        %v1536 = vsel %vm1516, %v1501, 0
        %v1539 = vsel %vm1516, %v1502, 0
        %v1542 = vsel %vm1516, %v1503, 0
        %1544 = vmatpush.bf16.msra.mxu0 0
        %1545 = vmatpush.bf16.msra.mxu0 0
        %1546 = vmatpush.bf16.msra.mxu0 0
        %1547 = vmatpush.bf16.msra.mxu0 0
        %1548 = vmatpush.bf16.msra.mxu0 0
        %1549 = vmatpush.bf16.msra.mxu0 0
        %1550 = vmatpush.bf16.msra.mxu0 %v1513
        %1551 = vmatpush.bf16.msra.mxu0 %v1512
        %1552 = vmatmul.bf16.gmra.mxu0 %v1518
        %v1553 = vpop.f32.mrf.mxu0
        %v1554 = vadd.f32 0.0, %v1553
        %v1555 = vpop.f32.mrf.mxu0
        %v1556 = vadd.f32 0.0, %v1555
        %1557 = vmatmul.bf16.gmra.mxu0 %v1521
        %v1558 = vpop.f32.mrf.mxu0
        %v1559 = vadd.f32 0.0, %v1558
        %v1560 = vpop.f32.mrf.mxu0
        %v1561 = vadd.f32 0.0, %v1560
        %1562 = vmatmul.bf16.gmra.mxu0 %v1524
        %v1563 = vpop.f32.mrf.mxu0
        %v1564 = vadd.f32 0.0, %v1563
        %v1565 = vpop.f32.mrf.mxu0
        %v1566 = vadd.f32 0.0, %v1565
        %1567 = vmatmul.bf16.gmra.mxu0 %v1527
        %v1568 = vpop.f32.mrf.mxu0
        %v1569 = vadd.f32 0.0, %v1568
        %v1570 = vpop.f32.mrf.mxu0
        %v1571 = vadd.f32 0.0, %v1570
        %1572 = vmatmul.bf16.gmra.mxu0 %v1530
        %v1573 = vpop.f32.mrf.mxu0
        %v1574 = vadd.f32 0.0, %v1573
        %v1575 = vpop.f32.mrf.mxu0
        %v1576 = vadd.f32 0.0, %v1575
        %1577 = vmatmul.bf16.gmra.mxu0 %v1533
        %v1578 = vpop.f32.mrf.mxu0
        %v1579 = vadd.f32 0.0, %v1578
        %v1580 = vpop.f32.mrf.mxu0
        %v1581 = vadd.f32 0.0, %v1580
        %1582 = vmatmul.bf16.gmra.mxu0 %v1536
        %v1583 = vpop.f32.mrf.mxu0
        %v1584 = vadd.f32 0.0, %v1583
        %v1585 = vpop.f32.mrf.mxu0
        %v1586 = vadd.f32 0.0, %v1585
        %1587 = vmatmul.bf16.gmra.mxu0 %v1539
        %v1588 = vpop.f32.mrf.mxu0
        %v1589 = vadd.f32 0.0, %v1588
        %v1590 = vpop.f32.mrf.mxu0
        %v1591 = vadd.f32 0.0, %v1590
        %1592 = vmatmul.bf16.gmra.mxu0 %v1542
        %v1593 = vpop.f32.mrf.mxu0
        %v1594 = vadd.f32 0.0, %v1593
        %v1595 = vpop.f32.mrf.mxu0
        %1596 = vdwg.mxu0
        %v1598 = vunpack.c.l.b16 %v1434
        %v1599 = vpack.c.b16 %v1478, %v1598
        %v1600 = vpack.c.b16 %v1480, %v1479
        %v1601 = vpack.c.b16 %v1482, %v1481
        %v1602 = vpack.c.b16 %v1484, %v1483
        %v1603 = vpack.c.b16 %v1486, %v1485
        %v1604 = vpack.c.b16 %v1488, %v1487
        %v1605 = vpack.c.b16 %v1490, %v1489
        %v1606 = vpack.c.b16 %v1492, %v1491
        %v1607 = vpack.c.b16 %v1494, %v1493
        %v1609 = vshrl.u32 %v1599, 16
        %v1611 = vrot.slane %v1609, 3
        %v1612 = vshll.u32 %v1599, 16
        %v1614 = vrot.slane %v1612, 4
        %v1615 = vor.u32 %v1611, %v1614
        %v1617 = vshrl.u32 %v1600, 16
        %v1619 = vrot.slane %v1617, 3
        %v1620 = vshll.u32 %v1600, 16
        %v1622 = vrot.slane %v1620, 4
        %v1623 = vor.u32 %v1619, %v1622
        %v1624 = vsel %vm937, %v1615, %v1623
        %v1626 = vshrl.u32 %v1601, 16
        %v1628 = vrot.slane %v1626, 3
        %v1629 = vshll.u32 %v1601, 16
        %v1631 = vrot.slane %v1629, 4
        %v1632 = vor.u32 %v1628, %v1631
        %v1633 = vsel %vm937, %v1623, %v1632
        %v1635 = vshrl.u32 %v1602, 16
        %v1637 = vrot.slane %v1635, 3
        %v1638 = vshll.u32 %v1602, 16
        %v1640 = vrot.slane %v1638, 4
        %v1641 = vor.u32 %v1637, %v1640
        %v1642 = vsel %vm937, %v1632, %v1641
        %v1644 = vshrl.u32 %v1603, 16
        %v1646 = vrot.slane %v1644, 3
        %v1647 = vshll.u32 %v1603, 16
        %v1649 = vrot.slane %v1647, 4
        %v1650 = vor.u32 %v1646, %v1649
        %v1651 = vsel %vm937, %v1641, %v1650
        %v1653 = vshrl.u32 %v1604, 16
        %v1655 = vrot.slane %v1653, 3
        %v1656 = vshll.u32 %v1604, 16
        %v1658 = vrot.slane %v1656, 4
        %v1659 = vor.u32 %v1655, %v1658
        %v1660 = vsel %vm937, %v1650, %v1659
        %v1662 = vshrl.u32 %v1605, 16
        %v1664 = vrot.slane %v1662, 3
        %v1665 = vshll.u32 %v1605, 16
        %v1667 = vrot.slane %v1665, 4
        %v1668 = vor.u32 %v1664, %v1667
        %v1669 = vsel %vm937, %v1659, %v1668
        %v1671 = vshrl.u32 %v1606, 16
        %v1673 = vrot.slane %v1671, 3
        %v1674 = vshll.u32 %v1606, 16
        %v1676 = vrot.slane %v1674, 4
        %v1677 = vor.u32 %v1673, %v1676
        %v1678 = vsel %vm937, %v1668, %v1677
        %v1680 = vshrl.u32 %v1607, 16
        %v1682 = vrot.slane %v1680, 3
        %v1683 = vshll.u32 %v1607, 16
        %v1685 = vrot.slane %v1683, 4
        %v1686 = vor.u32 %v1682, %v1685
        %v1687 = vsel %vm937, %v1677, %v1686
        %v1692 = vunpack.c.l.b16 %v1452
        %v1693 = vunpack.c.l.b16 %v1453
        %v1694 = vunpack.c.l.b16 %v1454
        %v1695 = vunpack.c.l.b16 %v1455
        %v1696 = vpack.c.b16 %v1693, %v1692
        %v1697 = vpack.c.b16 %v1695, %v1694
        %v1701 = vsel %vm1516, %v1624, 0
        %v1704 = vsel %vm1516, %v1633, 0
        %v1707 = vsel %vm1516, %v1642, 0
        %v1710 = vsel %vm1516, %v1651, 0
        %v1713 = vsel %vm1516, %v1660, 0
        %v1716 = vsel %vm1516, %v1669, 0
        %v1719 = vsel %vm1516, %v1678, 0
        %v1722 = vsel %vm1516, %v1687, 0
        %v1725 = vsel %vm1516, %v1686, 0
        %1727 = vmatpush.bf16.msra.mxu0 0
        %1728 = vmatpush.bf16.msra.mxu0 0
        %1729 = vmatpush.bf16.msra.mxu0 0
        %1730 = vmatpush.bf16.msra.mxu0 0
        %1731 = vmatpush.bf16.msra.mxu0 0
        %1732 = vmatpush.bf16.msra.mxu0 0
        %1733 = vmatpush.bf16.msra.mxu0 %v1697
        %1734 = vmatpush.bf16.msra.mxu0 %v1696
        %1735 = vmatmul.bf16.gmra.mxu0 %v1701
        %v1736 = vpop.f32.mrf.mxu0
        %v1737 = vadd.f32 %v1554, %v1736
        %v1738 = vpop.f32.mrf.mxu0
        %v1739 = vadd.f32 %v1556, %v1738
        %1740 = vmatmul.bf16.gmra.mxu0 %v1704
        %v1741 = vpop.f32.mrf.mxu0
        %v1742 = vadd.f32 %v1559, %v1741
        %v1743 = vpop.f32.mrf.mxu0
        %v1744 = vadd.f32 %v1561, %v1743
        %1745 = vmatmul.bf16.gmra.mxu0 %v1707
        %v1746 = vpop.f32.mrf.mxu0
        %v1747 = vadd.f32 %v1564, %v1746
        %v1748 = vpop.f32.mrf.mxu0
        %v1749 = vadd.f32 %v1566, %v1748
        %1750 = vmatmul.bf16.gmra.mxu0 %v1710
        %v1751 = vpop.f32.mrf.mxu0
        %v1752 = vadd.f32 %v1569, %v1751
        %v1753 = vpop.f32.mrf.mxu0
        %v1754 = vadd.f32 %v1571, %v1753
        %1755 = vmatmul.bf16.gmra.mxu0 %v1713
        %v1756 = vpop.f32.mrf.mxu0
        %v1757 = vadd.f32 %v1574, %v1756
        %v1758 = vpop.f32.mrf.mxu0
        %v1759 = vadd.f32 %v1576, %v1758
        %1760 = vmatmul.bf16.gmra.mxu0 %v1716
        %v1761 = vpop.f32.mrf.mxu0
        %v1762 = vadd.f32 %v1579, %v1761
        %v1763 = vpop.f32.mrf.mxu0
        %v1764 = vadd.f32 %v1581, %v1763
        %1765 = vmatmul.bf16.gmra.mxu0 %v1719
        %v1766 = vpop.f32.mrf.mxu0
        %v1767 = vadd.f32 %v1584, %v1766
        %v1768 = vpop.f32.mrf.mxu0
        %v1769 = vadd.f32 %v1586, %v1768
        %1770 = vmatmul.bf16.gmra.mxu0 %v1722
        %v1771 = vpop.f32.mrf.mxu0
        %v1772 = vadd.f32 %v1589, %v1771
        %v1773 = vpop.f32.mrf.mxu0
        %v1774 = vadd.f32 %v1591, %v1773
        %1775 = vmatmul.bf16.gmra.mxu0 %v1725
        %v1776 = vpop.f32.mrf.mxu0
        %v1777 = vadd.f32 %v1594, %v1776
        %v1778 = vpop.f32.mrf.mxu0
        %1779 = vdwg.mxu0
        %v1780 = vld [vmem:[#allocation2 + $0x8] sm:$0xf]
        %v1781 = vld [vmem:[#allocation2 + $0xc] sm:$0xf]
        %v1782 = vld [vmem:[#allocation2 + $0x10] sm:$0xf]
        %v1783 = vld [vmem:[#allocation2 + $0x14] sm:$0xf]
        %v1784 = vld [vmem:[#allocation2 + $0x18] sm:$0xf]
        %v1785 = vld [vmem:[#allocation2 + $0x1c] sm:$0xf]
        %v1786 = vld [vmem:[#allocation2 + $0x20] sm:$0xf]
        %v1787 = vld [vmem:[#allocation2 + $0x24] sm:$0xf]
        %v1788 = vld [vmem:[#allocation2 + $0x28] sm:$0xf]
        %v1789 = vld [vmem:[#allocation2 + $0x2c] sm:$0xf]
        %v1790 = vld [vmem:[#allocation2 + $0x30] sm:$0xf]
        %v1791 = vld [vmem:[#allocation2 + $0x34] sm:$0xf]
        %v1792 = vld [vmem:[#allocation2 + $0x38] sm:$0xf]
        %v1793 = vld [vmem:[#allocation2 + $0x3c] sm:$0xf]
        %v1794 = vld [vmem:[#allocation2 + $0x40] sm:$0xf]
        %v1795 = vld [vmem:[#allocation2 + $0x44] sm:$0xf]
        %v1796 = vld [vmem:[#allocation2 + $0x48] sm:$0xf]
        %v1797 = vld [vmem:[#allocation2 + $0x4c] sm:$0x1]
        %s1798 = scalar_lea.vmem %s6, 32
        %v1799 = vld [vmem:[%s1798] sm:$0xf]
        %v1800 = vld [vmem:[%s1798 + $0x4] sm:$0xf]
        %v1801 = vld [vmem:[%s1798 + $0x8] sm:$0xf]
        %v1802 = vld [vmem:[%s1798 + $0xc] sm:$0xf]
        %v1821 = vunpack.c.l.b16 %v1780
        %v1822 = vunpack.c.l.b16 %v1781
        %v1823 = vunpack.c.l.b16 %v1782
        %v1824 = vunpack.c.l.b16 %v1783
        %v1825 = vunpack.c.l.b16 %v1784
        %v1826 = vunpack.c.l.b16 %v1785
        %v1827 = vunpack.c.l.b16 %v1786
        %v1828 = vunpack.c.l.b16 %v1787
        %v1829 = vunpack.c.l.b16 %v1788
        %v1830 = vunpack.c.l.b16 %v1789
        %v1831 = vunpack.c.l.b16 %v1790
        %v1832 = vunpack.c.l.b16 %v1791
        %v1833 = vunpack.c.l.b16 %v1792
        %v1834 = vunpack.c.l.b16 %v1793
        %v1835 = vunpack.c.l.b16 %v1794
        %v1836 = vunpack.c.l.b16 %v1795
        %v1837 = vunpack.c.l.b16 %v1796
        %v1838 = vunpack.c.l.b16 %v1797
        %v1839 = vpack.c.b16 %v1822, %v1821
        %v1840 = vpack.c.b16 %v1824, %v1823
        %v1841 = vpack.c.b16 %v1826, %v1825
        %v1842 = vpack.c.b16 %v1828, %v1827
        %v1843 = vpack.c.b16 %v1830, %v1829
        %v1844 = vpack.c.b16 %v1832, %v1831
        %v1845 = vpack.c.b16 %v1834, %v1833
        %v1846 = vpack.c.b16 %v1836, %v1835
        %v1847 = vpack.c.b16 %v1838, %v1837
        %v1849 = vshrl.u32 %v1839, 16
        %v1851 = vshll.u32 %v1839, 16
        %v1853 = vrot.slane %v1851, 1
        %v1854 = vor.u32 %v1849, %v1853
        %v1856 = vshll.u32 %v1840, 16
        %v1858 = vrot.slane %v1856, 1
        %v1859 = vsel %vm1170, %v1854, %v1858
        %v1860 = vshrl.u32 %v1840, 16
        %v1862 = vor.u32 %v1860, %v1858
        %v1864 = vshll.u32 %v1841, 16
        %v1866 = vrot.slane %v1864, 1
        %v1867 = vsel %vm1170, %v1862, %v1866
        %v1868 = vshrl.u32 %v1841, 16
        %v1870 = vor.u32 %v1868, %v1866
        %v1872 = vshll.u32 %v1842, 16
        %v1874 = vrot.slane %v1872, 1
        %v1875 = vsel %vm1170, %v1870, %v1874
        %v1876 = vshrl.u32 %v1842, 16
        %v1878 = vor.u32 %v1876, %v1874
        %v1880 = vshll.u32 %v1843, 16
        %v1882 = vrot.slane %v1880, 1
        %v1883 = vsel %vm1170, %v1878, %v1882
        %v1884 = vshrl.u32 %v1843, 16
        %v1886 = vor.u32 %v1884, %v1882
        %v1888 = vshll.u32 %v1844, 16
        %v1890 = vrot.slane %v1888, 1
        %v1891 = vsel %vm1170, %v1886, %v1890
        %v1892 = vshrl.u32 %v1844, 16
        %v1894 = vor.u32 %v1892, %v1890
        %v1896 = vshll.u32 %v1845, 16
        %v1898 = vrot.slane %v1896, 1
        %v1899 = vsel %vm1170, %v1894, %v1898
        %v1900 = vshrl.u32 %v1845, 16
        %v1902 = vor.u32 %v1900, %v1898
        %v1904 = vshll.u32 %v1846, 16
        %v1906 = vrot.slane %v1904, 1
        %v1907 = vsel %vm1170, %v1902, %v1906
        %v1908 = vshrl.u32 %v1846, 16
        %v1910 = vor.u32 %v1908, %v1906
        %v1912 = vshll.u32 %v1847, 16
        %v1914 = vrot.slane %v1912, 1
        %v1915 = vsel %vm1170, %v1910, %v1914
        %v1916 = vshrl.u32 %v1847, 16
        %v1918 = vor.u32 %v1916, %v1914
        %v1923 = vunpack.c.l.b16 %v1799
        %v1924 = vunpack.c.l.b16 %v1800
        %v1925 = vunpack.c.l.b16 %v1801
        %v1926 = vunpack.c.l.b16 %v1802
        %v1927 = vpack.c.b16 %v1924, %v1923
        %v1928 = vpack.c.b16 %v1926, %v1925
        %v1932 = vsel %vm1516, %v1859, 0
        %v1935 = vsel %vm1516, %v1867, 0
        %v1938 = vsel %vm1516, %v1875, 0
        %v1941 = vsel %vm1516, %v1883, 0
        %v1944 = vsel %vm1516, %v1891, 0
        %v1947 = vsel %vm1516, %v1899, 0
        %v1950 = vsel %vm1516, %v1907, 0
        %v1953 = vsel %vm1516, %v1915, 0
        %v1956 = vsel %vm1516, %v1918, 0
        %1958 = vmatpush.bf16.msra.mxu0 0
        %1959 = vmatpush.bf16.msra.mxu0 0
        %1960 = vmatpush.bf16.msra.mxu0 0
        %1961 = vmatpush.bf16.msra.mxu0 0
        %1962 = vmatpush.bf16.msra.mxu0 0
        %1963 = vmatpush.bf16.msra.mxu0 0
        %1964 = vmatpush.bf16.msra.mxu0 %v1928
        %1965 = vmatpush.bf16.msra.mxu0 %v1927
        %1966 = vmatmul.bf16.gmra.mxu0 %v1932
        %v1967 = vpop.f32.mrf.mxu0
        %v1968 = vadd.f32 0.0, %v1967
        %v1969 = vpop.f32.mrf.mxu0
        %v1970 = vadd.f32 0.0, %v1969
        %1971 = vmatmul.bf16.gmra.mxu0 %v1935
        %v1972 = vpop.f32.mrf.mxu0
        %v1973 = vadd.f32 0.0, %v1972
        %v1974 = vpop.f32.mrf.mxu0
        %v1975 = vadd.f32 0.0, %v1974
        %1976 = vmatmul.bf16.gmra.mxu0 %v1938
        %v1977 = vpop.f32.mrf.mxu0
        %v1978 = vadd.f32 0.0, %v1977
        %v1979 = vpop.f32.mrf.mxu0
        %v1980 = vadd.f32 0.0, %v1979
        %1981 = vmatmul.bf16.gmra.mxu0 %v1941
        %v1982 = vpop.f32.mrf.mxu0
        %v1983 = vadd.f32 0.0, %v1982
        %v1984 = vpop.f32.mrf.mxu0
        %v1985 = vadd.f32 0.0, %v1984
        %1986 = vmatmul.bf16.gmra.mxu0 %v1944
        %v1987 = vpop.f32.mrf.mxu0
        %v1988 = vadd.f32 0.0, %v1987
        %v1989 = vpop.f32.mrf.mxu0
        %v1990 = vadd.f32 0.0, %v1989
        %1991 = vmatmul.bf16.gmra.mxu0 %v1947
        %v1992 = vpop.f32.mrf.mxu0
        %v1993 = vadd.f32 0.0, %v1992
        %v1994 = vpop.f32.mrf.mxu0
        %v1995 = vadd.f32 0.0, %v1994
        %1996 = vmatmul.bf16.gmra.mxu0 %v1950
        %v1997 = vpop.f32.mrf.mxu0
        %v1998 = vadd.f32 0.0, %v1997
        %v1999 = vpop.f32.mrf.mxu0
        %v2000 = vadd.f32 0.0, %v1999
        %2001 = vmatmul.bf16.gmra.mxu0 %v1953
        %v2002 = vpop.f32.mrf.mxu0
        %v2003 = vadd.f32 0.0, %v2002
        %v2004 = vpop.f32.mrf.mxu0
        %v2005 = vadd.f32 0.0, %v2004
        %2006 = vmatmul.bf16.gmra.mxu0 %v1956
        %v2007 = vpop.f32.mrf.mxu0
        %v2008 = vadd.f32 0.0, %v2007
        %v2009 = vpop.f32.mrf.mxu0
        %2010 = vdwg.mxu0
        %v2011 = vadd.f32 %v1737, %v1968
        %v2012 = vadd.f32 %v1739, %v1970
        %v2013 = vadd.f32 %v1742, %v1973
        %v2014 = vadd.f32 %v1744, %v1975
        %v2015 = vadd.f32 %v1747, %v1978
        %v2016 = vadd.f32 %v1749, %v1980
        %v2017 = vadd.f32 %v1752, %v1983
        %v2018 = vadd.f32 %v1754, %v1985
        %v2019 = vadd.f32 %v1757, %v1988
        %v2020 = vadd.f32 %v1759, %v1990
        %v2021 = vadd.f32 %v1762, %v1993
        %v2022 = vadd.f32 %v1764, %v1995
        %v2023 = vadd.f32 %v1767, %v1998
        %v2024 = vadd.f32 %v1769, %v2000
        %v2025 = vadd.f32 %v1772, %v2003
        %v2026 = vadd.f32 %v1774, %v2005
        %v2027 = vadd.f32 %v1777, %v2008
        %v2028 = vld [vmem:[%s7] sm:$0x1]
        %v2030 = vperm.slane %v2028, 0
        %v2032 = vadd.f32 %v2011, %v2030
        %v2033 = vadd.f32 %v2012, %v2030
        %v2034 = vadd.f32 %v2013, %v2030
        %v2035 = vadd.f32 %v2014, %v2030
        %v2036 = vadd.f32 %v2015, %v2030
        %v2037 = vadd.f32 %v2016, %v2030
        %v2038 = vadd.f32 %v2017, %v2030
        %v2039 = vadd.f32 %v2018, %v2030
        %v2040 = vadd.f32 %v2019, %v2030
        %v2041 = vadd.f32 %v2020, %v2030
        %v2042 = vadd.f32 %v2021, %v2030
        %v2043 = vadd.f32 %v2022, %v2030
        %v2044 = vadd.f32 %v2023, %v2030
        %v2045 = vadd.f32 %v2024, %v2030
        %v2046 = vadd.f32 %v2025, %v2030
        %v2047 = vadd.f32 %v2026, %v2030
        %v2048 = vadd.f32 %v2027, %v2030
        %v2049 = vadd.f32 %v2032, %v818
        %v2050 = vadd.f32 %v2033, %v820
        %v2051 = vadd.f32 %v2034, %v823
        %v2052 = vadd.f32 %v2035, %v825
        %v2053 = vadd.f32 %v2036, %v828
        %v2054 = vadd.f32 %v2037, %v830
        %v2055 = vadd.f32 %v2038, %v833
        %v2056 = vadd.f32 %v2039, %v835
        %v2057 = vadd.f32 %v2040, %v838
        %v2058 = vadd.f32 %v2041, %v840
        %v2059 = vadd.f32 %v2042, %v843
        %v2060 = vadd.f32 %v2043, %v845
        %v2061 = vadd.f32 %v2044, %v848
        %v2062 = vadd.f32 %v2045, %v850
        %v2063 = vadd.f32 %v2046, %v853
        %v2064 = vadd.f32 %v2047, %v855
        %v2065 = vadd.f32 %v2048, %v858
        %v2066 = vmax.f32 %v2049, 0.0
        %v2067 = vmax.f32 %v2050, 0.0
        %v2068 = vmax.f32 %v2051, 0.0
        %v2069 = vmax.f32 %v2052, 0.0
        %v2070 = vmax.f32 %v2053, 0.0
        %v2071 = vmax.f32 %v2054, 0.0
        %v2072 = vmax.f32 %v2055, 0.0
        %v2073 = vmax.f32 %v2056, 0.0
        %v2074 = vmax.f32 %v2057, 0.0
        %v2075 = vmax.f32 %v2058, 0.0
        %v2076 = vmax.f32 %v2059, 0.0
        %v2077 = vmax.f32 %v2060, 0.0
        %v2078 = vmax.f32 %v2061, 0.0
        %v2079 = vmax.f32 %v2062, 0.0
        %v2080 = vmax.f32 %v2063, 0.0
        %v2081 = vmax.f32 %v2064, 0.0
        %v2082 = vmax.f32 %v2065, 0.0
        %v2083 = vmul.f32 %v2066, %v603
        %v2084 = vmul.f32 %v2067, %v604
        %v2085 = vmul.f32 %v2068, %v605
        %v2086 = vmul.f32 %v2069, %v606
        %v2087 = vmul.f32 %v2070, %v607
        %v2088 = vmul.f32 %v2071, %v608
        %v2089 = vmul.f32 %v2072, %v609
        %v2090 = vmul.f32 %v2073, %v610
        %v2091 = vmul.f32 %v2074, %v611
        %v2092 = vmul.f32 %v2075, %v612
        %v2093 = vmul.f32 %v2076, %v613
        %v2094 = vmul.f32 %v2077, %v614
        %v2095 = vmul.f32 %v2078, %v615
        %v2096 = vmul.f32 %v2079, %v616
        %v2097 = vmul.f32 %v2080, %v617
        %v2098 = vmul.f32 %v2081, %v618
        %v2099 = vmul.f32 %v2082, %v619
        %v2100 = vpack.c.bf16 %v2083, %v2083
        %v2101 = vpack.c.bf16 %v2084, %v2084
        %v2102 = vpack.c.bf16 %v2085, %v2085
        %v2103 = vpack.c.bf16 %v2086, %v2086
        %v2104 = vpack.c.bf16 %v2087, %v2087
        %v2105 = vpack.c.bf16 %v2088, %v2088
        %v2106 = vpack.c.bf16 %v2089, %v2089
        %v2107 = vpack.c.bf16 %v2090, %v2090
        %v2108 = vpack.c.bf16 %v2091, %v2091
        %v2109 = vpack.c.bf16 %v2092, %v2092
        %v2110 = vpack.c.bf16 %v2093, %v2093
        %v2111 = vpack.c.bf16 %v2094, %v2094
        %v2112 = vpack.c.bf16 %v2095, %v2095
        %v2113 = vpack.c.bf16 %v2096, %v2096
        %v2114 = vpack.c.bf16 %v2097, %v2097
        %v2115 = vpack.c.bf16 %v2098, %v2098
        %v2116 = vpack.c.bf16 %v2099, %v2099
        %2117 = vst.msk [vmem:[#allocation2 + $0x8] sm:$0xf] %vm466, %v2100
        %2118 = vst.msk [vmem:[#allocation2 + $0xc] sm:$0xf] %vm466, %v2101
        %2119 = vst.msk [vmem:[#allocation2 + $0x10] sm:$0xf] %vm466, %v2102
        %2120 = vst.msk [vmem:[#allocation2 + $0x14] sm:$0xf] %vm466, %v2103
        %2121 = vst.msk [vmem:[#allocation2 + $0x18] sm:$0xf] %vm466, %v2104
        %2122 = vst.msk [vmem:[#allocation2 + $0x1c] sm:$0xf] %vm466, %v2105
        %2123 = vst.msk [vmem:[#allocation2 + $0x20] sm:$0xf] %vm466, %v2106
        %2124 = vst.msk [vmem:[#allocation2 + $0x24] sm:$0xf] %vm466, %v2107
        %2125 = vst.msk [vmem:[#allocation2 + $0x28] sm:$0xf] %vm466, %v2108
        %2126 = vst.msk [vmem:[#allocation2 + $0x2c] sm:$0xf] %vm466, %v2109
        %2127 = vst.msk [vmem:[#allocation2 + $0x30] sm:$0xf] %vm466, %v2110
        %2128 = vst.msk [vmem:[#allocation2 + $0x34] sm:$0xf] %vm466, %v2111
        %2129 = vst.msk [vmem:[#allocation2 + $0x38] sm:$0xf] %vm466, %v2112
        %2130 = vst.msk [vmem:[#allocation2 + $0x3c] sm:$0xf] %vm466, %v2113
        %2131 = vst.msk [vmem:[#allocation2 + $0x40] sm:$0xf] %vm466, %v2114
        %2132 = vst.msk [vmem:[#allocation2 + $0x44] sm:$0xf] %vm466, %v2115
        %2133 = vst.msk [vmem:[#allocation2 + $0x48] sm:$0xf] %vm466, %v2116
        %v2134 = vld [vmem:[#allocation2 + $0x8] sm:$0xf]
        %v2135 = vld [vmem:[#allocation2 + $0xc] sm:$0xf]
        %v2136 = vld [vmem:[#allocation2 + $0x10] sm:$0xf]
        %v2137 = vld [vmem:[#allocation2 + $0x14] sm:$0xf]
        %v2138 = vld [vmem:[#allocation2 + $0x18] sm:$0xf]
        %v2139 = vld [vmem:[#allocation2 + $0x1c] sm:$0xf]
        %v2140 = vld [vmem:[#allocation2 + $0x20] sm:$0xf]
        %v2141 = vld [vmem:[#allocation2 + $0x24] sm:$0xf]
        %v2142 = vld [vmem:[#allocation2 + $0x28] sm:$0xf]
        %v2143 = vld [vmem:[#allocation2 + $0x2c] sm:$0xf]
        %v2144 = vld [vmem:[#allocation2 + $0x30] sm:$0xf]
        %v2145 = vld [vmem:[#allocation2 + $0x34] sm:$0xf]
        %v2146 = vld [vmem:[#allocation2 + $0x38] sm:$0xf]
        %v2147 = vld [vmem:[#allocation2 + $0x3c] sm:$0xf]
        %v2148 = vld [vmem:[#allocation2 + $0x40] sm:$0xf]
        %v2149 = vld [vmem:[#allocation2 + $0x44] sm:$0xf]
        %v2150 = vld [vmem:[#allocation2 + $0x48] sm:$0xf]
        %v2151 = vld [vmem:[%s8] sm:$0xf]
        %v2152 = vld [vmem:[%s8 + $0x4] sm:$0xf]
        %v2153 = vld [vmem:[%s8 + $0x8] sm:$0xf]
        %v2154 = vld [vmem:[%s8 + $0xc] sm:$0xf]
        %v2155 = vld [vmem:[%s9] sm:$0x1]
        %v2157 = vperm.slane %v2155, 0
        %v2176 = vunpack.c.l.b16 %v2134
        %v2177 = vunpack.c.l.b16 %v2135
        %v2178 = vunpack.c.l.b16 %v2136
        %v2179 = vunpack.c.l.b16 %v2137
        %v2180 = vunpack.c.l.b16 %v2138
        %v2181 = vunpack.c.l.b16 %v2139
        %v2182 = vunpack.c.l.b16 %v2140
        %v2183 = vunpack.c.l.b16 %v2141
        %v2184 = vunpack.c.l.b16 %v2142
        %v2185 = vunpack.c.l.b16 %v2143
        %v2186 = vunpack.c.l.b16 %v2144
        %v2187 = vunpack.c.l.b16 %v2145
        %v2188 = vunpack.c.l.b16 %v2146
        %v2189 = vunpack.c.l.b16 %v2147
        %v2190 = vunpack.c.l.b16 %v2148
        %v2191 = vunpack.c.l.b16 %v2149
        %v2192 = vunpack.c.l.b16 %v2150
        %v2193 = vpack.c.b16 %v2177, %v2176
        %v2194 = vpack.c.b16 %v2179, %v2178
        %v2195 = vpack.c.b16 %v2181, %v2180
        %v2196 = vpack.c.b16 %v2183, %v2182
        %v2197 = vpack.c.b16 %v2185, %v2184
        %v2198 = vpack.c.b16 %v2187, %v2186
        %v2199 = vpack.c.b16 %v2189, %v2188
        %v2200 = vpack.c.b16 %v2191, %v2190
        %v2201 = vpack.c.b16 %v2192, %v2192
        %v2206 = vunpack.c.l.b16 %v2151
        %v2207 = vunpack.c.l.b16 %v2152
        %v2208 = vunpack.c.l.b16 %v2153
        %v2209 = vunpack.c.l.b16 %v2154
        %v2210 = vpack.c.b16 %v2207, %v2206
        %v2211 = vpack.c.b16 %v2209, %v2208
        %v2215 = vsel %vm1516, %v2193, 0
        %v2218 = vsel %vm1516, %v2194, 0
        %v2221 = vsel %vm1516, %v2195, 0
        %v2224 = vsel %vm1516, %v2196, 0
        %v2227 = vsel %vm1516, %v2197, 0
        %v2230 = vsel %vm1516, %v2198, 0
        %v2233 = vsel %vm1516, %v2199, 0
        %v2236 = vsel %vm1516, %v2200, 0
        %v2239 = vsel %vm1516, %v2201, 0
        %2241 = vmatpush.bf16.msra.mxu0 0
        %2242 = vmatpush.bf16.msra.mxu0 0
        %2243 = vmatpush.bf16.msra.mxu0 0
        %2244 = vmatpush.bf16.msra.mxu0 0
        %2245 = vmatpush.bf16.msra.mxu0 0
        %2246 = vmatpush.bf16.msra.mxu0 0
        %2247 = vmatpush.bf16.msra.mxu0 %v2211
        %2248 = vmatpush.bf16.msra.mxu0 %v2210
        %2249 = vmatmul.bf16.gmra.mxu0 %v2215
        %v2250 = vpop.f32.mrf.mxu0
        %v2251 = vadd.f32 %v2157, %v2250
        %v2252 = vpop.f32.mrf.mxu0
        %v2253 = vadd.f32 %v2157, %v2252
        %2254 = vmatmul.bf16.gmra.mxu0 %v2218
        %v2255 = vpop.f32.mrf.mxu0
        %v2256 = vadd.f32 %v2157, %v2255
        %v2257 = vpop.f32.mrf.mxu0
        %v2258 = vadd.f32 %v2157, %v2257
        %2259 = vmatmul.bf16.gmra.mxu0 %v2221
        %v2260 = vpop.f32.mrf.mxu0
        %v2261 = vadd.f32 %v2157, %v2260
        %v2262 = vpop.f32.mrf.mxu0
        %v2263 = vadd.f32 %v2157, %v2262
        %2264 = vmatmul.bf16.gmra.mxu0 %v2224
        %v2265 = vpop.f32.mrf.mxu0
        %v2266 = vadd.f32 %v2157, %v2265
        %v2267 = vpop.f32.mrf.mxu0
        %v2268 = vadd.f32 %v2157, %v2267
        %2269 = vmatmul.bf16.gmra.mxu0 %v2227
        %v2270 = vpop.f32.mrf.mxu0
        %v2271 = vadd.f32 %v2157, %v2270
        %v2272 = vpop.f32.mrf.mxu0
        %v2273 = vadd.f32 %v2157, %v2272
        %2274 = vmatmul.bf16.gmra.mxu0 %v2230
        %v2275 = vpop.f32.mrf.mxu0
        %v2276 = vadd.f32 %v2157, %v2275
        %v2277 = vpop.f32.mrf.mxu0
        %v2278 = vadd.f32 %v2157, %v2277
        %2279 = vmatmul.bf16.gmra.mxu0 %v2233
        %v2280 = vpop.f32.mrf.mxu0
        %v2281 = vadd.f32 %v2157, %v2280
        %v2282 = vpop.f32.mrf.mxu0
        %v2283 = vadd.f32 %v2157, %v2282
        %2284 = vmatmul.bf16.gmra.mxu0 %v2236
        %v2285 = vpop.f32.mrf.mxu0
        %v2286 = vadd.f32 %v2157, %v2285
        %v2287 = vpop.f32.mrf.mxu0
        %v2288 = vadd.f32 %v2157, %v2287
        %2289 = vmatmul.bf16.gmra.mxu0 %v2239
        %v2290 = vpop.f32.mrf.mxu0
        %v2291 = vadd.f32 %v2157, %v2290
        %v2292 = vpop.f32.mrf.mxu0
        %2293 = vdwg.mxu0
        %v2294 = vld [vmem:[#allocation2 + $0x4] sm:$0x8]
        %v2295 = vld [vmem:[%s10] sm:$0xf]
        %v2296 = vld [vmem:[%s10 + $0x4] sm:$0xf]
        %v2297 = vld [vmem:[%s10 + $0x8] sm:$0xf]
        %v2298 = vld [vmem:[%s10 + $0xc] sm:$0xf]
        %s2299 = scalar_lea.vmem %s10, 16
        %v2300 = vld [vmem:[%s2299] sm:$0xf]
        %v2301 = vld [vmem:[%s2299 + $0x4] sm:$0xf]
        %v2302 = vld [vmem:[%s2299 + $0x8] sm:$0xf]
        %v2303 = vld [vmem:[%s2299 + $0xc] sm:$0xf]
        %v2308 = vunpack.c.l.b16 %v2300
        %v2309 = vunpack.c.l.b16 %v2301
        %v2310 = vunpack.c.l.b16 %v2302
        %v2311 = vunpack.c.l.b16 %v2303
        %v2312 = vpack.c.b16 %v2309, %v2308
        %v2313 = vpack.c.b16 %v2311, %v2310
        %2316 = vmatpush.bf16.msra.mxu0 0
        %2317 = vmatpush.bf16.msra.mxu0 0
        %2318 = vmatpush.bf16.msra.mxu0 0
        %2319 = vmatpush.bf16.msra.mxu0 0
        %2320 = vmatpush.bf16.msra.mxu0 0
        %2321 = vmatpush.bf16.msra.mxu0 0
        %2322 = vmatpush.bf16.msra.mxu0 %v2313
        %2323 = vmatpush.bf16.msra.mxu0 %v2312
        %2324 = vmatmul.bf16.gmra.mxu0 %v2215
        %v2325 = vpop.f32.mrf.mxu0
        %v2326 = vadd.f32 0.0, %v2325
        %v2327 = vpop.f32.mrf.mxu0
        %v2328 = vadd.f32 0.0, %v2327
        %2329 = vmatmul.bf16.gmra.mxu0 %v2218
        %v2330 = vpop.f32.mrf.mxu0
        %v2331 = vadd.f32 0.0, %v2330
        %v2332 = vpop.f32.mrf.mxu0
        %v2333 = vadd.f32 0.0, %v2332
        %2334 = vmatmul.bf16.gmra.mxu0 %v2221
        %v2335 = vpop.f32.mrf.mxu0
        %v2336 = vadd.f32 0.0, %v2335
        %v2337 = vpop.f32.mrf.mxu0
        %v2338 = vadd.f32 0.0, %v2337
        %2339 = vmatmul.bf16.gmra.mxu0 %v2224
        %v2340 = vpop.f32.mrf.mxu0
        %v2341 = vadd.f32 0.0, %v2340
        %v2342 = vpop.f32.mrf.mxu0
        %v2343 = vadd.f32 0.0, %v2342
        %2344 = vmatmul.bf16.gmra.mxu0 %v2227
        %v2345 = vpop.f32.mrf.mxu0
        %v2346 = vadd.f32 0.0, %v2345
        %v2347 = vpop.f32.mrf.mxu0
        %v2348 = vadd.f32 0.0, %v2347
        %2349 = vmatmul.bf16.gmra.mxu0 %v2230
        %v2350 = vpop.f32.mrf.mxu0
        %v2351 = vadd.f32 0.0, %v2350
        %v2352 = vpop.f32.mrf.mxu0
        %v2353 = vadd.f32 0.0, %v2352
        %2354 = vmatmul.bf16.gmra.mxu0 %v2233
        %v2355 = vpop.f32.mrf.mxu0
        %v2356 = vadd.f32 0.0, %v2355
        %v2357 = vpop.f32.mrf.mxu0
        %v2358 = vadd.f32 0.0, %v2357
        %2359 = vmatmul.bf16.gmra.mxu0 %v2236
        %v2360 = vpop.f32.mrf.mxu0
        %v2361 = vadd.f32 0.0, %v2360
        %v2362 = vpop.f32.mrf.mxu0
        %v2363 = vadd.f32 0.0, %v2362
        %2364 = vmatmul.bf16.gmra.mxu0 %v2239
        %v2365 = vpop.f32.mrf.mxu0
        %v2366 = vadd.f32 0.0, %v2365
        %v2367 = vpop.f32.mrf.mxu0
        %2368 = vdwg.mxu0
        %v2370 = vunpack.c.l.b16 %v2294
        %v2371 = vpack.c.b16 %v2176, %v2370
        %v2372 = vpack.c.b16 %v2178, %v2177
        %v2373 = vpack.c.b16 %v2180, %v2179
        %v2374 = vpack.c.b16 %v2182, %v2181
        %v2375 = vpack.c.b16 %v2184, %v2183
        %v2376 = vpack.c.b16 %v2186, %v2185
        %v2377 = vpack.c.b16 %v2188, %v2187
        %v2378 = vpack.c.b16 %v2190, %v2189
        %v2379 = vpack.c.b16 %v2192, %v2191
        %v2381 = vshrl.u32 %v2371, 16
        %v2383 = vrot.slane %v2381, 3
        %v2384 = vshll.u32 %v2371, 16
        %v2386 = vrot.slane %v2384, 4
        %v2387 = vor.u32 %v2383, %v2386
        %v2389 = vshrl.u32 %v2372, 16
        %v2391 = vrot.slane %v2389, 3
        %v2392 = vshll.u32 %v2372, 16
        %v2394 = vrot.slane %v2392, 4
        %v2395 = vor.u32 %v2391, %v2394
        %v2396 = vsel %vm937, %v2387, %v2395
        %v2398 = vshrl.u32 %v2373, 16
        %v2400 = vrot.slane %v2398, 3
        %v2401 = vshll.u32 %v2373, 16
        %v2403 = vrot.slane %v2401, 4
        %v2404 = vor.u32 %v2400, %v2403
        %v2405 = vsel %vm937, %v2395, %v2404
        %v2407 = vshrl.u32 %v2374, 16
        %v2409 = vrot.slane %v2407, 3
        %v2410 = vshll.u32 %v2374, 16
        %v2412 = vrot.slane %v2410, 4
        %v2413 = vor.u32 %v2409, %v2412
        %v2414 = vsel %vm937, %v2404, %v2413
        %v2416 = vshrl.u32 %v2375, 16
        %v2418 = vrot.slane %v2416, 3
        %v2419 = vshll.u32 %v2375, 16
        %v2421 = vrot.slane %v2419, 4
        %v2422 = vor.u32 %v2418, %v2421
        %v2423 = vsel %vm937, %v2413, %v2422
        %v2425 = vshrl.u32 %v2376, 16
        %v2427 = vrot.slane %v2425, 3
        %v2428 = vshll.u32 %v2376, 16
        %v2430 = vrot.slane %v2428, 4
        %v2431 = vor.u32 %v2427, %v2430
        %v2432 = vsel %vm937, %v2422, %v2431
        %v2434 = vshrl.u32 %v2377, 16
        %v2436 = vrot.slane %v2434, 3
        %v2437 = vshll.u32 %v2377, 16
        %v2439 = vrot.slane %v2437, 4
        %v2440 = vor.u32 %v2436, %v2439
        %v2441 = vsel %vm937, %v2431, %v2440
        %v2443 = vshrl.u32 %v2378, 16
        %v2445 = vrot.slane %v2443, 3
        %v2446 = vshll.u32 %v2378, 16
        %v2448 = vrot.slane %v2446, 4
        %v2449 = vor.u32 %v2445, %v2448
        %v2450 = vsel %vm937, %v2440, %v2449
        %v2452 = vshrl.u32 %v2379, 16
        %v2454 = vrot.slane %v2452, 3
        %v2455 = vshll.u32 %v2379, 16
        %v2457 = vrot.slane %v2455, 4
        %v2458 = vor.u32 %v2454, %v2457
        %v2459 = vsel %vm937, %v2449, %v2458
        %v2464 = vunpack.c.l.b16 %v2295
        %v2465 = vunpack.c.l.b16 %v2296
        %v2466 = vunpack.c.l.b16 %v2297
        %v2467 = vunpack.c.l.b16 %v2298
        %v2468 = vpack.c.b16 %v2465, %v2464
        %v2469 = vpack.c.b16 %v2467, %v2466
        %v2473 = vsel %vm1516, %v2396, 0
        %v2476 = vsel %vm1516, %v2405, 0
        %v2479 = vsel %vm1516, %v2414, 0
        %v2482 = vsel %vm1516, %v2423, 0
        %v2485 = vsel %vm1516, %v2432, 0
        %v2488 = vsel %vm1516, %v2441, 0
        %v2491 = vsel %vm1516, %v2450, 0
        %v2494 = vsel %vm1516, %v2459, 0
        %v2497 = vsel %vm1516, %v2458, 0
        %2499 = vmatpush.bf16.msra.mxu0 0
        %2500 = vmatpush.bf16.msra.mxu0 0
        %2501 = vmatpush.bf16.msra.mxu0 0
        %2502 = vmatpush.bf16.msra.mxu0 0
        %2503 = vmatpush.bf16.msra.mxu0 0
        %2504 = vmatpush.bf16.msra.mxu0 0
        %2505 = vmatpush.bf16.msra.mxu0 %v2469
        %2506 = vmatpush.bf16.msra.mxu0 %v2468
        %2507 = vmatmul.bf16.gmra.mxu0 %v2473
        %v2508 = vpop.f32.mrf.mxu0
        %v2509 = vadd.f32 %v2326, %v2508
        %v2510 = vpop.f32.mrf.mxu0
        %v2511 = vadd.f32 %v2328, %v2510
        %2512 = vmatmul.bf16.gmra.mxu0 %v2476
        %v2513 = vpop.f32.mrf.mxu0
        %v2514 = vadd.f32 %v2331, %v2513
        %v2515 = vpop.f32.mrf.mxu0
        %v2516 = vadd.f32 %v2333, %v2515
        %2517 = vmatmul.bf16.gmra.mxu0 %v2479
        %v2518 = vpop.f32.mrf.mxu0
        %v2519 = vadd.f32 %v2336, %v2518
        %v2520 = vpop.f32.mrf.mxu0
        %v2521 = vadd.f32 %v2338, %v2520
        %2522 = vmatmul.bf16.gmra.mxu0 %v2482
        %v2523 = vpop.f32.mrf.mxu0
        %v2524 = vadd.f32 %v2341, %v2523
        %v2525 = vpop.f32.mrf.mxu0
        %v2526 = vadd.f32 %v2343, %v2525
        %2527 = vmatmul.bf16.gmra.mxu0 %v2485
        %v2528 = vpop.f32.mrf.mxu0
        %v2529 = vadd.f32 %v2346, %v2528
        %v2530 = vpop.f32.mrf.mxu0
        %v2531 = vadd.f32 %v2348, %v2530
        %2532 = vmatmul.bf16.gmra.mxu0 %v2488
        %v2533 = vpop.f32.mrf.mxu0
        %v2534 = vadd.f32 %v2351, %v2533
        %v2535 = vpop.f32.mrf.mxu0
        %v2536 = vadd.f32 %v2353, %v2535
        %2537 = vmatmul.bf16.gmra.mxu0 %v2491
        %v2538 = vpop.f32.mrf.mxu0
        %v2539 = vadd.f32 %v2356, %v2538
        %v2540 = vpop.f32.mrf.mxu0
        %v2541 = vadd.f32 %v2358, %v2540
        %2542 = vmatmul.bf16.gmra.mxu0 %v2494
        %v2543 = vpop.f32.mrf.mxu0
        %v2544 = vadd.f32 %v2361, %v2543
        %v2545 = vpop.f32.mrf.mxu0
        %v2546 = vadd.f32 %v2363, %v2545
        %2547 = vmatmul.bf16.gmra.mxu0 %v2497
        %v2548 = vpop.f32.mrf.mxu0
        %v2549 = vadd.f32 %v2366, %v2548
        %v2550 = vpop.f32.mrf.mxu0
        %2551 = vdwg.mxu0
        %v2552 = vld [vmem:[#allocation2 + $0x8] sm:$0xf]
        %v2553 = vld [vmem:[#allocation2 + $0xc] sm:$0xf]
        %v2554 = vld [vmem:[#allocation2 + $0x10] sm:$0xf]
        %v2555 = vld [vmem:[#allocation2 + $0x14] sm:$0xf]
        %v2556 = vld [vmem:[#allocation2 + $0x18] sm:$0xf]
        %v2557 = vld [vmem:[#allocation2 + $0x1c] sm:$0xf]
        %v2558 = vld [vmem:[#allocation2 + $0x20] sm:$0xf]
        %v2559 = vld [vmem:[#allocation2 + $0x24] sm:$0xf]
        %v2560 = vld [vmem:[#allocation2 + $0x28] sm:$0xf]
        %v2561 = vld [vmem:[#allocation2 + $0x2c] sm:$0xf]
        %v2562 = vld [vmem:[#allocation2 + $0x30] sm:$0xf]
        %v2563 = vld [vmem:[#allocation2 + $0x34] sm:$0xf]
        %v2564 = vld [vmem:[#allocation2 + $0x38] sm:$0xf]
        %v2565 = vld [vmem:[#allocation2 + $0x3c] sm:$0xf]
        %v2566 = vld [vmem:[#allocation2 + $0x40] sm:$0xf]
        %v2567 = vld [vmem:[#allocation2 + $0x44] sm:$0xf]
        %v2568 = vld [vmem:[#allocation2 + $0x48] sm:$0xf]
        %v2569 = vld [vmem:[#allocation2 + $0x4c] sm:$0x1]
        %s2570 = scalar_lea.vmem %s10, 32
        %v2571 = vld [vmem:[%s2570] sm:$0xf]
        %v2572 = vld [vmem:[%s2570 + $0x4] sm:$0xf]
        %v2573 = vld [vmem:[%s2570 + $0x8] sm:$0xf]
        %v2574 = vld [vmem:[%s2570 + $0xc] sm:$0xf]
        %v2593 = vunpack.c.l.b16 %v2552
        %v2594 = vunpack.c.l.b16 %v2553
        %v2595 = vunpack.c.l.b16 %v2554
        %v2596 = vunpack.c.l.b16 %v2555
        %v2597 = vunpack.c.l.b16 %v2556
        %v2598 = vunpack.c.l.b16 %v2557
        %v2599 = vunpack.c.l.b16 %v2558
        %v2600 = vunpack.c.l.b16 %v2559
        %v2601 = vunpack.c.l.b16 %v2560
        %v2602 = vunpack.c.l.b16 %v2561
        %v2603 = vunpack.c.l.b16 %v2562
        %v2604 = vunpack.c.l.b16 %v2563
        %v2605 = vunpack.c.l.b16 %v2564
        %v2606 = vunpack.c.l.b16 %v2565
        %v2607 = vunpack.c.l.b16 %v2566
        %v2608 = vunpack.c.l.b16 %v2567
        %v2609 = vunpack.c.l.b16 %v2568
        %v2610 = vunpack.c.l.b16 %v2569
        %v2611 = vpack.c.b16 %v2594, %v2593
        %v2612 = vpack.c.b16 %v2596, %v2595
        %v2613 = vpack.c.b16 %v2598, %v2597
        %v2614 = vpack.c.b16 %v2600, %v2599
        %v2615 = vpack.c.b16 %v2602, %v2601
        %v2616 = vpack.c.b16 %v2604, %v2603
        %v2617 = vpack.c.b16 %v2606, %v2605
        %v2618 = vpack.c.b16 %v2608, %v2607
        %v2619 = vpack.c.b16 %v2610, %v2609
        %v2621 = vshrl.u32 %v2611, 16
        %v2623 = vshll.u32 %v2611, 16
        %v2625 = vrot.slane %v2623, 1
        %v2626 = vor.u32 %v2621, %v2625
        %v2628 = vshll.u32 %v2612, 16
        %v2630 = vrot.slane %v2628, 1
        %v2631 = vsel %vm1170, %v2626, %v2630
        %v2632 = vshrl.u32 %v2612, 16
        %v2634 = vor.u32 %v2632, %v2630
        %v2636 = vshll.u32 %v2613, 16
        %v2638 = vrot.slane %v2636, 1
        %v2639 = vsel %vm1170, %v2634, %v2638
        %v2640 = vshrl.u32 %v2613, 16
        %v2642 = vor.u32 %v2640, %v2638
        %v2644 = vshll.u32 %v2614, 16
        %v2646 = vrot.slane %v2644, 1
        %v2647 = vsel %vm1170, %v2642, %v2646
        %v2648 = vshrl.u32 %v2614, 16
        %v2650 = vor.u32 %v2648, %v2646
        %v2652 = vshll.u32 %v2615, 16
        %v2654 = vrot.slane %v2652, 1
        %v2655 = vsel %vm1170, %v2650, %v2654
        %v2656 = vshrl.u32 %v2615, 16
        %v2658 = vor.u32 %v2656, %v2654
        %v2660 = vshll.u32 %v2616, 16
        %v2662 = vrot.slane %v2660, 1
        %v2663 = vsel %vm1170, %v2658, %v2662
        %v2664 = vshrl.u32 %v2616, 16
        %v2666 = vor.u32 %v2664, %v2662
        %v2668 = vshll.u32 %v2617, 16
        %v2670 = vrot.slane %v2668, 1
        %v2671 = vsel %vm1170, %v2666, %v2670
        %v2672 = vshrl.u32 %v2617, 16
        %v2674 = vor.u32 %v2672, %v2670
        %v2676 = vshll.u32 %v2618, 16
        %v2678 = vrot.slane %v2676, 1
        %v2679 = vsel %vm1170, %v2674, %v2678
        %v2680 = vshrl.u32 %v2618, 16
        %v2682 = vor.u32 %v2680, %v2678
        %v2684 = vshll.u32 %v2619, 16
        %v2686 = vrot.slane %v2684, 1
        %v2687 = vsel %vm1170, %v2682, %v2686
        %v2688 = vshrl.u32 %v2619, 16
        %v2690 = vor.u32 %v2688, %v2686
        %v2695 = vunpack.c.l.b16 %v2571
        %v2696 = vunpack.c.l.b16 %v2572
        %v2697 = vunpack.c.l.b16 %v2573
        %v2698 = vunpack.c.l.b16 %v2574
        %v2699 = vpack.c.b16 %v2696, %v2695
        %v2700 = vpack.c.b16 %v2698, %v2697
        %v2704 = vsel %vm1516, %v2631, 0
        %v2707 = vsel %vm1516, %v2639, 0
        %v2710 = vsel %vm1516, %v2647, 0
        %v2713 = vsel %vm1516, %v2655, 0
        %v2716 = vsel %vm1516, %v2663, 0
        %v2719 = vsel %vm1516, %v2671, 0
        %v2722 = vsel %vm1516, %v2679, 0
        %v2725 = vsel %vm1516, %v2687, 0
        %v2728 = vsel %vm1516, %v2690, 0
        %2730 = vmatpush.bf16.msra.mxu0 0
        %2731 = vmatpush.bf16.msra.mxu0 0
        %2732 = vmatpush.bf16.msra.mxu0 0
        %2733 = vmatpush.bf16.msra.mxu0 0
        %2734 = vmatpush.bf16.msra.mxu0 0
        %2735 = vmatpush.bf16.msra.mxu0 0
        %2736 = vmatpush.bf16.msra.mxu0 %v2700
        %2737 = vmatpush.bf16.msra.mxu0 %v2699
        %2738 = vmatmul.bf16.gmra.mxu0 %v2704
        %v2739 = vpop.f32.mrf.mxu0
        %v2740 = vadd.f32 0.0, %v2739
        %v2741 = vpop.f32.mrf.mxu0
        %v2742 = vadd.f32 0.0, %v2741
        %2743 = vmatmul.bf16.gmra.mxu0 %v2707
        %v2744 = vpop.f32.mrf.mxu0
        %v2745 = vadd.f32 0.0, %v2744
        %v2746 = vpop.f32.mrf.mxu0
        %v2747 = vadd.f32 0.0, %v2746
        %2748 = vmatmul.bf16.gmra.mxu0 %v2710
        %v2749 = vpop.f32.mrf.mxu0
        %v2750 = vadd.f32 0.0, %v2749
        %v2751 = vpop.f32.mrf.mxu0
        %v2752 = vadd.f32 0.0, %v2751
        %2753 = vmatmul.bf16.gmra.mxu0 %v2713
        %v2754 = vpop.f32.mrf.mxu0
        %v2755 = vadd.f32 0.0, %v2754
        %v2756 = vpop.f32.mrf.mxu0
        %v2757 = vadd.f32 0.0, %v2756
        %2758 = vmatmul.bf16.gmra.mxu0 %v2716
        %v2759 = vpop.f32.mrf.mxu0
        %v2760 = vadd.f32 0.0, %v2759
        %v2761 = vpop.f32.mrf.mxu0
        %v2762 = vadd.f32 0.0, %v2761
        %2763 = vmatmul.bf16.gmra.mxu0 %v2719
        %v2764 = vpop.f32.mrf.mxu0
        %v2765 = vadd.f32 0.0, %v2764
        %v2766 = vpop.f32.mrf.mxu0
        %v2767 = vadd.f32 0.0, %v2766
        %2768 = vmatmul.bf16.gmra.mxu0 %v2722
        %v2769 = vpop.f32.mrf.mxu0
        %v2770 = vadd.f32 0.0, %v2769
        %v2771 = vpop.f32.mrf.mxu0
        %v2772 = vadd.f32 0.0, %v2771
        %2773 = vmatmul.bf16.gmra.mxu0 %v2725
        %v2774 = vpop.f32.mrf.mxu0
        %v2775 = vadd.f32 0.0, %v2774
        %v2776 = vpop.f32.mrf.mxu0
        %v2777 = vadd.f32 0.0, %v2776
        %2778 = vmatmul.bf16.gmra.mxu0 %v2728
        %v2779 = vpop.f32.mrf.mxu0
        %v2780 = vadd.f32 0.0, %v2779
        %v2781 = vpop.f32.mrf.mxu0
        %2782 = vdwg.mxu0
        %v2783 = vadd.f32 %v2509, %v2740
        %v2784 = vadd.f32 %v2511, %v2742
        %v2785 = vadd.f32 %v2514, %v2745
        %v2786 = vadd.f32 %v2516, %v2747
        %v2787 = vadd.f32 %v2519, %v2750
        %v2788 = vadd.f32 %v2521, %v2752
        %v2789 = vadd.f32 %v2524, %v2755
        %v2790 = vadd.f32 %v2526, %v2757
        %v2791 = vadd.f32 %v2529, %v2760
        %v2792 = vadd.f32 %v2531, %v2762
        %v2793 = vadd.f32 %v2534, %v2765
        %v2794 = vadd.f32 %v2536, %v2767
        %v2795 = vadd.f32 %v2539, %v2770
        %v2796 = vadd.f32 %v2541, %v2772
        %v2797 = vadd.f32 %v2544, %v2775
        %v2798 = vadd.f32 %v2546, %v2777
        %v2799 = vadd.f32 %v2549, %v2780
        %v2800 = vld [vmem:[%s11] sm:$0x1]
        %v2802 = vperm.slane %v2800, 0
        %v2804 = vadd.f32 %v2783, %v2802
        %v2805 = vadd.f32 %v2784, %v2802
        %v2806 = vadd.f32 %v2785, %v2802
        %v2807 = vadd.f32 %v2786, %v2802
        %v2808 = vadd.f32 %v2787, %v2802
        %v2809 = vadd.f32 %v2788, %v2802
        %v2810 = vadd.f32 %v2789, %v2802
        %v2811 = vadd.f32 %v2790, %v2802
        %v2812 = vadd.f32 %v2791, %v2802
        %v2813 = vadd.f32 %v2792, %v2802
        %v2814 = vadd.f32 %v2793, %v2802
        %v2815 = vadd.f32 %v2794, %v2802
        %v2816 = vadd.f32 %v2795, %v2802
        %v2817 = vadd.f32 %v2796, %v2802
        %v2818 = vadd.f32 %v2797, %v2802
        %v2819 = vadd.f32 %v2798, %v2802
        %v2820 = vadd.f32 %v2799, %v2802
        %v2821 = vmax.f32 %v2804, 0.0
        %v2822 = vmax.f32 %v2805, 0.0
        %v2823 = vmax.f32 %v2806, 0.0
        %v2824 = vmax.f32 %v2807, 0.0
        %v2825 = vmax.f32 %v2808, 0.0
        %v2826 = vmax.f32 %v2809, 0.0
        %v2827 = vmax.f32 %v2810, 0.0
        %v2828 = vmax.f32 %v2811, 0.0
        %v2829 = vmax.f32 %v2812, 0.0
        %v2830 = vmax.f32 %v2813, 0.0
        %v2831 = vmax.f32 %v2814, 0.0
        %v2832 = vmax.f32 %v2815, 0.0
        %v2833 = vmax.f32 %v2816, 0.0
        %v2834 = vmax.f32 %v2817, 0.0
        %v2835 = vmax.f32 %v2818, 0.0
        %v2836 = vmax.f32 %v2819, 0.0
        %v2837 = vmax.f32 %v2820, 0.0
        %v2838 = vmul.f32 %v2821, %v603
        %v2839 = vmul.f32 %v2822, %v604
        %v2840 = vmul.f32 %v2823, %v605
        %v2841 = vmul.f32 %v2824, %v606
        %v2842 = vmul.f32 %v2825, %v607
        %v2843 = vmul.f32 %v2826, %v608
        %v2844 = vmul.f32 %v2827, %v609
        %v2845 = vmul.f32 %v2828, %v610
        %v2846 = vmul.f32 %v2829, %v611
        %v2847 = vmul.f32 %v2830, %v612
        %v2848 = vmul.f32 %v2831, %v613
        %v2849 = vmul.f32 %v2832, %v614
        %v2850 = vmul.f32 %v2833, %v615
        %v2851 = vmul.f32 %v2834, %v616
        %v2852 = vmul.f32 %v2835, %v617
        %v2853 = vmul.f32 %v2836, %v618
        %v2854 = vmul.f32 %v2837, %v619
        %v2855 = vpack.c.bf16 %v2838, %v2838
        %v2856 = vpack.c.bf16 %v2839, %v2839
        %v2857 = vpack.c.bf16 %v2840, %v2840
        %v2858 = vpack.c.bf16 %v2841, %v2841
        %v2859 = vpack.c.bf16 %v2842, %v2842
        %v2860 = vpack.c.bf16 %v2843, %v2843
        %v2861 = vpack.c.bf16 %v2844, %v2844
        %v2862 = vpack.c.bf16 %v2845, %v2845
        %v2863 = vpack.c.bf16 %v2846, %v2846
        %v2864 = vpack.c.bf16 %v2847, %v2847
        %v2865 = vpack.c.bf16 %v2848, %v2848
        %v2866 = vpack.c.bf16 %v2849, %v2849
        %v2867 = vpack.c.bf16 %v2850, %v2850
        %v2868 = vpack.c.bf16 %v2851, %v2851
        %v2869 = vpack.c.bf16 %v2852, %v2852
        %v2870 = vpack.c.bf16 %v2853, %v2853
        %v2871 = vpack.c.bf16 %v2854, %v2854
        %2872 = vst.msk [vmem:[#allocation2 + $0x8] sm:$0xf] %vm466, %v2855
        %2873 = vst.msk [vmem:[#allocation2 + $0xc] sm:$0xf] %vm466, %v2856
        %2874 = vst.msk [vmem:[#allocation2 + $0x10] sm:$0xf] %vm466, %v2857
        %2875 = vst.msk [vmem:[#allocation2 + $0x14] sm:$0xf] %vm466, %v2858
        %2876 = vst.msk [vmem:[#allocation2 + $0x18] sm:$0xf] %vm466, %v2859
        %2877 = vst.msk [vmem:[#allocation2 + $0x1c] sm:$0xf] %vm466, %v2860
        %2878 = vst.msk [vmem:[#allocation2 + $0x20] sm:$0xf] %vm466, %v2861
        %2879 = vst.msk [vmem:[#allocation2 + $0x24] sm:$0xf] %vm466, %v2862
        %2880 = vst.msk [vmem:[#allocation2 + $0x28] sm:$0xf] %vm466, %v2863
        %2881 = vst.msk [vmem:[#allocation2 + $0x2c] sm:$0xf] %vm466, %v2864
        %2882 = vst.msk [vmem:[#allocation2 + $0x30] sm:$0xf] %vm466, %v2865
        %2883 = vst.msk [vmem:[#allocation2 + $0x34] sm:$0xf] %vm466, %v2866
        %2884 = vst.msk [vmem:[#allocation2 + $0x38] sm:$0xf] %vm466, %v2867
        %2885 = vst.msk [vmem:[#allocation2 + $0x3c] sm:$0xf] %vm466, %v2868
        %2886 = vst.msk [vmem:[#allocation2 + $0x40] sm:$0xf] %vm466, %v2869
        %2887 = vst.msk [vmem:[#allocation2 + $0x44] sm:$0xf] %vm466, %v2870
        %2888 = vst.msk [vmem:[#allocation2 + $0x48] sm:$0xf] %vm466, %v2871
        %v2889 = vld [vmem:[#allocation2 + $0x4] sm:$0x8]
        %v2890 = vld [vmem:[#allocation2 + $0x8] sm:$0xf]
        %v2891 = vld [vmem:[#allocation2 + $0xc] sm:$0xf]
        %v2892 = vld [vmem:[#allocation2 + $0x10] sm:$0xf]
        %v2893 = vld [vmem:[#allocation2 + $0x14] sm:$0xf]
        %v2894 = vld [vmem:[#allocation2 + $0x18] sm:$0xf]
        %v2895 = vld [vmem:[#allocation2 + $0x1c] sm:$0xf]
        %v2896 = vld [vmem:[#allocation2 + $0x20] sm:$0xf]
        %v2897 = vld [vmem:[#allocation2 + $0x24] sm:$0xf]
        %v2898 = vld [vmem:[#allocation2 + $0x28] sm:$0xf]
        %v2899 = vld [vmem:[#allocation2 + $0x2c] sm:$0xf]
        %v2900 = vld [vmem:[#allocation2 + $0x30] sm:$0xf]
        %v2901 = vld [vmem:[#allocation2 + $0x34] sm:$0xf]
        %v2902 = vld [vmem:[#allocation2 + $0x38] sm:$0xf]
        %v2903 = vld [vmem:[#allocation2 + $0x3c] sm:$0xf]
        %v2904 = vld [vmem:[#allocation2 + $0x40] sm:$0xf]
        %v2905 = vld [vmem:[#allocation2 + $0x44] sm:$0xf]
        %v2906 = vld [vmem:[#allocation2 + $0x48] sm:$0xf]
        %v2907 = vld [vmem:[%s12] sm:$0xf]
        %v2908 = vld [vmem:[%s12 + $0x4] sm:$0xf]
        %v2909 = vld [vmem:[%s12 + $0x8] sm:$0xf]
        %v2910 = vld [vmem:[%s12 + $0xc] sm:$0xf]
        %s2911 = scalar_lea.vmem %s12, 16
        %v2912 = vld [vmem:[%s2911] sm:$0xf]
        %v2913 = vld [vmem:[%s2911 + $0x4] sm:$0xf]
        %v2914 = vld [vmem:[%s2911 + $0x8] sm:$0xf]
        %v2915 = vld [vmem:[%s2911 + $0xc] sm:$0xf]
        %v2933 = vunpack.c.l.b16 %v2890
        %v2934 = vunpack.c.l.b16 %v2891
        %v2935 = vunpack.c.l.b16 %v2892
        %v2936 = vunpack.c.l.b16 %v2893
        %v2937 = vunpack.c.l.b16 %v2894
        %v2938 = vunpack.c.l.b16 %v2895
        %v2939 = vunpack.c.l.b16 %v2896
        %v2940 = vunpack.c.l.b16 %v2897
        %v2941 = vunpack.c.l.b16 %v2898
        %v2942 = vunpack.c.l.b16 %v2899
        %v2943 = vunpack.c.l.b16 %v2900
        %v2944 = vunpack.c.l.b16 %v2901
        %v2945 = vunpack.c.l.b16 %v2902
        %v2946 = vunpack.c.l.b16 %v2903
        %v2947 = vunpack.c.l.b16 %v2904
        %v2948 = vunpack.c.l.b16 %v2905
        %v2949 = vunpack.c.l.b16 %v2906
        %v2950 = vpack.c.b16 %v2934, %v2933
        %v2951 = vpack.c.b16 %v2936, %v2935
        %v2952 = vpack.c.b16 %v2938, %v2937
        %v2953 = vpack.c.b16 %v2940, %v2939
        %v2954 = vpack.c.b16 %v2942, %v2941
        %v2955 = vpack.c.b16 %v2944, %v2943
        %v2956 = vpack.c.b16 %v2946, %v2945
        %v2957 = vpack.c.b16 %v2948, %v2947
        %v2958 = vpack.c.b16 %v2949, %v2949
        %v2963 = vunpack.c.l.b16 %v2912
        %v2964 = vunpack.c.l.b16 %v2913
        %v2965 = vunpack.c.l.b16 %v2914
        %v2966 = vunpack.c.l.b16 %v2915
        %v2967 = vpack.c.b16 %v2964, %v2963
        %v2968 = vpack.c.b16 %v2966, %v2965
        %v2972 = vsel %vm1516, %v2950, 0
        %v2975 = vsel %vm1516, %v2951, 0
        %v2978 = vsel %vm1516, %v2952, 0
        %v2981 = vsel %vm1516, %v2953, 0
        %v2984 = vsel %vm1516, %v2954, 0
        %v2987 = vsel %vm1516, %v2955, 0
        %v2990 = vsel %vm1516, %v2956, 0
        %v2993 = vsel %vm1516, %v2957, 0
        %v2996 = vsel %vm1516, %v2958, 0
        %2998 = vmatpush.bf16.msra.mxu0 0
        %2999 = vmatpush.bf16.msra.mxu0 0
        %3000 = vmatpush.bf16.msra.mxu0 0
        %3001 = vmatpush.bf16.msra.mxu0 0
        %3002 = vmatpush.bf16.msra.mxu0 0
        %3003 = vmatpush.bf16.msra.mxu0 0
        %3004 = vmatpush.bf16.msra.mxu0 %v2968
        %3005 = vmatpush.bf16.msra.mxu0 %v2967
        %3006 = vmatmul.bf16.gmra.mxu0 %v2972
        %v3007 = vpop.f32.mrf.mxu0
        %v3008 = vadd.f32 0.0, %v3007
        %v3009 = vpop.f32.mrf.mxu0
        %v3010 = vadd.f32 0.0, %v3009
        %3011 = vmatmul.bf16.gmra.mxu0 %v2975
        %v3012 = vpop.f32.mrf.mxu0
        %v3013 = vadd.f32 0.0, %v3012
        %v3014 = vpop.f32.mrf.mxu0
        %v3015 = vadd.f32 0.0, %v3014
        %3016 = vmatmul.bf16.gmra.mxu0 %v2978
        %v3017 = vpop.f32.mrf.mxu0
        %v3018 = vadd.f32 0.0, %v3017
        %v3019 = vpop.f32.mrf.mxu0
        %v3020 = vadd.f32 0.0, %v3019
        %3021 = vmatmul.bf16.gmra.mxu0 %v2981
        %v3022 = vpop.f32.mrf.mxu0
        %v3023 = vadd.f32 0.0, %v3022
        %v3024 = vpop.f32.mrf.mxu0
        %v3025 = vadd.f32 0.0, %v3024
        %3026 = vmatmul.bf16.gmra.mxu0 %v2984
        %v3027 = vpop.f32.mrf.mxu0
        %v3028 = vadd.f32 0.0, %v3027
        %v3029 = vpop.f32.mrf.mxu0
        %v3030 = vadd.f32 0.0, %v3029
        %3031 = vmatmul.bf16.gmra.mxu0 %v2987
        %v3032 = vpop.f32.mrf.mxu0
        %v3033 = vadd.f32 0.0, %v3032
        %v3034 = vpop.f32.mrf.mxu0
        %v3035 = vadd.f32 0.0, %v3034
        %3036 = vmatmul.bf16.gmra.mxu0 %v2990
        %v3037 = vpop.f32.mrf.mxu0
        %v3038 = vadd.f32 0.0, %v3037
        %v3039 = vpop.f32.mrf.mxu0
        %v3040 = vadd.f32 0.0, %v3039
        %3041 = vmatmul.bf16.gmra.mxu0 %v2993
        %v3042 = vpop.f32.mrf.mxu0
        %v3043 = vadd.f32 0.0, %v3042
        %v3044 = vpop.f32.mrf.mxu0
        %v3045 = vadd.f32 0.0, %v3044
        %3046 = vmatmul.bf16.gmra.mxu0 %v2996
        %v3047 = vpop.f32.mrf.mxu0
        %v3048 = vadd.f32 0.0, %v3047
        %v3049 = vpop.f32.mrf.mxu0
        %3050 = vdwg.mxu0
        %v3052 = vunpack.c.l.b16 %v2889
        %v3053 = vpack.c.b16 %v2933, %v3052
        %v3054 = vpack.c.b16 %v2935, %v2934
        %v3055 = vpack.c.b16 %v2937, %v2936
        %v3056 = vpack.c.b16 %v2939, %v2938
        %v3057 = vpack.c.b16 %v2941, %v2940
        %v3058 = vpack.c.b16 %v2943, %v2942
        %v3059 = vpack.c.b16 %v2945, %v2944
        %v3060 = vpack.c.b16 %v2947, %v2946
        %v3061 = vpack.c.b16 %v2949, %v2948
        %v3063 = vshrl.u32 %v3053, 16
        %v3065 = vrot.slane %v3063, 3
        %v3066 = vshll.u32 %v3053, 16
        %v3068 = vrot.slane %v3066, 4
        %v3069 = vor.u32 %v3065, %v3068
        %v3071 = vshrl.u32 %v3054, 16
        %v3073 = vrot.slane %v3071, 3
        %v3074 = vshll.u32 %v3054, 16
        %v3076 = vrot.slane %v3074, 4
        %v3077 = vor.u32 %v3073, %v3076
        %v3078 = vsel %vm937, %v3069, %v3077
        %v3080 = vshrl.u32 %v3055, 16
        %v3082 = vrot.slane %v3080, 3
        %v3083 = vshll.u32 %v3055, 16
        %v3085 = vrot.slane %v3083, 4
        %v3086 = vor.u32 %v3082, %v3085
        %v3087 = vsel %vm937, %v3077, %v3086
        %v3089 = vshrl.u32 %v3056, 16
        %v3091 = vrot.slane %v3089, 3
        %v3092 = vshll.u32 %v3056, 16
        %v3094 = vrot.slane %v3092, 4
        %v3095 = vor.u32 %v3091, %v3094
        %v3096 = vsel %vm937, %v3086, %v3095
        %v3098 = vshrl.u32 %v3057, 16
        %v3100 = vrot.slane %v3098, 3
        %v3101 = vshll.u32 %v3057, 16
        %v3103 = vrot.slane %v3101, 4
        %v3104 = vor.u32 %v3100, %v3103
        %v3105 = vsel %vm937, %v3095, %v3104
        %v3107 = vshrl.u32 %v3058, 16
        %v3109 = vrot.slane %v3107, 3
        %v3110 = vshll.u32 %v3058, 16
        %v3112 = vrot.slane %v3110, 4
        %v3113 = vor.u32 %v3109, %v3112
        %v3114 = vsel %vm937, %v3104, %v3113
        %v3116 = vshrl.u32 %v3059, 16
        %v3118 = vrot.slane %v3116, 3
        %v3119 = vshll.u32 %v3059, 16
        %v3121 = vrot.slane %v3119, 4
        %v3122 = vor.u32 %v3118, %v3121
        %v3123 = vsel %vm937, %v3113, %v3122
        %v3125 = vshrl.u32 %v3060, 16
        %v3127 = vrot.slane %v3125, 3
        %v3128 = vshll.u32 %v3060, 16
        %v3130 = vrot.slane %v3128, 4
        %v3131 = vor.u32 %v3127, %v3130
        %v3132 = vsel %vm937, %v3122, %v3131
        %v3134 = vshrl.u32 %v3061, 16
        %v3136 = vrot.slane %v3134, 3
        %v3137 = vshll.u32 %v3061, 16
        %v3139 = vrot.slane %v3137, 4
        %v3140 = vor.u32 %v3136, %v3139
        %v3141 = vsel %vm937, %v3131, %v3140
        %v3146 = vunpack.c.l.b16 %v2907
        %v3147 = vunpack.c.l.b16 %v2908
        %v3148 = vunpack.c.l.b16 %v2909
        %v3149 = vunpack.c.l.b16 %v2910
        %v3150 = vpack.c.b16 %v3147, %v3146
        %v3151 = vpack.c.b16 %v3149, %v3148
        %v3155 = vsel %vm1516, %v3078, 0
        %v3158 = vsel %vm1516, %v3087, 0
        %v3161 = vsel %vm1516, %v3096, 0
        %v3164 = vsel %vm1516, %v3105, 0
        %v3167 = vsel %vm1516, %v3114, 0
        %v3170 = vsel %vm1516, %v3123, 0
        %v3173 = vsel %vm1516, %v3132, 0
        %v3176 = vsel %vm1516, %v3141, 0
        %v3179 = vsel %vm1516, %v3140, 0
        %3181 = vmatpush.bf16.msra.mxu0 0
        %3182 = vmatpush.bf16.msra.mxu0 0
        %3183 = vmatpush.bf16.msra.mxu0 0
        %3184 = vmatpush.bf16.msra.mxu0 0
        %3185 = vmatpush.bf16.msra.mxu0 0
        %3186 = vmatpush.bf16.msra.mxu0 0
        %3187 = vmatpush.bf16.msra.mxu0 %v3151
        %3188 = vmatpush.bf16.msra.mxu0 %v3150
        %3189 = vmatmul.bf16.gmra.mxu0 %v3155
        %v3190 = vpop.f32.mrf.mxu0
        %v3191 = vadd.f32 %v3008, %v3190
        %v3192 = vpop.f32.mrf.mxu0
        %v3193 = vadd.f32 %v3010, %v3192
        %3194 = vmatmul.bf16.gmra.mxu0 %v3158
        %v3195 = vpop.f32.mrf.mxu0
        %v3196 = vadd.f32 %v3013, %v3195
        %v3197 = vpop.f32.mrf.mxu0
        %v3198 = vadd.f32 %v3015, %v3197
        %3199 = vmatmul.bf16.gmra.mxu0 %v3161
        %v3200 = vpop.f32.mrf.mxu0
        %v3201 = vadd.f32 %v3018, %v3200
        %v3202 = vpop.f32.mrf.mxu0
        %v3203 = vadd.f32 %v3020, %v3202
        %3204 = vmatmul.bf16.gmra.mxu0 %v3164
        %v3205 = vpop.f32.mrf.mxu0
        %v3206 = vadd.f32 %v3023, %v3205
        %v3207 = vpop.f32.mrf.mxu0
        %v3208 = vadd.f32 %v3025, %v3207
        %3209 = vmatmul.bf16.gmra.mxu0 %v3167
        %v3210 = vpop.f32.mrf.mxu0
        %v3211 = vadd.f32 %v3028, %v3210
        %v3212 = vpop.f32.mrf.mxu0
        %v3213 = vadd.f32 %v3030, %v3212
        %3214 = vmatmul.bf16.gmra.mxu0 %v3170
        %v3215 = vpop.f32.mrf.mxu0
        %v3216 = vadd.f32 %v3033, %v3215
        %v3217 = vpop.f32.mrf.mxu0
        %v3218 = vadd.f32 %v3035, %v3217
        %3219 = vmatmul.bf16.gmra.mxu0 %v3173
        %v3220 = vpop.f32.mrf.mxu0
        %v3221 = vadd.f32 %v3038, %v3220
        %v3222 = vpop.f32.mrf.mxu0
        %v3223 = vadd.f32 %v3040, %v3222
        %3224 = vmatmul.bf16.gmra.mxu0 %v3176
        %v3225 = vpop.f32.mrf.mxu0
        %v3226 = vadd.f32 %v3043, %v3225
        %v3227 = vpop.f32.mrf.mxu0
        %v3228 = vadd.f32 %v3045, %v3227
        %3229 = vmatmul.bf16.gmra.mxu0 %v3179
        %v3230 = vpop.f32.mrf.mxu0
        %v3231 = vadd.f32 %v3048, %v3230
        %v3232 = vpop.f32.mrf.mxu0
        %3233 = vdwg.mxu0
        %v3234 = vld [vmem:[#allocation2 + $0x8] sm:$0xf]
        %v3235 = vld [vmem:[#allocation2 + $0xc] sm:$0xf]
        %v3236 = vld [vmem:[#allocation2 + $0x10] sm:$0xf]
        %v3237 = vld [vmem:[#allocation2 + $0x14] sm:$0xf]
        %v3238 = vld [vmem:[#allocation2 + $0x18] sm:$0xf]
        %v3239 = vld [vmem:[#allocation2 + $0x1c] sm:$0xf]
        %v3240 = vld [vmem:[#allocation2 + $0x20] sm:$0xf]
        %v3241 = vld [vmem:[#allocation2 + $0x24] sm:$0xf]
        %v3242 = vld [vmem:[#allocation2 + $0x28] sm:$0xf]
        %v3243 = vld [vmem:[#allocation2 + $0x2c] sm:$0xf]
        %v3244 = vld [vmem:[#allocation2 + $0x30] sm:$0xf]
        %v3245 = vld [vmem:[#allocation2 + $0x34] sm:$0xf]
        %v3246 = vld [vmem:[#allocation2 + $0x38] sm:$0xf]
        %v3247 = vld [vmem:[#allocation2 + $0x3c] sm:$0xf]
        %v3248 = vld [vmem:[#allocation2 + $0x40] sm:$0xf]
        %v3249 = vld [vmem:[#allocation2 + $0x44] sm:$0xf]
        %v3250 = vld [vmem:[#allocation2 + $0x48] sm:$0xf]
        %v3251 = vld [vmem:[#allocation2 + $0x4c] sm:$0x1]
        %s3252 = scalar_lea.vmem %s12, 32
        %v3253 = vld [vmem:[%s3252] sm:$0xf]
        %v3254 = vld [vmem:[%s3252 + $0x4] sm:$0xf]
        %v3255 = vld [vmem:[%s3252 + $0x8] sm:$0xf]
        %v3256 = vld [vmem:[%s3252 + $0xc] sm:$0xf]
        %v3275 = vunpack.c.l.b16 %v3234
        %v3276 = vunpack.c.l.b16 %v3235
        %v3277 = vunpack.c.l.b16 %v3236
        %v3278 = vunpack.c.l.b16 %v3237
        %v3279 = vunpack.c.l.b16 %v3238
        %v3280 = vunpack.c.l.b16 %v3239
        %v3281 = vunpack.c.l.b16 %v3240
        %v3282 = vunpack.c.l.b16 %v3241
        %v3283 = vunpack.c.l.b16 %v3242
        %v3284 = vunpack.c.l.b16 %v3243
        %v3285 = vunpack.c.l.b16 %v3244
        %v3286 = vunpack.c.l.b16 %v3245
        %v3287 = vunpack.c.l.b16 %v3246
        %v3288 = vunpack.c.l.b16 %v3247
        %v3289 = vunpack.c.l.b16 %v3248
        %v3290 = vunpack.c.l.b16 %v3249
        %v3291 = vunpack.c.l.b16 %v3250
        %v3292 = vunpack.c.l.b16 %v3251
        %v3293 = vpack.c.b16 %v3276, %v3275
        %v3294 = vpack.c.b16 %v3278, %v3277
        %v3295 = vpack.c.b16 %v3280, %v3279
        %v3296 = vpack.c.b16 %v3282, %v3281
        %v3297 = vpack.c.b16 %v3284, %v3283
        %v3298 = vpack.c.b16 %v3286, %v3285
        %v3299 = vpack.c.b16 %v3288, %v3287
        %v3300 = vpack.c.b16 %v3290, %v3289
        %v3301 = vpack.c.b16 %v3292, %v3291
        %v3303 = vshrl.u32 %v3293, 16
        %v3305 = vshll.u32 %v3293, 16
        %v3307 = vrot.slane %v3305, 1
        %v3308 = vor.u32 %v3303, %v3307
        %v3310 = vshll.u32 %v3294, 16
        %v3312 = vrot.slane %v3310, 1
        %v3313 = vsel %vm1170, %v3308, %v3312
        %v3314 = vshrl.u32 %v3294, 16
        %v3316 = vor.u32 %v3314, %v3312
        %v3318 = vshll.u32 %v3295, 16
        %v3320 = vrot.slane %v3318, 1
        %v3321 = vsel %vm1170, %v3316, %v3320
        %v3322 = vshrl.u32 %v3295, 16
        %v3324 = vor.u32 %v3322, %v3320
        %v3326 = vshll.u32 %v3296, 16
        %v3328 = vrot.slane %v3326, 1
        %v3329 = vsel %vm1170, %v3324, %v3328
        %v3330 = vshrl.u32 %v3296, 16
        %v3332 = vor.u32 %v3330, %v3328
        %v3334 = vshll.u32 %v3297, 16
        %v3336 = vrot.slane %v3334, 1
        %v3337 = vsel %vm1170, %v3332, %v3336
        %v3338 = vshrl.u32 %v3297, 16
        %v3340 = vor.u32 %v3338, %v3336
        %v3342 = vshll.u32 %v3298, 16
        %v3344 = vrot.slane %v3342, 1
        %v3345 = vsel %vm1170, %v3340, %v3344
        %v3346 = vshrl.u32 %v3298, 16
        %v3348 = vor.u32 %v3346, %v3344
        %v3350 = vshll.u32 %v3299, 16
        %v3352 = vrot.slane %v3350, 1
        %v3353 = vsel %vm1170, %v3348, %v3352
        %v3354 = vshrl.u32 %v3299, 16
        %v3356 = vor.u32 %v3354, %v3352
        %v3358 = vshll.u32 %v3300, 16
        %v3360 = vrot.slane %v3358, 1
        %v3361 = vsel %vm1170, %v3356, %v3360
        %v3362 = vshrl.u32 %v3300, 16
        %v3364 = vor.u32 %v3362, %v3360
        %v3366 = vshll.u32 %v3301, 16
        %v3368 = vrot.slane %v3366, 1
        %v3369 = vsel %vm1170, %v3364, %v3368
        %v3370 = vshrl.u32 %v3301, 16
        %v3372 = vor.u32 %v3370, %v3368
        %v3377 = vunpack.c.l.b16 %v3253
        %v3378 = vunpack.c.l.b16 %v3254
        %v3379 = vunpack.c.l.b16 %v3255
        %v3380 = vunpack.c.l.b16 %v3256
        %v3381 = vpack.c.b16 %v3378, %v3377
        %v3382 = vpack.c.b16 %v3380, %v3379
        %v3386 = vsel %vm1516, %v3313, 0
        %v3389 = vsel %vm1516, %v3321, 0
        %v3392 = vsel %vm1516, %v3329, 0
        %v3395 = vsel %vm1516, %v3337, 0
        %v3398 = vsel %vm1516, %v3345, 0
        %v3401 = vsel %vm1516, %v3353, 0
        %v3404 = vsel %vm1516, %v3361, 0
        %v3407 = vsel %vm1516, %v3369, 0
        %v3410 = vsel %vm1516, %v3372, 0
        %3412 = vmatpush.bf16.msra.mxu0 0
        %3413 = vmatpush.bf16.msra.mxu0 0
        %3414 = vmatpush.bf16.msra.mxu0 0
        %3415 = vmatpush.bf16.msra.mxu0 0
        %3416 = vmatpush.bf16.msra.mxu0 0
        %3417 = vmatpush.bf16.msra.mxu0 0
        %3418 = vmatpush.bf16.msra.mxu0 %v3382
        %3419 = vmatpush.bf16.msra.mxu0 %v3381
        %3420 = vmatmul.bf16.gmra.mxu0 %v3386
        %v3421 = vpop.f32.mrf.mxu0
        %v3422 = vadd.f32 0.0, %v3421
        %v3423 = vpop.f32.mrf.mxu0
        %v3424 = vadd.f32 0.0, %v3423
        %3425 = vmatmul.bf16.gmra.mxu0 %v3389
        %v3426 = vpop.f32.mrf.mxu0
        %v3427 = vadd.f32 0.0, %v3426
        %v3428 = vpop.f32.mrf.mxu0
        %v3429 = vadd.f32 0.0, %v3428
        %3430 = vmatmul.bf16.gmra.mxu0 %v3392
        %v3431 = vpop.f32.mrf.mxu0
        %v3432 = vadd.f32 0.0, %v3431
        %v3433 = vpop.f32.mrf.mxu0
        %v3434 = vadd.f32 0.0, %v3433
        %3435 = vmatmul.bf16.gmra.mxu0 %v3395
        %v3436 = vpop.f32.mrf.mxu0
        %v3437 = vadd.f32 0.0, %v3436
        %v3438 = vpop.f32.mrf.mxu0
        %v3439 = vadd.f32 0.0, %v3438
        %3440 = vmatmul.bf16.gmra.mxu0 %v3398
        %v3441 = vpop.f32.mrf.mxu0
        %v3442 = vadd.f32 0.0, %v3441
        %v3443 = vpop.f32.mrf.mxu0
        %v3444 = vadd.f32 0.0, %v3443
        %3445 = vmatmul.bf16.gmra.mxu0 %v3401
        %v3446 = vpop.f32.mrf.mxu0
        %v3447 = vadd.f32 0.0, %v3446
        %v3448 = vpop.f32.mrf.mxu0
        %v3449 = vadd.f32 0.0, %v3448
        %3450 = vmatmul.bf16.gmra.mxu0 %v3404
        %v3451 = vpop.f32.mrf.mxu0
        %v3452 = vadd.f32 0.0, %v3451
        %v3453 = vpop.f32.mrf.mxu0
        %v3454 = vadd.f32 0.0, %v3453
        %3455 = vmatmul.bf16.gmra.mxu0 %v3407
        %v3456 = vpop.f32.mrf.mxu0
        %v3457 = vadd.f32 0.0, %v3456
        %v3458 = vpop.f32.mrf.mxu0
        %v3459 = vadd.f32 0.0, %v3458
        %3460 = vmatmul.bf16.gmra.mxu0 %v3410
        %v3461 = vpop.f32.mrf.mxu0
        %v3462 = vadd.f32 0.0, %v3461
        %v3463 = vpop.f32.mrf.mxu0
        %3464 = vdwg.mxu0
        %v3465 = vadd.f32 %v3191, %v3422
        %v3466 = vadd.f32 %v3193, %v3424
        %v3467 = vadd.f32 %v3196, %v3427
        %v3468 = vadd.f32 %v3198, %v3429
        %v3469 = vadd.f32 %v3201, %v3432
        %v3470 = vadd.f32 %v3203, %v3434
        %v3471 = vadd.f32 %v3206, %v3437
        %v3472 = vadd.f32 %v3208, %v3439
        %v3473 = vadd.f32 %v3211, %v3442
        %v3474 = vadd.f32 %v3213, %v3444
        %v3475 = vadd.f32 %v3216, %v3447
        %v3476 = vadd.f32 %v3218, %v3449
        %v3477 = vadd.f32 %v3221, %v3452
        %v3478 = vadd.f32 %v3223, %v3454
        %v3479 = vadd.f32 %v3226, %v3457
        %v3480 = vadd.f32 %v3228, %v3459
        %v3481 = vadd.f32 %v3231, %v3462
        %v3482 = vld [vmem:[%s13] sm:$0x1]
        %v3484 = vperm.slane %v3482, 0
        %v3486 = vadd.f32 %v3465, %v3484
        %v3487 = vadd.f32 %v3466, %v3484
        %v3488 = vadd.f32 %v3467, %v3484
        %v3489 = vadd.f32 %v3468, %v3484
        %v3490 = vadd.f32 %v3469, %v3484
        %v3491 = vadd.f32 %v3470, %v3484
        %v3492 = vadd.f32 %v3471, %v3484
        %v3493 = vadd.f32 %v3472, %v3484
        %v3494 = vadd.f32 %v3473, %v3484
        %v3495 = vadd.f32 %v3474, %v3484
        %v3496 = vadd.f32 %v3475, %v3484
        %v3497 = vadd.f32 %v3476, %v3484
        %v3498 = vadd.f32 %v3477, %v3484
        %v3499 = vadd.f32 %v3478, %v3484
        %v3500 = vadd.f32 %v3479, %v3484
        %v3501 = vadd.f32 %v3480, %v3484
        %v3502 = vadd.f32 %v3481, %v3484
        %v3503 = vadd.f32 %v3486, %v2251
        %v3504 = vadd.f32 %v3487, %v2253
        %v3505 = vadd.f32 %v3488, %v2256
        %v3506 = vadd.f32 %v3489, %v2258
        %v3507 = vadd.f32 %v3490, %v2261
        %v3508 = vadd.f32 %v3491, %v2263
        %v3509 = vadd.f32 %v3492, %v2266
        %v3510 = vadd.f32 %v3493, %v2268
        %v3511 = vadd.f32 %v3494, %v2271
        %v3512 = vadd.f32 %v3495, %v2273
        %v3513 = vadd.f32 %v3496, %v2276
        %v3514 = vadd.f32 %v3497, %v2278
        %v3515 = vadd.f32 %v3498, %v2281
        %v3516 = vadd.f32 %v3499, %v2283
        %v3517 = vadd.f32 %v3500, %v2286
        %v3518 = vadd.f32 %v3501, %v2288
        %v3519 = vadd.f32 %v3502, %v2291
        %v3520 = vmax.f32 %v3503, 0.0
        %v3521 = vmax.f32 %v3504, 0.0
        %v3522 = vmax.f32 %v3505, 0.0
        %v3523 = vmax.f32 %v3506, 0.0
        %v3524 = vmax.f32 %v3507, 0.0
        %v3525 = vmax.f32 %v3508, 0.0
        %v3526 = vmax.f32 %v3509, 0.0
        %v3527 = vmax.f32 %v3510, 0.0
        %v3528 = vmax.f32 %v3511, 0.0
        %v3529 = vmax.f32 %v3512, 0.0
        %v3530 = vmax.f32 %v3513, 0.0
        %v3531 = vmax.f32 %v3514, 0.0
        %v3532 = vmax.f32 %v3515, 0.0
        %v3533 = vmax.f32 %v3516, 0.0
        %v3534 = vmax.f32 %v3517, 0.0
        %v3535 = vmax.f32 %v3518, 0.0
        %v3536 = vmax.f32 %v3519, 0.0
        %3537 = vst [vmem:[%s456 - $0x4] sm:$0xf0] %v3520
        %3538 = vst [vmem:[%s456 + $0x4] sm:$0xff] %v3521
        %3539 = vst [vmem:[%s456 + $0xc] sm:$0xff] %v3522
        %3540 = vst [vmem:[%s456 + $0x14] sm:$0xff] %v3523
        %3541 = vst [vmem:[%s456 + $0x1c] sm:$0xff] %v3524
        %3542 = vst [vmem:[%s456 + $0x24] sm:$0xff] %v3525
        %3543 = vst [vmem:[%s456 + $0x2c] sm:$0xff] %v3526
        %3544 = vst [vmem:[%s456 + $0x34] sm:$0xff] %v3527
        %3545 = vst [vmem:[%s456 + $0x3c] sm:$0xff] %v3528
        %3546 = vst [vmem:[%s456 + $0x44] sm:$0xff] %v3529
        %3547 = vst [vmem:[%s456 + $0x4c] sm:$0xff] %v3530
        %3548 = vst [vmem:[%s456 + $0x54] sm:$0xff] %v3531
        %3549 = vst [vmem:[%s456 + $0x5c] sm:$0xff] %v3532
        %3550 = vst [vmem:[%s456 + $0x64] sm:$0xff] %v3533
        %3551 = vst [vmem:[%s456 + $0x6c] sm:$0xff] %v3534
        %3552 = vst [vmem:[%s456 + $0x74] sm:$0xff] %v3535
        %3553 = vst [vmem:[%s456 + $0x7c] sm:$0xf] %v3536
        %s3554 = sand.u32 %s336, 1
        %s3555 = scalar_lea.sflag [#allocation6], %s3554
        %s3556 = sand.u32 %s336, 1
        %s3557 = smul.addr %s3556, 128
        %s3558 = scalar_lea.vmem [#allocation5], %s3557
        // Predicated region
        $region73: #{tpu_custom_call.1} parent=71 // pred_check
          %p3559 = pneg %p346
        $region74: #{tpu_custom_call.1} parent=71 // pred_check_branch
          %3561 = sbr.rel (%p3559) target = $region76
        $region75: #{tpu_custom_call.1} parent=71 // pred_region
          %s3562 = smul.u32 16, %s41
          %3564 = vsyncadd %s3555, 0
          %s3565 = smul.addr %s40, 32
          %s3566 = sadd.s32 %s3562, %s3565
          %s3567 = smul.addr %s3566, 8
          %s3568 = scalar_lea.hbm %s14, %s3567
          %s3569 = sshll.u32 %s3558, 4
          %s3570 = int_to_ptr.vmem [resolvable:$true] %s3569
          %s3571 = sshll.u32 %s3568, 4
          %s3572 = int_to_ptr.hbm [resolvable:$true] %s3571
          %3577 = dma.vmem_to_hbm [thread:$0]  %s3570, 2048, %s3572, %s3555, 128, 128, 8
        $region76: #{tpu_custom_call.1} parent=71 // pred_fallthru
          _
      $region72: #{tpu_custom_call.1} parent=5 // pred_fallthru
        _
      %p3578 = scmp.le.s32.totalorder 2, %s31
      // Predicated region
      $region77: #{tpu_custom_call.1} parent=5 // pred_check
        %p3579 = pneg %p3578
      $region78: #{tpu_custom_call.1} parent=5 // pred_check_branch
        %3581 = sbr.rel (%p3579) target = $region80
      $region79: #{tpu_custom_call.1} parent=5 // pred_region
        %s3582 = ssub.s32 %s31, 2
        // Predicated region
        $region81: #{tpu_custom_call.1} parent=79 // pred_check
          %p3583 = pneg %p352
        $region82: #{tpu_custom_call.1} parent=79 // pred_check_branch
          %3585 = sbr.rel (%p3583) target = $region84
        $region83: #{tpu_custom_call.1} parent=79 // pred_region
          %s3586 = sand.u32 %s337, 1
          %s3587 = scalar_lea.sflag [#allocation6], %s3586
          %s3588 = sand.u32 %s337, 1
          %s3589 = smul.addr %s3588, 128
          %s3590 = scalar_lea.vmem [#allocation5], %s3589
          %3592 = dma.done %s3587, 2048
        $region84: #{tpu_custom_call.1} parent=79 // pred_fallthru
          _
      $region80: #{tpu_custom_call.1} parent=5 // pred_fallthru
        _
    $region6: #{tpu_custom_call.1} parent=1 // loop_footer
      %s35 = sadd.s32 1, %s31
    $region7: #{tpu_custom_call.1} parent=1 // loop_footer_branch
      %30 = sbr.rel target = $region3
    $region8: #{tpu_custom_call.1} parent=1 // loop_exit
      _
    %3593 = vsyncpa [#allocation6], 1
    %s3594 = scalar_lea.sflag [#allocation6], 1
    %3595 = vsyncpa %s3594, 1

</llo_original>
